<compile_context>
chip_gen: v5e
topology: v5e:2x2
jax: 0.10.0
libtpu: 0.0.40
codegen_flags: <defaults>
</compile_context>

<pallas_src>
import jax
import jax.numpy as jnp
from jax.experimental import pallas as pl
from jax.experimental.pallas import tpu as pltpu

KH = KW = 5
PAD = 2
BN_EPS = 1e-5


def fused_dwconv_bn_kernel(x_ref, w_ref, g_ref, b_ref, o_ref, xpad_ref):
    # x_ref:    (N, H, W, ct)       unpadded input tile (full batch, ct channels)
    # w_ref:    (KH, KW, ct)        depthwise filters for this channel tile
    # g_ref:    (1, ct)             BN gamma
    # b_ref:    (1, ct)             BN beta
    # o_ref:    (N, H, W, ct)       output tile (also holds raw conv result)
    # xpad_ref: (N, H+4, W+4, ct)   VMEM scratch with the zero-padded input
    N, H, W, ct = x_ref.shape

    # ---- zero-pad the input inside VMEM (no wrapper-side jnp.pad) ------------
    xpad_ref[...] = jnp.zeros(xpad_ref.shape, xpad_ref.dtype)
    xpad_ref[:, PAD:PAD + H, PAD:PAD + W, :] = x_ref[...].astype(jnp.float32)

    inv_cnt = 1.0 / (N * H * W)
    s1 = jnp.zeros((1, ct), jnp.float32)   # per-channel sum
    s2 = jnp.zeros((1, ct), jnp.float32)   # per-channel sum of squares

    # ---- depthwise 5x5 convolution + one-pass BN statistics -------------------
    # dw (the W / sublane-axis shift) is the OUTER loop: one sublane-misaligned
    # slice per dw (5 total instead of 25); the dh shifts are leading-dim
    # offsets of the already-shifted slab (pure address arithmetic).
    for n in range(N):
        acc = None
        for dw in range(KW):
            shifted = xpad_ref[n, :, dw:dw + W, :]            # (H+2*PAD, W, ct)
            part = shifted[0:H] * w_ref[0, dw, :]
            for dh in range(1, KH):
                part = part + shifted[dh:dh + H] * w_ref[dh, dw, :]
            acc = part if acc is None else acc + part
        o_ref[n] = acc                                        # single store per image
        s1 = s1 + jnp.sum(acc, axis=(0, 1)).reshape(1, ct)
        s2 = s2 + jnp.sum(acc * acc, axis=(0, 1)).reshape(1, ct)

    # ---- BatchNorm (training-mode batch statistics), fused in VMEM -----------
    mean = s1 * inv_cnt
    var = jnp.maximum(s2 * inv_cnt - mean * mean, 0.0)        # biased variance
    scale = jax.lax.rsqrt(var + BN_EPS) * g_ref[...]          # (1, ct)
    shift = b_ref[...] - mean * scale                         # (1, ct)
    o_ref[...] = (o_ref[...] * scale + shift).astype(o_ref.dtype)
    # TODO(synk): running_mean / running_var buffer updates (momentum=0.1) are
    # not produced; only the forward output is computed.


def _pick_channel_tile(c_pad, per_channel_block_bytes, max_block_bytes=6 << 20):
    """Largest 128-multiple divisor of c_pad that leaves >= 2 grid steps and a
    modest per-step VMEM footprint."""
    if c_pad == 128:
        return 128
    best = 128
    for ct in range(128, c_pad, 128):   # strictly < c_pad -> >= 2 grid steps
        if c_pad % ct == 0 and ct * per_channel_block_bytes <= max_block_bytes:
            best = ct
    return best


def depthwise_conv_bn(x_nchw, weight, gamma, beta, *, ct=None):
    """x_nchw: (N, C, H, W); weight: (C, 1, KH, KW); gamma/beta: (C,)."""
    N, C, H, W = x_nchw.shape

    # Pad channels to a lane-dense multiple of 128 (1200 -> 1280). The padded
    # channels are all-zero; BN stats are per-channel, so they never affect the
    # real channels, and they are sliced off afterwards.
    C_pad = ((C + 127) // 128) * 128
    if ct is None:
        ct = _pick_channel_tile(
            C_pad, N * (H + 2 * PAD) * (W + 2 * PAD) * 4)
    assert C_pad % ct == 0 and ct % 128 == 0

    # NCHW -> NHWC (channels on the lane axis) + channel padding.
    x = jnp.transpose(x_nchw, (0, 2, 3, 1)).astype(jnp.float32)
    w = jnp.transpose(weight[:, 0, :, :], (1, 2, 0)).astype(jnp.float32)  # (KH, KW, C)
    g = gamma.astype(jnp.float32).reshape(1, C)
    b = beta.astype(jnp.float32).reshape(1, C)
    if C_pad != C:
        dc = C_pad - C
        x = jnp.pad(x, ((0, 0), (0, 0), (0, 0), (0, dc)))
        w = jnp.pad(w, ((0, 0), (0, 0), (0, dc)))
        g = jnp.pad(g, ((0, 0), (0, dc)))
        b = jnp.pad(b, ((0, 0), (0, dc)))

    y = pl.pallas_call(
        fused_dwconv_bn_kernel,
        out_shape=jax.ShapeDtypeStruct((N, H, W, C_pad), jnp.float32),
        grid=(C_pad // ct,),
        in_specs=[
            pl.BlockSpec((N, H, W, ct), lambda c: (0, 0, 0, c)),
            pl.BlockSpec((KH, KW, ct), lambda c: (0, 0, c)),
            pl.BlockSpec((1, ct), lambda c: (0, c)),
            pl.BlockSpec((1, ct), lambda c: (0, c)),
        ],
        out_specs=pl.BlockSpec((N, H, W, ct), lambda c: (0, 0, 0, c)),
        scratch_shapes=[
            pltpu.VMEM((N, H + 2 * PAD, W + 2 * PAD, ct), jnp.float32),
        ],
        compiler_params=pltpu.CompilerParams(
            dimension_semantics=("parallel",),
            vmem_limit_bytes=32 * 1024 * 1024),
    )(x, w, g, b)

    y = y[..., :C]
    # TODO(synk): if this op sits inside a larger NHWC network, drop these two
    # layout transposes (each is a full HBM pass comparable to kernel traffic).
    return jnp.transpose(y, (0, 3, 1, 2))


def reference(x_nchw, weight, gamma, beta):
    """Plain-JAX reference for verification."""
    N, C, H, W = x_nchw.shape
    x = jnp.transpose(x_nchw, (0, 2, 3, 1)).astype(jnp.float32)
    xp = jnp.pad(x, ((0, 0), (PAD, PAD), (PAD, PAD), (0, 0)))
    w = jnp.transpose(weight[:, 0], (1, 2, 0)).astype(jnp.float32)
    acc = jnp.zeros((N, H, W, C), jnp.float32)
    for dh in range(KH):
        for dw in range(KW):
            acc = acc + xp[:, dh:dh + H, dw:dw + W, :] * w[dh, dw, :]
    mean = jnp.mean(acc, axis=(0, 1, 2), keepdims=True)
    var = jnp.mean((acc - mean) ** 2, axis=(0, 1, 2), keepdims=True)
    out = (acc - mean) * jax.lax.rsqrt(var + BN_EPS) * gamma + beta
    return jnp.transpose(out, (0, 3, 1, 2))


if __name__ == "__main__":
    # Small shapes consistent with the module (original: (1, 1200, 14, 14)):
    # keep the 14x14 spatial / 5x5 / pad-2 depthwise structure, shrink channels.
    # C=300 is deliberately NOT a multiple of 128 so the channel-padding path
    # (like 1200 -> 1280) is exercised.
    N, C, H, W = 2, 300, 14, 14

    key = jax.random.PRNGKey(0)
    kx, kw, kg, kb = jax.random.split(key, 4)
    x = jax.random.normal(kx, (N, C, H, W), dtype=jnp.float32)
    # Conv2d(C, C, 5, groups=C, bias=False) -> weight shape (C, 1, 5, 5)
    weight = jax.random.normal(kw, (C, 1, KH, KW), dtype=jnp.float32) * 0.1
    # BatchNorm2d affine params (default init is gamma=1, beta=0; perturbed to
    # exercise the affine path).
    gamma = 1.0 + 0.1 * jax.random.normal(kg, (C,), dtype=jnp.float32)
    beta = 0.1 * jax.random.normal(kb, (C,), dtype=jnp.float32)

    out = depthwise_conv_bn(x, weight, gamma, beta)
    out = jax.block_until_ready(out)

    ref = reference(x, weight, gamma, beta)
    assert out.shape == (N, C, H, W)
    assert jnp.allclose(out, ref, atol=1e-4, rtol=1e-4), "mismatch vs reference"

    print("KERNEL_OK")
</pallas_src>

<mosaic_0001>
module attributes {stable_mosaic.version = 11 : i64} {
  func.func @fused_dwconv_bn_kernel(%arg0: i32, %arg1: memref<2x14x14x128xf32, #tpu.memory_space<vmem>>, %arg2: memref<5x5x128xf32, #tpu.memory_space<vmem>>, %arg3: memref<1x128xf32, #tpu.memory_space<vmem>>, %arg4: memref<1x128xf32, #tpu.memory_space<vmem>>, %arg5: memref<2x14x14x128xf32, #tpu.memory_space<vmem>>, %arg6: memref<2x18x18x128xf32, #tpu.memory_space<vmem>>) attributes {dimension_semantics = [#tpu.dimension_semantics<parallel>], iteration_bounds = array<i64: 3>, scalar_prefetch = 0 : i64, scratch_operands = 1 : i64, tpu.core_type = #tpu.core_type<tc>, window_params = [{transform_indices = @transform_0, window_bounds = array<i64: 2, 14, 14, 128>}, {transform_indices = @transform_1, window_bounds = array<i64: 5, 5, 128>}, {transform_indices = @transform_2, window_bounds = array<i64: 1, 128>}, {transform_indices = @transform_3, window_bounds = array<i64: 1, 128>}, {transform_indices = @transform_4, window_bounds = array<i64: 2, 14, 14, 128>}]} {
    %cst = arith.constant 0.000000e+00 : f32
    %0 = vector.broadcast %cst : f32 to vector<2x18x18x128xf32>
    %c0 = arith.constant 0 : index
    %c0_0 = arith.constant 0 : index
    %c0_1 = arith.constant 0 : index
    %c0_2 = arith.constant 0 : index
    %1 = vector.load %arg6[%c0, %c0_0, %c0_1, %c0_2] : memref<2x18x18x128xf32, #tpu.memory_space<vmem>>, vector<2x18x18x128xf32>
    tpu.vector_store %arg6[%c0, %c0_0, %c0_1, %c0_2], %0 {strides = array<i32>} : memref<2x18x18x128xf32, #tpu.memory_space<vmem>>, vector<2x18x18x128xf32>,
    %c0_3 = arith.constant 0 : index
    %c0_4 = arith.constant 0 : index
    %c0_5 = arith.constant 0 : index
    %c0_6 = arith.constant 0 : index
    %2 = vector.load %arg1[%c0_3, %c0_4, %c0_5, %c0_6] : memref<2x14x14x128xf32, #tpu.memory_space<vmem>>, vector<2x14x14x128xf32>
    %c0_7 = arith.constant 0 : index
    %c2 = arith.constant 2 : index
    %c2_8 = arith.constant 2 : index
    %c0_9 = arith.constant 0 : index
    %3 = vector.load %arg6[%c0_7, %c2, %c2_8, %c0_9] : memref<2x18x18x128xf32, #tpu.memory_space<vmem>>, vector<2x14x14x128xf32>
    tpu.vector_store %arg6[%c0_7, %c2, %c2_8, %c0_9], %2 {strides = array<i32>} : memref<2x18x18x128xf32, #tpu.memory_space<vmem>>, vector<2x14x14x128xf32>,
    %cst_10 = arith.constant 0.000000e+00 : f32
    %4 = vector.broadcast %cst_10 : f32 to vector<1x128xf32>
    %cst_11 = arith.constant 0.000000e+00 : f32
    %5 = vector.broadcast %cst_11 : f32 to vector<1x128xf32>
    %c0_12 = arith.constant 0 : index
    %c0_13 = arith.constant 0 : index
    %c0_14 = arith.constant 0 : index
    %c0_15 = arith.constant 0 : index
    %6 = vector.load %arg6[%c0_12, %c0_13, %c0_14, %c0_15] : memref<2x18x18x128xf32, #tpu.memory_space<vmem>>, vector<1x18x14x128xf32>
    %7 = vector.shape_cast %6 : vector<1x18x14x128xf32> to vector<18x14x128xf32>
    %8 = vector.extract_strided_slice %7 {offsets = [0, 0, 0], sizes = [14, 14, 128], strides = [1, 1, 1]} : vector<18x14x128xf32> to vector<14x14x128xf32>
    %c0_16 = arith.constant 0 : index
    %c0_17 = arith.constant 0 : index
    %c0_18 = arith.constant 0 : index
    %9 = vector.load %arg2[%c0_16, %c0_17, %c0_18] : memref<5x5x128xf32, #tpu.memory_space<vmem>>, vector<1x1x128xf32>
    %10 = vector.shape_cast %9 : vector<1x1x128xf32> to vector<128xf32>
    %11 = vector.shape_cast %10 : vector<128xf32> to vector<1x1x128xf32>
    %12 = vector.broadcast %11 : vector<1x1x128xf32> to vector<14x14x128xf32>
    %13 = arith.mulf %8, %12 : vector<14x14x128xf32>
    %14 = vector.extract_strided_slice %7 {offsets = [1, 0, 0], sizes = [14, 14, 128], strides = [1, 1, 1]} : vector<18x14x128xf32> to vector<14x14x128xf32>
    %c1 = arith.constant 1 : index
    %c0_19 = arith.constant 0 : index
    %c0_20 = arith.constant 0 : index
    %15 = vector.load %arg2[%c1, %c0_19, %c0_20] : memref<5x5x128xf32, #tpu.memory_space<vmem>>, vector<1x1x128xf32>
    %16 = vector.shape_cast %15 : vector<1x1x128xf32> to vector<128xf32>
    %17 = vector.shape_cast %16 : vector<128xf32> to vector<1x1x128xf32>
    %18 = vector.broadcast %17 : vector<1x1x128xf32> to vector<14x14x128xf32>
    %19 = arith.mulf %14, %18 : vector<14x14x128xf32>
    %20 = arith.addf %13, %19 : vector<14x14x128xf32>
    %21 = vector.extract_strided_slice %7 {offsets = [2, 0, 0], sizes = [14, 14, 128], strides = [1, 1, 1]} : vector<18x14x128xf32> to vector<14x14x128xf32>
    %c2_21 = arith.constant 2 : index
    %c0_22 = arith.constant 0 : index
    %c0_23 = arith.constant 0 : index
    %22 = vector.load %arg2[%c2_21, %c0_22, %c0_23] : memref<5x5x128xf32, #tpu.memory_space<vmem>>, vector<1x1x128xf32>
    %23 = vector.shape_cast %22 : vector<1x1x128xf32> to vector<128xf32>
    %24 = vector.shape_cast %23 : vector<128xf32> to vector<1x1x128xf32>
    %25 = vector.broadcast %24 : vector<1x1x128xf32> to vector<14x14x128xf32>
    %26 = arith.mulf %21, %25 : vector<14x14x128xf32>
    %27 = arith.addf %20, %26 : vector<14x14x128xf32>
    %28 = vector.extract_strided_slice %7 {offsets = [3, 0, 0], sizes = [14, 14, 128], strides = [1, 1, 1]} : vector<18x14x128xf32> to vector<14x14x128xf32>
    %c3 = arith.constant 3 : index
    %c0_24 = arith.constant 0 : index
    %c0_25 = arith.constant 0 : index
    %29 = vector.load %arg2[%c3, %c0_24, %c0_25] : memref<5x5x128xf32, #tpu.memory_space<vmem>>, vector<1x1x128xf32>
    %30 = vector.shape_cast %29 : vector<1x1x128xf32> to vector<128xf32>
    %31 = vector.shape_cast %30 : vector<128xf32> to vector<1x1x128xf32>
    %32 = vector.broadcast %31 : vector<1x1x128xf32> to vector<14x14x128xf32>
    %33 = arith.mulf %28, %32 : vector<14x14x128xf32>
    %34 = arith.addf %27, %33 : vector<14x14x128xf32>
    %35 = vector.extract_strided_slice %7 {offsets = [4, 0, 0], sizes = [14, 14, 128], strides = [1, 1, 1]} : vector<18x14x128xf32> to vector<14x14x128xf32>
    %c4 = arith.constant 4 : index
    %c0_26 = arith.constant 0 : index
    %c0_27 = arith.constant 0 : index
    %36 = vector.load %arg2[%c4, %c0_26, %c0_27] : memref<5x5x128xf32, #tpu.memory_space<vmem>>, vector<1x1x128xf32>
    %37 = vector.shape_cast %36 : vector<1x1x128xf32> to vector<128xf32>
    %38 = vector.shape_cast %37 : vector<128xf32> to vector<1x1x128xf32>
    %39 = vector.broadcast %38 : vector<1x1x128xf32> to vector<14x14x128xf32>
    %40 = arith.mulf %35, %39 : vector<14x14x128xf32>
    %41 = arith.addf %34, %40 : vector<14x14x128xf32>
    %c0_28 = arith.constant 0 : index
    %c0_29 = arith.constant 0 : index
    %c1_30 = arith.constant 1 : index
    %c0_31 = arith.constant 0 : index
    %42 = vector.load %arg6[%c0_28, %c0_29, %c1_30, %c0_31] : memref<2x18x18x128xf32, #tpu.memory_space<vmem>>, vector<1x18x14x128xf32>
    %43 = vector.shape_cast %42 : vector<1x18x14x128xf32> to vector<18x14x128xf32>
    %44 = vector.extract_strided_slice %43 {offsets = [0, 0, 0], sizes = [14, 14, 128], strides = [1, 1, 1]} : vector<18x14x128xf32> to vector<14x14x128xf32>
    %c0_32 = arith.constant 0 : index
    %c1_33 = arith.constant 1 : index
    %c0_34 = arith.constant 0 : index
    %45 = vector.load %arg2[%c0_32, %c1_33, %c0_34] : memref<5x5x128xf32, #tpu.memory_space<vmem>>, vector<1x1x128xf32>
    %46 = vector.shape_cast %45 : vector<1x1x128xf32> to vector<128xf32>
    %47 = vector.shape_cast %46 : vector<128xf32> to vector<1x1x128xf32>
    %48 = vector.broadcast %47 : vector<1x1x128xf32> to vector<14x14x128xf32>
    %49 = arith.mulf %44, %48 : vector<14x14x128xf32>
    %50 = vector.extract_strided_slice %43 {offsets = [1, 0, 0], sizes = [14, 14, 128], strides = [1, 1, 1]} : vector<18x14x128xf32> to vector<14x14x128xf32>
    %c1_35 = arith.constant 1 : index
    %c1_36 = arith.constant 1 : index
    %c0_37 = arith.constant 0 : index
    %51 = vector.load %arg2[%c1_35, %c1_36, %c0_37] : memref<5x5x128xf32, #tpu.memory_space<vmem>>, vector<1x1x128xf32>
    %52 = vector.shape_cast %51 : vector<1x1x128xf32> to vector<128xf32>
    %53 = vector.shape_cast %52 : vector<128xf32> to vector<1x1x128xf32>
    %54 = vector.broadcast %53 : vector<1x1x128xf32> to vector<14x14x128xf32>
    %55 = arith.mulf %50, %54 : vector<14x14x128xf32>
    %56 = arith.addf %49, %55 : vector<14x14x128xf32>
    %57 = vector.extract_strided_slice %43 {offsets = [2, 0, 0], sizes = [14, 14, 128], strides = [1, 1, 1]} : vector<18x14x128xf32> to vector<14x14x128xf32>
    %c2_38 = arith.constant 2 : index
    %c1_39 = arith.constant 1 : index
    %c0_40 = arith.constant 0 : index
    %58 = vector.load %arg2[%c2_38, %c1_39, %c0_40] : memref<5x5x128xf32, #tpu.memory_space<vmem>>, vector<1x1x128xf32>
    %59 = vector.shape_cast %58 : vector<1x1x128xf32> to vector<128xf32>
    %60 = vector.shape_cast %59 : vector<128xf32> to vector<1x1x128xf32>
    %61 = vector.broadcast %60 : vector<1x1x128xf32> to vector<14x14x128xf32>
    %62 = arith.mulf %57, %61 : vector<14x14x128xf32>
    %63 = arith.addf %56, %62 : vector<14x14x128xf32>
    %64 = vector.extract_strided_slice %43 {offsets = [3, 0, 0], sizes = [14, 14, 128], strides = [1, 1, 1]} : vector<18x14x128xf32> to vector<14x14x128xf32>
    %c3_41 = arith.constant 3 : index
    %c1_42 = arith.constant 1 : index
    %c0_43 = arith.constant 0 : index
    %65 = vector.load %arg2[%c3_41, %c1_42, %c0_43] : memref<5x5x128xf32, #tpu.memory_space<vmem>>, vector<1x1x128xf32>
    %66 = vector.shape_cast %65 : vector<1x1x128xf32> to vector<128xf32>
    %67 = vector.shape_cast %66 : vector<128xf32> to vector<1x1x128xf32>
    %68 = vector.broadcast %67 : vector<1x1x128xf32> to vector<14x14x128xf32>
    %69 = arith.mulf %64, %68 : vector<14x14x128xf32>
    %70 = arith.addf %63, %69 : vector<14x14x128xf32>
    %71 = vector.extract_strided_slice %43 {offsets = [4, 0, 0], sizes = [14, 14, 128], strides = [1, 1, 1]} : vector<18x14x128xf32> to vector<14x14x128xf32>
    %c4_44 = arith.constant 4 : index
    %c1_45 = arith.constant 1 : index
    %c0_46 = arith.constant 0 : index
    %72 = vector.load %arg2[%c4_44, %c1_45, %c0_46] : memref<5x5x128xf32, #tpu.memory_space<vmem>>, vector<1x1x128xf32>
    %73 = vector.shape_cast %72 : vector<1x1x128xf32> to vector<128xf32>
    %74 = vector.shape_cast %73 : vector<128xf32> to vector<1x1x128xf32>
    %75 = vector.broadcast %74 : vector<1x1x128xf32> to vector<14x14x128xf32>
    %76 = arith.mulf %71, %75 : vector<14x14x128xf32>
    %77 = arith.addf %70, %76 : vector<14x14x128xf32>
    %78 = arith.addf %41, %77 : vector<14x14x128xf32>
    %c0_47 = arith.constant 0 : index
    %c0_48 = arith.constant 0 : index
    %c2_49 = arith.constant 2 : index
    %c0_50 = arith.constant 0 : index
    %79 = vector.load %arg6[%c0_47, %c0_48, %c2_49, %c0_50] : memref<2x18x18x128xf32, #tpu.memory_space<vmem>>, vector<1x18x14x128xf32>
    %80 = vector.shape_cast %79 : vector<1x18x14x128xf32> to vector<18x14x128xf32>
    %81 = vector.extract_strided_slice %80 {offsets = [0, 0, 0], sizes = [14, 14, 128], strides = [1, 1, 1]} : vector<18x14x128xf32> to vector<14x14x128xf32>
    %c0_51 = arith.constant 0 : index
    %c2_52 = arith.constant 2 : index
    %c0_53 = arith.constant 0 : index
    %82 = vector.load %arg2[%c0_51, %c2_52, %c0_53] : memref<5x5x128xf32, #tpu.memory_space<vmem>>, vector<1x1x128xf32>
    %83 = vector.shape_cast %82 : vector<1x1x128xf32> to vector<128xf32>
    %84 = vector.shape_cast %83 : vector<128xf32> to vector<1x1x128xf32>
    %85 = vector.broadcast %84 : vector<1x1x128xf32> to vector<14x14x128xf32>
    %86 = arith.mulf %81, %85 : vector<14x14x128xf32>
    %87 = vector.extract_strided_slice %80 {offsets = [1, 0, 0], sizes = [14, 14, 128], strides = [1, 1, 1]} : vector<18x14x128xf32> to vector<14x14x128xf32>
    %c1_54 = arith.constant 1 : index
    %c2_55 = arith.constant 2 : index
    %c0_56 = arith.constant 0 : index
    %88 = vector.load %arg2[%c1_54, %c2_55, %c0_56] : memref<5x5x128xf32, #tpu.memory_space<vmem>>, vector<1x1x128xf32>
    %89 = vector.shape_cast %88 : vector<1x1x128xf32> to vector<128xf32>
    %90 = vector.shape_cast %89 : vector<128xf32> to vector<1x1x128xf32>
    %91 = vector.broadcast %90 : vector<1x1x128xf32> to vector<14x14x128xf32>
    %92 = arith.mulf %87, %91 : vector<14x14x128xf32>
    %93 = arith.addf %86, %92 : vector<14x14x128xf32>
    %94 = vector.extract_strided_slice %80 {offsets = [2, 0, 0], sizes = [14, 14, 128], strides = [1, 1, 1]} : vector<18x14x128xf32> to vector<14x14x128xf32>
    %c2_57 = arith.constant 2 : index
    %c2_58 = arith.constant 2 : index
    %c0_59 = arith.constant 0 : index
    %95 = vector.load %arg2[%c2_57, %c2_58, %c0_59] : memref<5x5x128xf32, #tpu.memory_space<vmem>>, vector<1x1x128xf32>
    %96 = vector.shape_cast %95 : vector<1x1x128xf32> to vector<128xf32>
    %97 = vector.shape_cast %96 : vector<128xf32> to vector<1x1x128xf32>
    %98 = vector.broadcast %97 : vector<1x1x128xf32> to vector<14x14x128xf32>
    %99 = arith.mulf %94, %98 : vector<14x14x128xf32>
    %100 = arith.addf %93, %99 : vector<14x14x128xf32>
    %101 = vector.extract_strided_slice %80 {offsets = [3, 0, 0], sizes = [14, 14, 128], strides = [1, 1, 1]} : vector<18x14x128xf32> to vector<14x14x128xf32>
    %c3_60 = arith.constant 3 : index
    %c2_61 = arith.constant 2 : index
    %c0_62 = arith.constant 0 : index
    %102 = vector.load %arg2[%c3_60, %c2_61, %c0_62] : memref<5x5x128xf32, #tpu.memory_space<vmem>>, vector<1x1x128xf32>
    %103 = vector.shape_cast %102 : vector<1x1x128xf32> to vector<128xf32>
    %104 = vector.shape_cast %103 : vector<128xf32> to vector<1x1x128xf32>
    %105 = vector.broadcast %104 : vector<1x1x128xf32> to vector<14x14x128xf32>
    %106 = arith.mulf %101, %105 : vector<14x14x128xf32>
    %107 = arith.addf %100, %106 : vector<14x14x128xf32>
    %108 = vector.extract_strided_slice %80 {offsets = [4, 0, 0], sizes = [14, 14, 128], strides = [1, 1, 1]} : vector<18x14x128xf32> to vector<14x14x128xf32>
    %c4_63 = arith.constant 4 : index
    %c2_64 = arith.constant 2 : index
    %c0_65 = arith.constant 0 : index
    %109 = vector.load %arg2[%c4_63, %c2_64, %c0_65] : memref<5x5x128xf32, #tpu.memory_space<vmem>>, vector<1x1x128xf32>
    %110 = vector.shape_cast %109 : vector<1x1x128xf32> to vector<128xf32>
    %111 = vector.shape_cast %110 : vector<128xf32> to vector<1x1x128xf32>
    %112 = vector.broadcast %111 : vector<1x1x128xf32> to vector<14x14x128xf32>
    %113 = arith.mulf %108, %112 : vector<14x14x128xf32>
    %114 = arith.addf %107, %113 : vector<14x14x128xf32>
    %115 = arith.addf %78, %114 : vector<14x14x128xf32>
    %c0_66 = arith.constant 0 : index
    %c0_67 = arith.constant 0 : index
    %c3_68 = arith.constant 3 : index
    %c0_69 = arith.constant 0 : index
    %116 = vector.load %arg6[%c0_66, %c0_67, %c3_68, %c0_69] : memref<2x18x18x128xf32, #tpu.memory_space<vmem>>, vector<1x18x14x128xf32>
    %117 = vector.shape_cast %116 : vector<1x18x14x128xf32> to vector<18x14x128xf32>
    %118 = vector.extract_strided_slice %117 {offsets = [0, 0, 0], sizes = [14, 14, 128], strides = [1, 1, 1]} : vector<18x14x128xf32> to vector<14x14x128xf32>
    %c0_70 = arith.constant 0 : index
    %c3_71 = arith.constant 3 : index
    %c0_72 = arith.constant 0 : index
    %119 = vector.load %arg2[%c0_70, %c3_71, %c0_72] : memref<5x5x128xf32, #tpu.memory_space<vmem>>, vector<1x1x128xf32>
    %120 = vector.shape_cast %119 : vector<1x1x128xf32> to vector<128xf32>
    %121 = vector.shape_cast %120 : vector<128xf32> to vector<1x1x128xf32>
    %122 = vector.broadcast %121 : vector<1x1x128xf32> to vector<14x14x128xf32>
    %123 = arith.mulf %118, %122 : vector<14x14x128xf32>
    %124 = vector.extract_strided_slice %117 {offsets = [1, 0, 0], sizes = [14, 14, 128], strides = [1, 1, 1]} : vector<18x14x128xf32> to vector<14x14x128xf32>
    %c1_73 = arith.constant 1 : index
    %c3_74 = arith.constant 3 : index
    %c0_75 = arith.constant 0 : index
    %125 = vector.load %arg2[%c1_73, %c3_74, %c0_75] : memref<5x5x128xf32, #tpu.memory_space<vmem>>, vector<1x1x128xf32>
    %126 = vector.shape_cast %125 : vector<1x1x128xf32> to vector<128xf32>
    %127 = vector.shape_cast %126 : vector<128xf32> to vector<1x1x128xf32>
    %128 = vector.broadcast %127 : vector<1x1x128xf32> to vector<14x14x128xf32>
    %129 = arith.mulf %124, %128 : vector<14x14x128xf32>
    %130 = arith.addf %123, %129 : vector<14x14x128xf32>
    %131 = vector.extract_strided_slice %117 {offsets = [2, 0, 0], sizes = [14, 14, 128], strides = [1, 1, 1]} : vector<18x14x128xf32> to vector<14x14x128xf32>
    %c2_76 = arith.constant 2 : index
    %c3_77 = arith.constant 3 : index
    %c0_78 = arith.constant 0 : index
    %132 = vector.load %arg2[%c2_76, %c3_77, %c0_78] : memref<5x5x128xf32, #tpu.memory_space<vmem>>, vector<1x1x128xf32>
    %133 = vector.shape_cast %132 : vector<1x1x128xf32> to vector<128xf32>
    %134 = vector.shape_cast %133 : vector<128xf32> to vector<1x1x128xf32>
    %135 = vector.broadcast %134 : vector<1x1x128xf32> to vector<14x14x128xf32>
    %136 = arith.mulf %131, %135 : vector<14x14x128xf32>
    %137 = arith.addf %130, %136 : vector<14x14x128xf32>
    %138 = vector.extract_strided_slice %117 {offsets = [3, 0, 0], sizes = [14, 14, 128], strides = [1, 1, 1]} : vector<18x14x128xf32> to vector<14x14x128xf32>
    %c3_79 = arith.constant 3 : index
    %c3_80 = arith.constant 3 : index
    %c0_81 = arith.constant 0 : index
    %139 = vector.load %arg2[%c3_79, %c3_80, %c0_81] : memref<5x5x128xf32, #tpu.memory_space<vmem>>, vector<1x1x128xf32>
    %140 = vector.shape_cast %139 : vector<1x1x128xf32> to vector<128xf32>
    %141 = vector.shape_cast %140 : vector<128xf32> to vector<1x1x128xf32>
    %142 = vector.broadcast %141 : vector<1x1x128xf32> to vector<14x14x128xf32>
    %143 = arith.mulf %138, %142 : vector<14x14x128xf32>
    %144 = arith.addf %137, %143 : vector<14x14x128xf32>
    %145 = vector.extract_strided_slice %117 {offsets = [4, 0, 0], sizes = [14, 14, 128], strides = [1, 1, 1]} : vector<18x14x128xf32> to vector<14x14x128xf32>
    %c4_82 = arith.constant 4 : index
    %c3_83 = arith.constant 3 : index
    %c0_84 = arith.constant 0 : index
    %146 = vector.load %arg2[%c4_82, %c3_83, %c0_84] : memref<5x5x128xf32, #tpu.memory_space<vmem>>, vector<1x1x128xf32>
    %147 = vector.shape_cast %146 : vector<1x1x128xf32> to vector<128xf32>
    %148 = vector.shape_cast %147 : vector<128xf32> to vector<1x1x128xf32>
    %149 = vector.broadcast %148 : vector<1x1x128xf32> to vector<14x14x128xf32>
    %150 = arith.mulf %145, %149 : vector<14x14x128xf32>
    %151 = arith.addf %144, %150 : vector<14x14x128xf32>
    %152 = arith.addf %115, %151 : vector<14x14x128xf32>
    %c0_85 = arith.constant 0 : index
    %c0_86 = arith.constant 0 : index
    %c4_87 = arith.constant 4 : index
    %c0_88 = arith.constant 0 : index
    %153 = vector.load %arg6[%c0_85, %c0_86, %c4_87, %c0_88] : memref<2x18x18x128xf32, #tpu.memory_space<vmem>>, vector<1x18x14x128xf32>
    %154 = vector.shape_cast %153 : vector<1x18x14x128xf32> to vector<18x14x128xf32>
    %155 = vector.extract_strided_slice %154 {offsets = [0, 0, 0], sizes = [14, 14, 128], strides = [1, 1, 1]} : vector<18x14x128xf32> to vector<14x14x128xf32>
    %c0_89 = arith.constant 0 : index
    %c4_90 = arith.constant 4 : index
    %c0_91 = arith.constant 0 : index
    %156 = vector.load %arg2[%c0_89, %c4_90, %c0_91] : memref<5x5x128xf32, #tpu.memory_space<vmem>>, vector<1x1x128xf32>
    %157 = vector.shape_cast %156 : vector<1x1x128xf32> to vector<128xf32>
    %158 = vector.shape_cast %157 : vector<128xf32> to vector<1x1x128xf32>
    %159 = vector.broadcast %158 : vector<1x1x128xf32> to vector<14x14x128xf32>
    %160 = arith.mulf %155, %159 : vector<14x14x128xf32>
    %161 = vector.extract_strided_slice %154 {offsets = [1, 0, 0], sizes = [14, 14, 128], strides = [1, 1, 1]} : vector<18x14x128xf32> to vector<14x14x128xf32>
    %c1_92 = arith.constant 1 : index
    %c4_93 = arith.constant 4 : index
    %c0_94 = arith.constant 0 : index
    %162 = vector.load %arg2[%c1_92, %c4_93, %c0_94] : memref<5x5x128xf32, #tpu.memory_space<vmem>>, vector<1x1x128xf32>
    %163 = vector.shape_cast %162 : vector<1x1x128xf32> to vector<128xf32>
    %164 = vector.shape_cast %163 : vector<128xf32> to vector<1x1x128xf32>
    %165 = vector.broadcast %164 : vector<1x1x128xf32> to vector<14x14x128xf32>
    %166 = arith.mulf %161, %165 : vector<14x14x128xf32>
    %167 = arith.addf %160, %166 : vector<14x14x128xf32>
    %168 = vector.extract_strided_slice %154 {offsets = [2, 0, 0], sizes = [14, 14, 128], strides = [1, 1, 1]} : vector<18x14x128xf32> to vector<14x14x128xf32>
    %c2_95 = arith.constant 2 : index
    %c4_96 = arith.constant 4 : index
    %c0_97 = arith.constant 0 : index
    %169 = vector.load %arg2[%c2_95, %c4_96, %c0_97] : memref<5x5x128xf32, #tpu.memory_space<vmem>>, vector<1x1x128xf32>
    %170 = vector.shape_cast %169 : vector<1x1x128xf32> to vector<128xf32>
    %171 = vector.shape_cast %170 : vector<128xf32> to vector<1x1x128xf32>
    %172 = vector.broadcast %171 : vector<1x1x128xf32> to vector<14x14x128xf32>
    %173 = arith.mulf %168, %172 : vector<14x14x128xf32>
    %174 = arith.addf %167, %173 : vector<14x14x128xf32>
    %175 = vector.extract_strided_slice %154 {offsets = [3, 0, 0], sizes = [14, 14, 128], strides = [1, 1, 1]} : vector<18x14x128xf32> to vector<14x14x128xf32>
    %c3_98 = arith.constant 3 : index
    %c4_99 = arith.constant 4 : index
    %c0_100 = arith.constant 0 : index
    %176 = vector.load %arg2[%c3_98, %c4_99, %c0_100] : memref<5x5x128xf32, #tpu.memory_space<vmem>>, vector<1x1x128xf32>
    %177 = vector.shape_cast %176 : vector<1x1x128xf32> to vector<128xf32>
    %178 = vector.shape_cast %177 : vector<128xf32> to vector<1x1x128xf32>
    %179 = vector.broadcast %178 : vector<1x1x128xf32> to vector<14x14x128xf32>
    %180 = arith.mulf %175, %179 : vector<14x14x128xf32>
    %181 = arith.addf %174, %180 : vector<14x14x128xf32>
    %182 = vector.extract_strided_slice %154 {offsets = [4, 0, 0], sizes = [14, 14, 128], strides = [1, 1, 1]} : vector<18x14x128xf32> to vector<14x14x128xf32>
    %c4_101 = arith.constant 4 : index
    %c4_102 = arith.constant 4 : index
    %c0_103 = arith.constant 0 : index
    %183 = vector.load %arg2[%c4_101, %c4_102, %c0_103] : memref<5x5x128xf32, #tpu.memory_space<vmem>>, vector<1x1x128xf32>
    %184 = vector.shape_cast %183 : vector<1x1x128xf32> to vector<128xf32>
    %185 = vector.shape_cast %184 : vector<128xf32> to vector<1x1x128xf32>
    %186 = vector.broadcast %185 : vector<1x1x128xf32> to vector<14x14x128xf32>
    %187 = arith.mulf %182, %186 : vector<14x14x128xf32>
    %188 = arith.addf %181, %187 : vector<14x14x128xf32>
    %189 = arith.addf %152, %188 : vector<14x14x128xf32>
    %c0_104 = arith.constant 0 : index
    %c0_105 = arith.constant 0 : index
    %c0_106 = arith.constant 0 : index
    %c0_107 = arith.constant 0 : index
    %190 = vector.load %arg5[%c0_104, %c0_105, %c0_106, %c0_107] : memref<2x14x14x128xf32, #tpu.memory_space<vmem>>, vector<1x14x14x128xf32>
    %191 = vector.shape_cast %190 : vector<1x14x14x128xf32> to vector<14x14x128xf32>
    %192 = vector.shape_cast %189 : vector<14x14x128xf32> to vector<1x14x14x128xf32>
    tpu.vector_store %arg5[%c0_104, %c0_105, %c0_106, %c0_107], %192 {strides = array<i32>} : memref<2x14x14x128xf32, #tpu.memory_space<vmem>>, vector<1x14x14x128xf32>,
    %cst_108 = arith.constant dense<0.000000e+00> : vector<128xf32>
    %193 = vector.multi_reduction <add>, %189, %cst_108 [0, 1] : vector<14x14x128xf32> to vector<128xf32>
    %194 = vector.shape_cast %193 : vector<128xf32> to vector<1x128xf32>
    %195 = arith.addf %4, %194 : vector<1x128xf32>
    %196 = arith.mulf %189, %189 : vector<14x14x128xf32>
    %cst_109 = arith.constant dense<0.000000e+00> : vector<128xf32>
    %197 = vector.multi_reduction <add>, %196, %cst_109 [0, 1] : vector<14x14x128xf32> to vector<128xf32>
    %198 = vector.shape_cast %197 : vector<128xf32> to vector<1x128xf32>
    %199 = arith.addf %5, %198 : vector<1x128xf32>
    %c1_110 = arith.constant 1 : index
    %c0_111 = arith.constant 0 : index
    %c0_112 = arith.constant 0 : index
    %c0_113 = arith.constant 0 : index
    %200 = vector.load %arg6[%c1_110, %c0_111, %c0_112, %c0_113] : memref<2x18x18x128xf32, #tpu.memory_space<vmem>>, vector<1x18x14x128xf32>
    %201 = vector.shape_cast %200 : vector<1x18x14x128xf32> to vector<18x14x128xf32>
    %202 = vector.extract_strided_slice %201 {offsets = [0, 0, 0], sizes = [14, 14, 128], strides = [1, 1, 1]} : vector<18x14x128xf32> to vector<14x14x128xf32>
    %c0_114 = arith.constant 0 : index
    %c0_115 = arith.constant 0 : index
    %c0_116 = arith.constant 0 : index
    %203 = vector.load %arg2[%c0_114, %c0_115, %c0_116] : memref<5x5x128xf32, #tpu.memory_space<vmem>>, vector<1x1x128xf32>
    %204 = vector.shape_cast %203 : vector<1x1x128xf32> to vector<128xf32>
    %205 = vector.shape_cast %204 : vector<128xf32> to vector<1x1x128xf32>
    %206 = vector.broadcast %205 : vector<1x1x128xf32> to vector<14x14x128xf32>
    %207 = arith.mulf %202, %206 : vector<14x14x128xf32>
    %208 = vector.extract_strided_slice %201 {offsets = [1, 0, 0], sizes = [14, 14, 128], strides = [1, 1, 1]} : vector<18x14x128xf32> to vector<14x14x128xf32>
    %c1_117 = arith.constant 1 : index
    %c0_118 = arith.constant 0 : index
    %c0_119 = arith.constant 0 : index
    %209 = vector.load %arg2[%c1_117, %c0_118, %c0_119] : memref<5x5x128xf32, #tpu.memory_space<vmem>>, vector<1x1x128xf32>
    %210 = vector.shape_cast %209 : vector<1x1x128xf32> to vector<128xf32>
    %211 = vector.shape_cast %210 : vector<128xf32> to vector<1x1x128xf32>
    %212 = vector.broadcast %211 : vector<1x1x128xf32> to vector<14x14x128xf32>
    %213 = arith.mulf %208, %212 : vector<14x14x128xf32>
    %214 = arith.addf %207, %213 : vector<14x14x128xf32>
    %215 = vector.extract_strided_slice %201 {offsets = [2, 0, 0], sizes = [14, 14, 128], strides = [1, 1, 1]} : vector<18x14x128xf32> to vector<14x14x128xf32>
    %c2_120 = arith.constant 2 : index
    %c0_121 = arith.constant 0 : index
    %c0_122 = arith.constant 0 : index
    %216 = vector.load %arg2[%c2_120, %c0_121, %c0_122] : memref<5x5x128xf32, #tpu.memory_space<vmem>>, vector<1x1x128xf32>
    %217 = vector.shape_cast %216 : vector<1x1x128xf32> to vector<128xf32>
    %218 = vector.shape_cast %217 : vector<128xf32> to vector<1x1x128xf32>
    %219 = vector.broadcast %218 : vector<1x1x128xf32> to vector<14x14x128xf32>
    %220 = arith.mulf %215, %219 : vector<14x14x128xf32>
    %221 = arith.addf %214, %220 : vector<14x14x128xf32>
    %222 = vector.extract_strided_slice %201 {offsets = [3, 0, 0], sizes = [14, 14, 128], strides = [1, 1, 1]} : vector<18x14x128xf32> to vector<14x14x128xf32>
    %c3_123 = arith.constant 3 : index
    %c0_124 = arith.constant 0 : index
    %c0_125 = arith.constant 0 : index
    %223 = vector.load %arg2[%c3_123, %c0_124, %c0_125] : memref<5x5x128xf32, #tpu.memory_space<vmem>>, vector<1x1x128xf32>
    %224 = vector.shape_cast %223 : vector<1x1x128xf32> to vector<128xf32>
    %225 = vector.shape_cast %224 : vector<128xf32> to vector<1x1x128xf32>
    %226 = vector.broadcast %225 : vector<1x1x128xf32> to vector<14x14x128xf32>
    %227 = arith.mulf %222, %226 : vector<14x14x128xf32>
    %228 = arith.addf %221, %227 : vector<14x14x128xf32>
    %229 = vector.extract_strided_slice %201 {offsets = [4, 0, 0], sizes = [14, 14, 128], strides = [1, 1, 1]} : vector<18x14x128xf32> to vector<14x14x128xf32>
    %c4_126 = arith.constant 4 : index
    %c0_127 = arith.constant 0 : index
    %c0_128 = arith.constant 0 : index
    %230 = vector.load %arg2[%c4_126, %c0_127, %c0_128] : memref<5x5x128xf32, #tpu.memory_space<vmem>>, vector<1x1x128xf32>
    %231 = vector.shape_cast %230 : vector<1x1x128xf32> to vector<128xf32>
    %232 = vector.shape_cast %231 : vector<128xf32> to vector<1x1x128xf32>
    %233 = vector.broadcast %232 : vector<1x1x128xf32> to vector<14x14x128xf32>
    %234 = arith.mulf %229, %233 : vector<14x14x128xf32>
    %235 = arith.addf %228, %234 : vector<14x14x128xf32>
    %c1_129 = arith.constant 1 : index
    %c0_130 = arith.constant 0 : index
    %c1_131 = arith.constant 1 : index
    %c0_132 = arith.constant 0 : index
    %236 = vector.load %arg6[%c1_129, %c0_130, %c1_131, %c0_132] : memref<2x18x18x128xf32, #tpu.memory_space<vmem>>, vector<1x18x14x128xf32>
    %237 = vector.shape_cast %236 : vector<1x18x14x128xf32> to vector<18x14x128xf32>
    %238 = vector.extract_strided_slice %237 {offsets = [0, 0, 0], sizes = [14, 14, 128], strides = [1, 1, 1]} : vector<18x14x128xf32> to vector<14x14x128xf32>
    %c0_133 = arith.constant 0 : index
    %c1_134 = arith.constant 1 : index
    %c0_135 = arith.constant 0 : index
    %239 = vector.load %arg2[%c0_133, %c1_134, %c0_135] : memref<5x5x128xf32, #tpu.memory_space<vmem>>, vector<1x1x128xf32>
    %240 = vector.shape_cast %239 : vector<1x1x128xf32> to vector<128xf32>
    %241 = vector.shape_cast %240 : vector<128xf32> to vector<1x1x128xf32>
    %242 = vector.broadcast %241 : vector<1x1x128xf32> to vector<14x14x128xf32>
    %243 = arith.mulf %238, %242 : vector<14x14x128xf32>
    %244 = vector.extract_strided_slice %237 {offsets = [1, 0, 0], sizes = [14, 14, 128], strides = [1, 1, 1]} : vector<18x14x128xf32> to vector<14x14x128xf32>
    %c1_136 = arith.constant 1 : index
    %c1_137 = arith.constant 1 : index
    %c0_138 = arith.constant 0 : index
    %245 = vector.load %arg2[%c1_136, %c1_137, %c0_138] : memref<5x5x128xf32, #tpu.memory_space<vmem>>, vector<1x1x128xf32>
    %246 = vector.shape_cast %245 : vector<1x1x128xf32> to vector<128xf32>
    %247 = vector.shape_cast %246 : vector<128xf32> to vector<1x1x128xf32>
    %248 = vector.broadcast %247 : vector<1x1x128xf32> to vector<14x14x128xf32>
    %249 = arith.mulf %244, %248 : vector<14x14x128xf32>
    %250 = arith.addf %243, %249 : vector<14x14x128xf32>
    %251 = vector.extract_strided_slice %237 {offsets = [2, 0, 0], sizes = [14, 14, 128], strides = [1, 1, 1]} : vector<18x14x128xf32> to vector<14x14x128xf32>
    %c2_139 = arith.constant 2 : index
    %c1_140 = arith.constant 1 : index
    %c0_141 = arith.constant 0 : index
    %252 = vector.load %arg2[%c2_139, %c1_140, %c0_141] : memref<5x5x128xf32, #tpu.memory_space<vmem>>, vector<1x1x128xf32>
    %253 = vector.shape_cast %252 : vector<1x1x128xf32> to vector<128xf32>
    %254 = vector.shape_cast %253 : vector<128xf32> to vector<1x1x128xf32>
    %255 = vector.broadcast %254 : vector<1x1x128xf32> to vector<14x14x128xf32>
    %256 = arith.mulf %251, %255 : vector<14x14x128xf32>
    %257 = arith.addf %250, %256 : vector<14x14x128xf32>
    %258 = vector.extract_strided_slice %237 {offsets = [3, 0, 0], sizes = [14, 14, 128], strides = [1, 1, 1]} : vector<18x14x128xf32> to vector<14x14x128xf32>
    %c3_142 = arith.constant 3 : index
    %c1_143 = arith.constant 1 : index
    %c0_144 = arith.constant 0 : index
    %259 = vector.load %arg2[%c3_142, %c1_143, %c0_144] : memref<5x5x128xf32, #tpu.memory_space<vmem>>, vector<1x1x128xf32>
    %260 = vector.shape_cast %259 : vector<1x1x128xf32> to vector<128xf32>
    %261 = vector.shape_cast %260 : vector<128xf32> to vector<1x1x128xf32>
    %262 = vector.broadcast %261 : vector<1x1x128xf32> to vector<14x14x128xf32>
    %263 = arith.mulf %258, %262 : vector<14x14x128xf32>
    %264 = arith.addf %257, %263 : vector<14x14x128xf32>
    %265 = vector.extract_strided_slice %237 {offsets = [4, 0, 0], sizes = [14, 14, 128], strides = [1, 1, 1]} : vector<18x14x128xf32> to vector<14x14x128xf32>
    %c4_145 = arith.constant 4 : index
    %c1_146 = arith.constant 1 : index
    %c0_147 = arith.constant 0 : index
    %266 = vector.load %arg2[%c4_145, %c1_146, %c0_147] : memref<5x5x128xf32, #tpu.memory_space<vmem>>, vector<1x1x128xf32>
    %267 = vector.shape_cast %266 : vector<1x1x128xf32> to vector<128xf32>
    %268 = vector.shape_cast %267 : vector<128xf32> to vector<1x1x128xf32>
    %269 = vector.broadcast %268 : vector<1x1x128xf32> to vector<14x14x128xf32>
    %270 = arith.mulf %265, %269 : vector<14x14x128xf32>
    %271 = arith.addf %264, %270 : vector<14x14x128xf32>
    %272 = arith.addf %235, %271 : vector<14x14x128xf32>
    %c1_148 = arith.constant 1 : index
    %c0_149 = arith.constant 0 : index
    %c2_150 = arith.constant 2 : index
    %c0_151 = arith.constant 0 : index
    %273 = vector.load %arg6[%c1_148, %c0_149, %c2_150, %c0_151] : memref<2x18x18x128xf32, #tpu.memory_space<vmem>>, vector<1x18x14x128xf32>
    %274 = vector.shape_cast %273 : vector<1x18x14x128xf32> to vector<18x14x128xf32>
    %275 = vector.extract_strided_slice %274 {offsets = [0, 0, 0], sizes = [14, 14, 128], strides = [1, 1, 1]} : vector<18x14x128xf32> to vector<14x14x128xf32>
    %c0_152 = arith.constant 0 : index
    %c2_153 = arith.constant 2 : index
    %c0_154 = arith.constant 0 : index
    %276 = vector.load %arg2[%c0_152, %c2_153, %c0_154] : memref<5x5x128xf32, #tpu.memory_space<vmem>>, vector<1x1x128xf32>
    %277 = vector.shape_cast %276 : vector<1x1x128xf32> to vector<128xf32>
    %278 = vector.shape_cast %277 : vector<128xf32> to vector<1x1x128xf32>
    %279 = vector.broadcast %278 : vector<1x1x128xf32> to vector<14x14x128xf32>
    %280 = arith.mulf %275, %279 : vector<14x14x128xf32>
    %281 = vector.extract_strided_slice %274 {offsets = [1, 0, 0], sizes = [14, 14, 128], strides = [1, 1, 1]} : vector<18x14x128xf32> to vector<14x14x128xf32>
    %c1_155 = arith.constant 1 : index
    %c2_156 = arith.constant 2 : index
    %c0_157 = arith.constant 0 : index
    %282 = vector.load %arg2[%c1_155, %c2_156, %c0_157] : memref<5x5x128xf32, #tpu.memory_space<vmem>>, vector<1x1x128xf32>
    %283 = vector.shape_cast %282 : vector<1x1x128xf32> to vector<128xf32>
    %284 = vector.shape_cast %283 : vector<128xf32> to vector<1x1x128xf32>
    %285 = vector.broadcast %284 : vector<1x1x128xf32> to vector<14x14x128xf32>
    %286 = arith.mulf %281, %285 : vector<14x14x128xf32>
    %287 = arith.addf %280, %286 : vector<14x14x128xf32>
    %288 = vector.extract_strided_slice %274 {offsets = [2, 0, 0], sizes = [14, 14, 128], strides = [1, 1, 1]} : vector<18x14x128xf32> to vector<14x14x128xf32>
    %c2_158 = arith.constant 2 : index
    %c2_159 = arith.constant 2 : index
    %c0_160 = arith.constant 0 : index
    %289 = vector.load %arg2[%c2_158, %c2_159, %c0_160] : memref<5x5x128xf32, #tpu.memory_space<vmem>>, vector<1x1x128xf32>
    %290 = vector.shape_cast %289 : vector<1x1x128xf32> to vector<128xf32>
    %291 = vector.shape_cast %290 : vector<128xf32> to vector<1x1x128xf32>
    %292 = vector.broadcast %291 : vector<1x1x128xf32> to vector<14x14x128xf32>
    %293 = arith.mulf %288, %292 : vector<14x14x128xf32>
    %294 = arith.addf %287, %293 : vector<14x14x128xf32>
    %295 = vector.extract_strided_slice %274 {offsets = [3, 0, 0], sizes = [14, 14, 128], strides = [1, 1, 1]} : vector<18x14x128xf32> to vector<14x14x128xf32>
    %c3_161 = arith.constant 3 : index
    %c2_162 = arith.constant 2 : index
    %c0_163 = arith.constant 0 : index
    %296 = vector.load %arg2[%c3_161, %c2_162, %c0_163] : memref<5x5x128xf32, #tpu.memory_space<vmem>>, vector<1x1x128xf32>
    %297 = vector.shape_cast %296 : vector<1x1x128xf32> to vector<128xf32>
    %298 = vector.shape_cast %297 : vector<128xf32> to vector<1x1x128xf32>
    %299 = vector.broadcast %298 : vector<1x1x128xf32> to vector<14x14x128xf32>
    %300 = arith.mulf %295, %299 : vector<14x14x128xf32>
    %301 = arith.addf %294, %300 : vector<14x14x128xf32>
    %302 = vector.extract_strided_slice %274 {offsets = [4, 0, 0], sizes = [14, 14, 128], strides = [1, 1, 1]} : vector<18x14x128xf32> to vector<14x14x128xf32>
    %c4_164 = arith.constant 4 : index
    %c2_165 = arith.constant 2 : index
    %c0_166 = arith.constant 0 : index
    %303 = vector.load %arg2[%c4_164, %c2_165, %c0_166] : memref<5x5x128xf32, #tpu.memory_space<vmem>>, vector<1x1x128xf32>
    %304 = vector.shape_cast %303 : vector<1x1x128xf32> to vector<128xf32>
    %305 = vector.shape_cast %304 : vector<128xf32> to vector<1x1x128xf32>
    %306 = vector.broadcast %305 : vector<1x1x128xf32> to vector<14x14x128xf32>
    %307 = arith.mulf %302, %306 : vector<14x14x128xf32>
    %308 = arith.addf %301, %307 : vector<14x14x128xf32>
    %309 = arith.addf %272, %308 : vector<14x14x128xf32>
    %c1_167 = arith.constant 1 : index
    %c0_168 = arith.constant 0 : index
    %c3_169 = arith.constant 3 : index
    %c0_170 = arith.constant 0 : index
    %310 = vector.load %arg6[%c1_167, %c0_168, %c3_169, %c0_170] : memref<2x18x18x128xf32, #tpu.memory_space<vmem>>, vector<1x18x14x128xf32>
    %311 = vector.shape_cast %310 : vector<1x18x14x128xf32> to vector<18x14x128xf32>
    %312 = vector.extract_strided_slice %311 {offsets = [0, 0, 0], sizes = [14, 14, 128], strides = [1, 1, 1]} : vector<18x14x128xf32> to vector<14x14x128xf32>
    %c0_171 = arith.constant 0 : index
    %c3_172 = arith.constant 3 : index
    %c0_173 = arith.constant 0 : index
    %313 = vector.load %arg2[%c0_171, %c3_172, %c0_173] : memref<5x5x128xf32, #tpu.memory_space<vmem>>, vector<1x1x128xf32>
    %314 = vector.shape_cast %313 : vector<1x1x128xf32> to vector<128xf32>
    %315 = vector.shape_cast %314 : vector<128xf32> to vector<1x1x128xf32>
    %316 = vector.broadcast %315 : vector<1x1x128xf32> to vector<14x14x128xf32>
    %317 = arith.mulf %312, %316 : vector<14x14x128xf32>
    %318 = vector.extract_strided_slice %311 {offsets = [1, 0, 0], sizes = [14, 14, 128], strides = [1, 1, 1]} : vector<18x14x128xf32> to vector<14x14x128xf32>
    %c1_174 = arith.constant 1 : index
    %c3_175 = arith.constant 3 : index
    %c0_176 = arith.constant 0 : index
    %319 = vector.load %arg2[%c1_174, %c3_175, %c0_176] : memref<5x5x128xf32, #tpu.memory_space<vmem>>, vector<1x1x128xf32>
    %320 = vector.shape_cast %319 : vector<1x1x128xf32> to vector<128xf32>
    %321 = vector.shape_cast %320 : vector<128xf32> to vector<1x1x128xf32>
    %322 = vector.broadcast %321 : vector<1x1x128xf32> to vector<14x14x128xf32>
    %323 = arith.mulf %318, %322 : vector<14x14x128xf32>
    %324 = arith.addf %317, %323 : vector<14x14x128xf32>
    %325 = vector.extract_strided_slice %311 {offsets = [2, 0, 0], sizes = [14, 14, 128], strides = [1, 1, 1]} : vector<18x14x128xf32> to vector<14x14x128xf32>
    %c2_177 = arith.constant 2 : index
    %c3_178 = arith.constant 3 : index
    %c0_179 = arith.constant 0 : index
    %326 = vector.load %arg2[%c2_177, %c3_178, %c0_179] : memref<5x5x128xf32, #tpu.memory_space<vmem>>, vector<1x1x128xf32>
    %327 = vector.shape_cast %326 : vector<1x1x128xf32> to vector<128xf32>
    %328 = vector.shape_cast %327 : vector<128xf32> to vector<1x1x128xf32>
    %329 = vector.broadcast %328 : vector<1x1x128xf32> to vector<14x14x128xf32>
    %330 = arith.mulf %325, %329 : vector<14x14x128xf32>
    %331 = arith.addf %324, %330 : vector<14x14x128xf32>
    %332 = vector.extract_strided_slice %311 {offsets = [3, 0, 0], sizes = [14, 14, 128], strides = [1, 1, 1]} : vector<18x14x128xf32> to vector<14x14x128xf32>
    %c3_180 = arith.constant 3 : index
    %c3_181 = arith.constant 3 : index
    %c0_182 = arith.constant 0 : index
    %333 = vector.load %arg2[%c3_180, %c3_181, %c0_182] : memref<5x5x128xf32, #tpu.memory_space<vmem>>, vector<1x1x128xf32>
    %334 = vector.shape_cast %333 : vector<1x1x128xf32> to vector<128xf32>
    %335 = vector.shape_cast %334 : vector<128xf32> to vector<1x1x128xf32>
    %336 = vector.broadcast %335 : vector<1x1x128xf32> to vector<14x14x128xf32>
    %337 = arith.mulf %332, %336 : vector<14x14x128xf32>
    %338 = arith.addf %331, %337 : vector<14x14x128xf32>
    %339 = vector.extract_strided_slice %311 {offsets = [4, 0, 0], sizes = [14, 14, 128], strides = [1, 1, 1]} : vector<18x14x128xf32> to vector<14x14x128xf32>
    %c4_183 = arith.constant 4 : index
    %c3_184 = arith.constant 3 : index
    %c0_185 = arith.constant 0 : index
    %340 = vector.load %arg2[%c4_183, %c3_184, %c0_185] : memref<5x5x128xf32, #tpu.memory_space<vmem>>, vector<1x1x128xf32>
    %341 = vector.shape_cast %340 : vector<1x1x128xf32> to vector<128xf32>
    %342 = vector.shape_cast %341 : vector<128xf32> to vector<1x1x128xf32>
    %343 = vector.broadcast %342 : vector<1x1x128xf32> to vector<14x14x128xf32>
    %344 = arith.mulf %339, %343 : vector<14x14x128xf32>
    %345 = arith.addf %338, %344 : vector<14x14x128xf32>
    %346 = arith.addf %309, %345 : vector<14x14x128xf32>
    %c1_186 = arith.constant 1 : index
    %c0_187 = arith.constant 0 : index
    %c4_188 = arith.constant 4 : index
    %c0_189 = arith.constant 0 : index
    %347 = vector.load %arg6[%c1_186, %c0_187, %c4_188, %c0_189] : memref<2x18x18x128xf32, #tpu.memory_space<vmem>>, vector<1x18x14x128xf32>
    %348 = vector.shape_cast %347 : vector<1x18x14x128xf32> to vector<18x14x128xf32>
    %349 = vector.extract_strided_slice %348 {offsets = [0, 0, 0], sizes = [14, 14, 128], strides = [1, 1, 1]} : vector<18x14x128xf32> to vector<14x14x128xf32>
    %c0_190 = arith.constant 0 : index
    %c4_191 = arith.constant 4 : index
    %c0_192 = arith.constant 0 : index
    %350 = vector.load %arg2[%c0_190, %c4_191, %c0_192] : memref<5x5x128xf32, #tpu.memory_space<vmem>>, vector<1x1x128xf32>
    %351 = vector.shape_cast %350 : vector<1x1x128xf32> to vector<128xf32>
    %352 = vector.shape_cast %351 : vector<128xf32> to vector<1x1x128xf32>
    %353 = vector.broadcast %352 : vector<1x1x128xf32> to vector<14x14x128xf32>
    %354 = arith.mulf %349, %353 : vector<14x14x128xf32>
    %355 = vector.extract_strided_slice %348 {offsets = [1, 0, 0], sizes = [14, 14, 128], strides = [1, 1, 1]} : vector<18x14x128xf32> to vector<14x14x128xf32>
    %c1_193 = arith.constant 1 : index
    %c4_194 = arith.constant 4 : index
    %c0_195 = arith.constant 0 : index
    %356 = vector.load %arg2[%c1_193, %c4_194, %c0_195] : memref<5x5x128xf32, #tpu.memory_space<vmem>>, vector<1x1x128xf32>
    %357 = vector.shape_cast %356 : vector<1x1x128xf32> to vector<128xf32>
    %358 = vector.shape_cast %357 : vector<128xf32> to vector<1x1x128xf32>
    %359 = vector.broadcast %358 : vector<1x1x128xf32> to vector<14x14x128xf32>
    %360 = arith.mulf %355, %359 : vector<14x14x128xf32>
    %361 = arith.addf %354, %360 : vector<14x14x128xf32>
    %362 = vector.extract_strided_slice %348 {offsets = [2, 0, 0], sizes = [14, 14, 128], strides = [1, 1, 1]} : vector<18x14x128xf32> to vector<14x14x128xf32>
    %c2_196 = arith.constant 2 : index
    %c4_197 = arith.constant 4 : index
    %c0_198 = arith.constant 0 : index
    %363 = vector.load %arg2[%c2_196, %c4_197, %c0_198] : memref<5x5x128xf32, #tpu.memory_space<vmem>>, vector<1x1x128xf32>
    %364 = vector.shape_cast %363 : vector<1x1x128xf32> to vector<128xf32>
    %365 = vector.shape_cast %364 : vector<128xf32> to vector<1x1x128xf32>
    %366 = vector.broadcast %365 : vector<1x1x128xf32> to vector<14x14x128xf32>
    %367 = arith.mulf %362, %366 : vector<14x14x128xf32>
    %368 = arith.addf %361, %367 : vector<14x14x128xf32>
    %369 = vector.extract_strided_slice %348 {offsets = [3, 0, 0], sizes = [14, 14, 128], strides = [1, 1, 1]} : vector<18x14x128xf32> to vector<14x14x128xf32>
    %c3_199 = arith.constant 3 : index
    %c4_200 = arith.constant 4 : index
    %c0_201 = arith.constant 0 : index
    %370 = vector.load %arg2[%c3_199, %c4_200, %c0_201] : memref<5x5x128xf32, #tpu.memory_space<vmem>>, vector<1x1x128xf32>
    %371 = vector.shape_cast %370 : vector<1x1x128xf32> to vector<128xf32>
    %372 = vector.shape_cast %371 : vector<128xf32> to vector<1x1x128xf32>
    %373 = vector.broadcast %372 : vector<1x1x128xf32> to vector<14x14x128xf32>
    %374 = arith.mulf %369, %373 : vector<14x14x128xf32>
    %375 = arith.addf %368, %374 : vector<14x14x128xf32>
    %376 = vector.extract_strided_slice %348 {offsets = [4, 0, 0], sizes = [14, 14, 128], strides = [1, 1, 1]} : vector<18x14x128xf32> to vector<14x14x128xf32>
    %c4_202 = arith.constant 4 : index
    %c4_203 = arith.constant 4 : index
    %c0_204 = arith.constant 0 : index
    %377 = vector.load %arg2[%c4_202, %c4_203, %c0_204] : memref<5x5x128xf32, #tpu.memory_space<vmem>>, vector<1x1x128xf32>
    %378 = vector.shape_cast %377 : vector<1x1x128xf32> to vector<128xf32>
    %379 = vector.shape_cast %378 : vector<128xf32> to vector<1x1x128xf32>
    %380 = vector.broadcast %379 : vector<1x1x128xf32> to vector<14x14x128xf32>
    %381 = arith.mulf %376, %380 : vector<14x14x128xf32>
    %382 = arith.addf %375, %381 : vector<14x14x128xf32>
    %383 = arith.addf %346, %382 : vector<14x14x128xf32>
    %c1_205 = arith.constant 1 : index
    %c0_206 = arith.constant 0 : index
    %c0_207 = arith.constant 0 : index
    %c0_208 = arith.constant 0 : index
    %384 = vector.load %arg5[%c1_205, %c0_206, %c0_207, %c0_208] : memref<2x14x14x128xf32, #tpu.memory_space<vmem>>, vector<1x14x14x128xf32>
    %385 = vector.shape_cast %384 : vector<1x14x14x128xf32> to vector<14x14x128xf32>
    %386 = vector.shape_cast %383 : vector<14x14x128xf32> to vector<1x14x14x128xf32>
    tpu.vector_store %arg5[%c1_205, %c0_206, %c0_207, %c0_208], %386 {strides = array<i32>} : memref<2x14x14x128xf32, #tpu.memory_space<vmem>>, vector<1x14x14x128xf32>,
    %cst_209 = arith.constant dense<0.000000e+00> : vector<128xf32>
    %387 = vector.multi_reduction <add>, %383, %cst_209 [0, 1] : vector<14x14x128xf32> to vector<128xf32>
    %388 = vector.shape_cast %387 : vector<128xf32> to vector<1x128xf32>
    %389 = arith.addf %195, %388 : vector<1x128xf32>
    %390 = arith.mulf %383, %383 : vector<14x14x128xf32>
    %cst_210 = arith.constant dense<0.000000e+00> : vector<128xf32>
    %391 = vector.multi_reduction <add>, %390, %cst_210 [0, 1] : vector<14x14x128xf32> to vector<128xf32>
    %392 = vector.shape_cast %391 : vector<128xf32> to vector<1x128xf32>
    %393 = arith.addf %199, %392 : vector<1x128xf32>
    %cst_211 = arith.constant 0.00255102036 : f32
    %394 = vector.broadcast %cst_211 : f32 to vector<1x128xf32>
    %395 = arith.mulf %389, %394 : vector<1x128xf32>
    %cst_212 = arith.constant 0.00255102036 : f32
    %396 = vector.broadcast %cst_212 : f32 to vector<1x128xf32>
    %397 = arith.mulf %393, %396 : vector<1x128xf32>
    %398 = arith.mulf %395, %395 : vector<1x128xf32>
    %399 = arith.subf %397, %398 : vector<1x128xf32>
    %cst_213 = arith.constant 0.000000e+00 : f32
    %400 = vector.broadcast %cst_213 : f32 to vector<1x128xf32>
    %401 = arith.maximumf %399, %400 : vector<1x128xf32>
    %cst_214 = arith.constant 9.99999974E-6 : f32
    %402 = vector.broadcast %cst_214 : f32 to vector<1x128xf32>
    %403 = arith.addf %401, %402 : vector<1x128xf32>
    %404 = math.rsqrt %403 : vector<1x128xf32>
    %c0_215 = arith.constant 0 : index
    %c0_216 = arith.constant 0 : index
    %405 = vector.load %arg3[%c0_215, %c0_216] : memref<1x128xf32, #tpu.memory_space<vmem>>, vector<1x128xf32>
    %406 = arith.mulf %404, %405 : vector<1x128xf32>
    %c0_217 = arith.constant 0 : index
    %c0_218 = arith.constant 0 : index
    %407 = vector.load %arg4[%c0_217, %c0_218] : memref<1x128xf32, #tpu.memory_space<vmem>>, vector<1x128xf32>
    %408 = arith.mulf %395, %406 : vector<1x128xf32>
    %409 = arith.subf %407, %408 : vector<1x128xf32>
    %c0_219 = arith.constant 0 : index
    %c0_220 = arith.constant 0 : index
    %c0_221 = arith.constant 0 : index
    %c0_222 = arith.constant 0 : index
    %410 = vector.load %arg5[%c0_219, %c0_220, %c0_221, %c0_222] : memref<2x14x14x128xf32, #tpu.memory_space<vmem>>, vector<2x14x14x128xf32>
    %411 = vector.shape_cast %406 : vector<1x128xf32> to vector<1x1x1x128xf32>
    %412 = vector.broadcast %411 : vector<1x1x1x128xf32> to vector<2x14x14x128xf32>
    %413 = arith.mulf %410, %412 : vector<2x14x14x128xf32>
    %414 = vector.shape_cast %409 : vector<1x128xf32> to vector<1x1x1x128xf32>
    %415 = vector.broadcast %414 : vector<1x1x1x128xf32> to vector<2x14x14x128xf32>
    %416 = arith.addf %413, %415 : vector<2x14x14x128xf32>
    %c0_223 = arith.constant 0 : index
    %c0_224 = arith.constant 0 : index
    %c0_225 = arith.constant 0 : index
    %c0_226 = arith.constant 0 : index
    %417 = vector.load %arg5[%c0_223, %c0_224, %c0_225, %c0_226] : memref<2x14x14x128xf32, #tpu.memory_space<vmem>>, vector<2x14x14x128xf32>
    tpu.vector_store %arg5[%c0_223, %c0_224, %c0_225, %c0_226], %416 {strides = array<i32>} : memref<2x14x14x128xf32, #tpu.memory_space<vmem>>, vector<2x14x14x128xf32>,
    return
  }
  func.func @transform_0(%arg0: i32) -> (i32, i32, i32, i32) {
    %c0_i32 = arith.constant 0 : i32
    %c0_i32_0 = arith.constant 0 : i32
    %c0_i32_1 = arith.constant 0 : i32
    %c0_i32_2 = arith.constant 0 : i32
    return %c0_i32, %c0_i32_0, %c0_i32_1, %arg0 : i32, i32, i32, i32
  }
  func.func @transform_1(%arg0: i32) -> (i32, i32, i32) {
    %c0_i32 = arith.constant 0 : i32
    %c0_i32_0 = arith.constant 0 : i32
    %c0_i32_1 = arith.constant 0 : i32
    return %c0_i32, %c0_i32_0, %arg0 : i32, i32, i32
  }
  func.func @transform_2(%arg0: i32) -> (i32, i32) {
    %c0_i32 = arith.constant 0 : i32
    %c0_i32_0 = arith.constant 0 : i32
    return %c0_i32, %arg0 : i32, i32
  }
  func.func @transform_3(%arg0: i32) -> (i32, i32) {
    %c0_i32 = arith.constant 0 : i32
    %c0_i32_0 = arith.constant 0 : i32
    return %c0_i32, %arg0 : i32, i32
  }
  func.func @transform_4(%arg0: i32) -> (i32, i32, i32, i32) {
    %c0_i32 = arith.constant 0 : i32
    %c0_i32_0 = arith.constant 0 : i32
    %c0_i32_1 = arith.constant 0 : i32
    %c0_i32_2 = arith.constant 0 : i32
    return %c0_i32, %c0_i32_0, %c0_i32_1, %arg0 : i32, i32, i32, i32
  }
}

</mosaic_0001>

<llo_original>
// kernel: tpu_custom_call.1
$region0: #{tpu_custom_call.1}
  #allocation0 [shape = 'u32[]', space=smem, size = 0x4, offset = 0x4, fixed_abs, tag = 'smem constant byte address 0x4 - core index']
  #allocation1 [shape = 'u32[72,128]{1,0:T(1,128)}', space=vmem, size = 0x9000, scoped, tag = 'internal scratch']
  #allocation2 [shape = 'f32[2,18,18,128]{3,2,1,0:T(8,128)}', space=vmem, size = 0x6c000, scoped, tag = 'scratch operand']
  %s0 = inlined_call_operand.vmem [shape: f32[2,14,14,384], index: 0, kind: input, shape index: {}]
  %s1 = inlined_call_operand.vmem [shape: f32[5,5,384], index: 1, kind: input, shape index: {}]
  %s2 = inlined_call_operand.vmem [shape: f32[1,384], index: 2, kind: input, shape index: {}]
  %s3 = inlined_call_operand.vmem [shape: f32[1,384], index: 3, kind: input, shape index: {}]
  %s4 = inlined_call_operand.vmem [shape: f32[2,14,14,384], index: 4, kind: output, shape index: {}]
  %s5 = sld [smem:[#allocation0]]
  $region159: #{tpu_custom_call.1} parent=0
    _
  %s7 = ssub.s32 1, %s5
  %s8 = scalar_select 0, %s7, %s5
  $region1: #{tpu_custom_call.1} parent=0
    #allocation3 [shape = 'u8[458752]{0}', space=vmem, size = 0x70000, scoped, tag = 'input window, operand 0']
    #allocation4 [shape = 'u8[40960]{0}', space=vmem, size = 0xa000, scoped, tag = 'input window, operand 1']
    #allocation5 [shape = 'u8[458752]{0}', space=vmem, size = 0x70000, scoped, tag = 'output window, operand 0']
    loop: start=0, step=1, limit=5
    $region2: #{tpu_custom_call.1} parent=1 // loop_pre_header
      _
    $region3: #{tpu_custom_call.1} parent=1 // loop_header
      %s10 = sphi 0, %s14
      %p11 = scmp.ge.s32.totalorder %s10, 5
      %s20 = sphi 0, %s22
      %s23 = sphi 0, %s20
      %s24 = sphi 0, %s23
      %s40 = sphi 0, %s24
      %s46 = sphi 0, %s48
      %s49 = sphi 0, %s46
      %s50 = sphi 0, %s49
      %s66 = sphi 0, %s50
      %s72 = sphi 0, %s74
      %s75 = sphi 0, %s72
      %s76 = sphi 0, %s75
      %s92 = sphi 0, %s76
      %s98 = sphi 0, %s100
      %s101 = sphi 0, %s98
      %s102 = sphi 0, %s101
      %s118 = sphi 0, %s102
      %s124 = sphi 0, %s126
      %s127 = sphi 0, %s124
      %s128 = sphi 0, %s127
      %s144 = sphi 0, %s128
    $region4: #{tpu_custom_call.1} parent=1 // loop_header_branch
      %13 = sbr.rel (%p11) target = $region8
    $region5: #{tpu_custom_call.1} parent=1 // loop_body
      %s15 = ssub.s32 %s10, 1
      %s16 = ssub.s32 %s10, 2
      %s17 = sadd.s32 %s10, 1
      %s18 = ssub.s32 %s10, %s17
      %p19 = scmp.eq.s32.totalorder %s18, 0
      %s21 = sadd.s32 %s20, 1
      %s22 = scalar_select %p19, %s20, %s21
      %p25 = pneg %p19
      %p26 = scmp.eq.s32.totalorder %s10, 2
      %p27 = por %p25, %p26
      %p28 = scmp.ne.s32.totalorder %s20, %s23
      %p29 = scmp.eq.s32.totalorder %s10, 0
      %p30 = por %p28, %p29
      %p31 = scmp.ne.s32.totalorder %s20, %s23
      %p32 = scmp.eq.s32.totalorder %s15, 2
      %p33 = por %p31, %p32
      %p34 = scmp.ne.s32.totalorder %s23, %s24
      %p35 = scmp.eq.s32.totalorder %s15, 0
      %p36 = por %p34, %p35
      %p37 = scmp.ne.s32.totalorder %s23, %s24
      %p38 = scmp.eq.s32.totalorder %s16, 2
      %p39 = por %p37, %p38
      %p41 = scmp.ne.s32.totalorder %s24, %s40
      %p42 = scmp.eq.s32.totalorder %s16, 0
      %p43 = por %p41, %p42
      %s44 = ssub.s32 %s10, %s17
      %p45 = scmp.eq.s32.totalorder %s44, 0
      %s47 = sadd.s32 %s46, 1
      %s48 = scalar_select %p45, %s46, %s47
      %p51 = pneg %p45
      %p52 = scmp.eq.s32.totalorder %s10, 2
      %p53 = por %p51, %p52
      %p54 = scmp.ne.s32.totalorder %s46, %s49
      %p55 = scmp.eq.s32.totalorder %s10, 0
      %p56 = por %p54, %p55
      %p57 = scmp.ne.s32.totalorder %s46, %s49
      %p58 = scmp.eq.s32.totalorder %s15, 2
      %p59 = por %p57, %p58
      %p60 = scmp.ne.s32.totalorder %s49, %s50
      %p61 = scmp.eq.s32.totalorder %s15, 0
      %p62 = por %p60, %p61
      %p63 = scmp.ne.s32.totalorder %s49, %s50
      %p64 = scmp.eq.s32.totalorder %s16, 2
      %p65 = por %p63, %p64
      %p67 = scmp.ne.s32.totalorder %s50, %s66
      %p68 = scmp.eq.s32.totalorder %s16, 0
      %p69 = por %p67, %p68
      %s70 = ssub.s32 %s10, %s17
      %p71 = scmp.eq.s32.totalorder %s70, 0
      %s73 = sadd.s32 %s72, 1
      %s74 = scalar_select %p71, %s72, %s73
      %p77 = pneg %p71
      %p78 = scmp.eq.s32.totalorder %s10, 2
      %p79 = por %p77, %p78
      %p80 = scmp.ne.s32.totalorder %s72, %s75
      %p81 = scmp.eq.s32.totalorder %s10, 0
      %p82 = por %p80, %p81
      %p83 = scmp.ne.s32.totalorder %s72, %s75
      %p84 = scmp.eq.s32.totalorder %s15, 2
      %p85 = por %p83, %p84
      %p86 = scmp.ne.s32.totalorder %s75, %s76
      %p87 = scmp.eq.s32.totalorder %s15, 0
      %p88 = por %p86, %p87
      %p89 = scmp.ne.s32.totalorder %s75, %s76
      %p90 = scmp.eq.s32.totalorder %s16, 2
      %p91 = por %p89, %p90
      %p93 = scmp.ne.s32.totalorder %s76, %s92
      %p94 = scmp.eq.s32.totalorder %s16, 0
      %p95 = por %p93, %p94
      %s96 = ssub.s32 %s10, %s17
      %p97 = scmp.eq.s32.totalorder %s96, 0
      %s99 = sadd.s32 %s98, 1
      %s100 = scalar_select %p97, %s98, %s99
      %p103 = pneg %p97
      %p104 = scmp.eq.s32.totalorder %s10, 2
      %p105 = por %p103, %p104
      %p106 = scmp.ne.s32.totalorder %s98, %s101
      %p107 = scmp.eq.s32.totalorder %s10, 0
      %p108 = por %p106, %p107
      %p109 = scmp.ne.s32.totalorder %s98, %s101
      %p110 = scmp.eq.s32.totalorder %s15, 2
      %p111 = por %p109, %p110
      %p112 = scmp.ne.s32.totalorder %s101, %s102
      %p113 = scmp.eq.s32.totalorder %s15, 0
      %p114 = por %p112, %p113
      %p115 = scmp.ne.s32.totalorder %s101, %s102
      %p116 = scmp.eq.s32.totalorder %s16, 2
      %p117 = por %p115, %p116
      %p119 = scmp.ne.s32.totalorder %s102, %s118
      %p120 = scmp.eq.s32.totalorder %s16, 0
      %p121 = por %p119, %p120
      %s122 = ssub.s32 %s10, %s17
      %p123 = scmp.eq.s32.totalorder %s122, 0
      %s125 = sadd.s32 %s124, 1
      %s126 = scalar_select %p123, %s124, %s125
      %p129 = pneg %p123
      %p130 = scmp.eq.s32.totalorder %s10, 2
      %p131 = por %p129, %p130
      %p132 = scmp.ne.s32.totalorder %s124, %s127
      %p133 = scmp.eq.s32.totalorder %s10, 0
      %p134 = por %p132, %p133
      %p135 = scmp.ne.s32.totalorder %s124, %s127
      %p136 = scmp.eq.s32.totalorder %s15, 2
      %p137 = por %p135, %p136
      %p138 = scmp.ne.s32.totalorder %s127, %s128
      %p139 = scmp.eq.s32.totalorder %s15, 0
      %p140 = por %p138, %p139
      %p141 = scmp.ne.s32.totalorder %s127, %s128
      %p142 = scmp.eq.s32.totalorder %s16, 2
      %p143 = por %p141, %p142
      %p145 = scmp.ne.s32.totalorder %s128, %s144
      %p146 = scmp.eq.s32.totalorder %s16, 0
      %p147 = por %p145, %p146
      %p148 = scmp.le.s32.totalorder 1, %s10
      %p149 = scmp.lt.s32.totalorder %s10, 4
      %p150 = pnand %p148, %p149
      %p151 = pneg %p150
      // Predicated region
      $region9: #{tpu_custom_call.1} parent=5 // pred_check
        _
      $region10: #{tpu_custom_call.1} parent=5 // pred_check_branch
        %153 = sbr.rel (%p150) target = $region12
      $region11: #{tpu_custom_call.1} parent=5 // pred_region
        %s154 = ssub.s32 %s10, 1
      $region12: #{tpu_custom_call.1} parent=5 // pred_fallthru
        _
      %p155 = scmp.lt.s32.totalorder %s10, 3
      // Predicated region
      $region13: #{tpu_custom_call.1} parent=5 // pred_check
        %p156 = pneg %p155
      $region14: #{tpu_custom_call.1} parent=5 // pred_check_branch
        %158 = sbr.rel (%p156) target = $region16
      $region15: #{tpu_custom_call.1} parent=5 // pred_region
        // Predicated region
        $region17: #{tpu_custom_call.1} parent=15 // pred_check
          %p159 = pneg %p30
        $region18: #{tpu_custom_call.1} parent=15 // pred_check_branch
          %161 = sbr.rel (%p159) target = $region20
        $region19: #{tpu_custom_call.1} parent=15 // pred_region
          %s162 = sand.u32 %s20, 1
          %s163 = sand.u32 %s20, 1
          %s164 = smul.addr %s163, 448
          %s165 = scalar_lea.vmem [#allocation3], %s164
          %s166 = smul.addr %s10, 8
          %s167 = scalar_lea.vmem %s0, %s166
          // Predicated region
          $region21: #{tpu_custom_call.1} parent=19 // pred_check
            _
          $region22: #{tpu_custom_call.1} parent=19 // pred_check_branch
            %169 = sbr.rel (0) target = $region24
          $region23: #{tpu_custom_call.1} parent=19 // pred_region
            // Predicated region
            $region25: #{tpu_custom_call.1} parent=23 // pred_check
              _
            $region26: #{tpu_custom_call.1} parent=23 // pred_check_branch
              %171 = sbr.rel (0) target = $region28
            $region27: #{tpu_custom_call.1} parent=23 // pred_region
              // Predicated region
              $region40: #{tpu_custom_call.1} parent=27 // pred_check
                _
              $region41: #{tpu_custom_call.1} parent=27 // pred_check_branch
                %297 = sbr.rel (0) target = $region43
              $region42: #{tpu_custom_call.1} parent=27 // pred_region
                loop: start=0, step=1, limit=1
                $region44: #{tpu_custom_call.1} parent=42 // loop_pre_header
                  _
                $region45: #{tpu_custom_call.1} parent=42 // loop_header
                  %s299 = sphi 0, %s303
                  %p300 = scmp.ge.s32.totalorder %s299, 1
                  %s304 = sphi %s167, %s167
                  %s305 = sphi %s165, %s165
                $region46: #{tpu_custom_call.1} parent=42 // loop_header_branch
                  %302 = sbr.rel (%p300) target = $region50
                $region47: #{tpu_custom_call.1} parent=42 // loop_body
                  %v306 = vld [vmem:[%s304] sm:$0xff]
                  %307 = vst [vmem:[%s305] sm:$0xff] %v306
                  %v308 = vld [vmem:[%s304 + $0x18] sm:$0xff]
                  %309 = vst [vmem:[%s305 + $0x8] sm:$0xff] %v308
                  %v310 = vld [vmem:[%s304 + $0x30] sm:$0xff]
                  %311 = vst [vmem:[%s305 + $0x10] sm:$0xff] %v310
                  %v312 = vld [vmem:[%s304 + $0x48] sm:$0xff]
                  %313 = vst [vmem:[%s305 + $0x18] sm:$0xff] %v312
                  %v314 = vld [vmem:[%s304 + $0x60] sm:$0xff]
                  %315 = vst [vmem:[%s305 + $0x20] sm:$0xff] %v314
                  %v316 = vld [vmem:[%s304 + $0x78] sm:$0xff]
                  %317 = vst [vmem:[%s305 + $0x28] sm:$0xff] %v316
                  %v318 = vld [vmem:[%s304 + $0x90] sm:$0xff]
                  %319 = vst [vmem:[%s305 + $0x30] sm:$0xff] %v318
                  %v320 = vld [vmem:[%s304 + $0xa8] sm:$0xff]
                  %321 = vst [vmem:[%s305 + $0x38] sm:$0xff] %v320
                  %v322 = vld [vmem:[%s304 + $0xc0] sm:$0xff]
                  %323 = vst [vmem:[%s305 + $0x40] sm:$0xff] %v322
                  %v324 = vld [vmem:[%s304 + $0xd8] sm:$0xff]
                  %325 = vst [vmem:[%s305 + $0x48] sm:$0xff] %v324
                  %v326 = vld [vmem:[%s304 + $0xf0] sm:$0xff]
                  %327 = vst [vmem:[%s305 + $0x50] sm:$0xff] %v326
                  %v328 = vld [vmem:[%s304 + $0x108] sm:$0xff]
                  %329 = vst [vmem:[%s305 + $0x58] sm:$0xff] %v328
                  %v330 = vld [vmem:[%s304 + $0x120] sm:$0xff]
                  %331 = vst [vmem:[%s305 + $0x60] sm:$0xff] %v330
                  %v332 = vld [vmem:[%s304 + $0x138] sm:$0xff]
                  %333 = vst [vmem:[%s305 + $0x68] sm:$0xff] %v332
                  %v334 = vld [vmem:[%s304 + $0x150] sm:$0xff]
                  %335 = vst [vmem:[%s305 + $0x70] sm:$0xff] %v334
                  %v336 = vld [vmem:[%s304 + $0x168] sm:$0xff]
                  %337 = vst [vmem:[%s305 + $0x78] sm:$0xff] %v336
                  %v338 = vld [vmem:[%s304 + $0x180] sm:$0xff]
                  %339 = vst [vmem:[%s305 + $0x80] sm:$0xff] %v338
                  %v340 = vld [vmem:[%s304 + $0x198] sm:$0xff]
                  %341 = vst [vmem:[%s305 + $0x88] sm:$0xff] %v340
                  %v342 = vld [vmem:[%s304 + $0x1b0] sm:$0xff]
                  %343 = vst [vmem:[%s305 + $0x90] sm:$0xff] %v342
                  %v344 = vld [vmem:[%s304 + $0x1c8] sm:$0xff]
                  %345 = vst [vmem:[%s305 + $0x98] sm:$0xff] %v344
                  %v346 = vld [vmem:[%s304 + $0x1e0] sm:$0xff]
                  %347 = vst [vmem:[%s305 + $0xa0] sm:$0xff] %v346
                  %v348 = vld [vmem:[%s304 + $0x1f8] sm:$0xff]
                  %349 = vst [vmem:[%s305 + $0xa8] sm:$0xff] %v348
                  %v350 = vld [vmem:[%s304 + $0x210] sm:$0xff]
                  %351 = vst [vmem:[%s305 + $0xb0] sm:$0xff] %v350
                  %v352 = vld [vmem:[%s304 + $0x228] sm:$0xff]
                  %353 = vst [vmem:[%s305 + $0xb8] sm:$0xff] %v352
                  %v354 = vld [vmem:[%s304 + $0x240] sm:$0xff]
                  %355 = vst [vmem:[%s305 + $0xc0] sm:$0xff] %v354
                  %v356 = vld [vmem:[%s304 + $0x258] sm:$0xff]
                  %357 = vst [vmem:[%s305 + $0xc8] sm:$0xff] %v356
                  %v358 = vld [vmem:[%s304 + $0x270] sm:$0xff]
                  %359 = vst [vmem:[%s305 + $0xd0] sm:$0xff] %v358
                  %v360 = vld [vmem:[%s304 + $0x288] sm:$0xff]
                  %361 = vst [vmem:[%s305 + $0xd8] sm:$0xff] %v360
                  %v362 = vld [vmem:[%s304 + $0x2a0] sm:$0xff]
                  %363 = vst [vmem:[%s305 + $0xe0] sm:$0xff] %v362
                  %v364 = vld [vmem:[%s304 + $0x2b8] sm:$0xff]
                  %365 = vst [vmem:[%s305 + $0xe8] sm:$0xff] %v364
                  %v366 = vld [vmem:[%s304 + $0x2d0] sm:$0xff]
                  %367 = vst [vmem:[%s305 + $0xf0] sm:$0xff] %v366
                  %v368 = vld [vmem:[%s304 + $0x2e8] sm:$0xff]
                  %369 = vst [vmem:[%s305 + $0xf8] sm:$0xff] %v368
                  %v370 = vld [vmem:[%s304 + $0x300] sm:$0xff]
                  %371 = vst [vmem:[%s305 + $0x100] sm:$0xff] %v370
                  %v372 = vld [vmem:[%s304 + $0x318] sm:$0xff]
                  %373 = vst [vmem:[%s305 + $0x108] sm:$0xff] %v372
                  %v374 = vld [vmem:[%s304 + $0x330] sm:$0xff]
                  %375 = vst [vmem:[%s305 + $0x110] sm:$0xff] %v374
                  %v376 = vld [vmem:[%s304 + $0x348] sm:$0xff]
                  %377 = vst [vmem:[%s305 + $0x118] sm:$0xff] %v376
                  %v378 = vld [vmem:[%s304 + $0x360] sm:$0xff]
                  %379 = vst [vmem:[%s305 + $0x120] sm:$0xff] %v378
                  %v380 = vld [vmem:[%s304 + $0x378] sm:$0xff]
                  %381 = vst [vmem:[%s305 + $0x128] sm:$0xff] %v380
                  %v382 = vld [vmem:[%s304 + $0x390] sm:$0xff]
                  %383 = vst [vmem:[%s305 + $0x130] sm:$0xff] %v382
                  %v384 = vld [vmem:[%s304 + $0x3a8] sm:$0xff]
                  %385 = vst [vmem:[%s305 + $0x138] sm:$0xff] %v384
                  %v386 = vld [vmem:[%s304 + $0x3c0] sm:$0xff]
                  %387 = vst [vmem:[%s305 + $0x140] sm:$0xff] %v386
                  %v388 = vld [vmem:[%s304 + $0x3d8] sm:$0xff]
                  %389 = vst [vmem:[%s305 + $0x148] sm:$0xff] %v388
                  %v390 = vld [vmem:[%s304 + $0x3f0] sm:$0xff]
                  %391 = vst [vmem:[%s305 + $0x150] sm:$0xff] %v390
                  %v392 = vld [vmem:[%s304 + $0x408] sm:$0xff]
                  %393 = vst [vmem:[%s305 + $0x158] sm:$0xff] %v392
                  %v394 = vld [vmem:[%s304 + $0x420] sm:$0xff]
                  %395 = vst [vmem:[%s305 + $0x160] sm:$0xff] %v394
                  %v396 = vld [vmem:[%s304 + $0x438] sm:$0xff]
                  %397 = vst [vmem:[%s305 + $0x168] sm:$0xff] %v396
                  %v398 = vld [vmem:[%s304 + $0x450] sm:$0xff]
                  %399 = vst [vmem:[%s305 + $0x170] sm:$0xff] %v398
                  %v400 = vld [vmem:[%s304 + $0x468] sm:$0xff]
                  %401 = vst [vmem:[%s305 + $0x178] sm:$0xff] %v400
                  %v402 = vld [vmem:[%s304 + $0x480] sm:$0xff]
                  %403 = vst [vmem:[%s305 + $0x180] sm:$0xff] %v402
                  %v404 = vld [vmem:[%s304 + $0x498] sm:$0xff]
                  %405 = vst [vmem:[%s305 + $0x188] sm:$0xff] %v404
                  %v406 = vld [vmem:[%s304 + $0x4b0] sm:$0xff]
                  %407 = vst [vmem:[%s305 + $0x190] sm:$0xff] %v406
                  %v408 = vld [vmem:[%s304 + $0x4c8] sm:$0xff]
                  %409 = vst [vmem:[%s305 + $0x198] sm:$0xff] %v408
                  %v410 = vld [vmem:[%s304 + $0x4e0] sm:$0xff]
                  %411 = vst [vmem:[%s305 + $0x1a0] sm:$0xff] %v410
                  %v412 = vld [vmem:[%s304 + $0x4f8] sm:$0xff]
                  %413 = vst [vmem:[%s305 + $0x1a8] sm:$0xff] %v412
                  %v414 = vld [vmem:[%s304 + $0x510] sm:$0xff]
                  %415 = vst [vmem:[%s305 + $0x1b0] sm:$0xff] %v414
                  %v416 = vld [vmem:[%s304 + $0x528] sm:$0xff]
                  %417 = vst [vmem:[%s305 + $0x1b8] sm:$0xff] %v416
                $region48: #{tpu_custom_call.1} parent=42 // loop_footer
                  %s303 = sadd.s32 1, %s299
                $region49: #{tpu_custom_call.1} parent=42 // loop_footer_branch
                  %298 = sbr.rel target = $region45
                $region50: #{tpu_custom_call.1} parent=42 // loop_exit
                  _
              $region43: #{tpu_custom_call.1} parent=27 // pred_fallthru
                _
              // Predicated region
              $region51: #{tpu_custom_call.1} parent=27 // pred_check
                _
              $region52: #{tpu_custom_call.1} parent=27 // pred_check_branch
                %419 = sbr.rel target = $region54
              $region53: #{tpu_custom_call.1} parent=27 // pred_region
                _
              $region54: #{tpu_custom_call.1} parent=27 // pred_fallthru
                _
            $region28: #{tpu_custom_call.1} parent=23 // pred_fallthru
              _
            // Predicated region
            $region29: #{tpu_custom_call.1} parent=23 // pred_check
              _
            $region30: #{tpu_custom_call.1} parent=23 // pred_check_branch
              %173 = sbr.rel target = $region32
            $region31: #{tpu_custom_call.1} parent=23 // pred_region
              %s175 = ssub.s32 256, 1
              loop: start=0, step=1, limit=1
              $region33: #{tpu_custom_call.1} parent=31 // loop_pre_header
                _
              $region34: #{tpu_custom_call.1} parent=31 // loop_header
                %s177 = sphi 0, %s181
                %p178 = scmp.ge.s32.totalorder %s177, 1
                %s182 = sphi %s167, %s167
                %s183 = sphi %s165, %s165
              $region35: #{tpu_custom_call.1} parent=31 // loop_header_branch
                %180 = sbr.rel (%p178) target = $region39
              $region36: #{tpu_custom_call.1} parent=31 // loop_body
                %v184 = vld [vmem:[%s182] sm:%s175]
                %185 = vst [vmem:[%s183] sm:%s175] %v184
                %v186 = vld [vmem:[%s182 + $0x18] sm:%s175]
                %187 = vst [vmem:[%s183 + $0x8] sm:%s175] %v186
                %v188 = vld [vmem:[%s182 + $0x30] sm:%s175]
                %189 = vst [vmem:[%s183 + $0x10] sm:%s175] %v188
                %v190 = vld [vmem:[%s182 + $0x48] sm:%s175]
                %191 = vst [vmem:[%s183 + $0x18] sm:%s175] %v190
                %v192 = vld [vmem:[%s182 + $0x60] sm:%s175]
                %193 = vst [vmem:[%s183 + $0x20] sm:%s175] %v192
                %v194 = vld [vmem:[%s182 + $0x78] sm:%s175]
                %195 = vst [vmem:[%s183 + $0x28] sm:%s175] %v194
                %v196 = vld [vmem:[%s182 + $0x90] sm:%s175]
                %197 = vst [vmem:[%s183 + $0x30] sm:%s175] %v196
                %v198 = vld [vmem:[%s182 + $0xa8] sm:%s175]
                %199 = vst [vmem:[%s183 + $0x38] sm:%s175] %v198
                %v200 = vld [vmem:[%s182 + $0xc0] sm:%s175]
                %201 = vst [vmem:[%s183 + $0x40] sm:%s175] %v200
                %v202 = vld [vmem:[%s182 + $0xd8] sm:%s175]
                %203 = vst [vmem:[%s183 + $0x48] sm:%s175] %v202
                %v204 = vld [vmem:[%s182 + $0xf0] sm:%s175]
                %205 = vst [vmem:[%s183 + $0x50] sm:%s175] %v204
                %v206 = vld [vmem:[%s182 + $0x108] sm:%s175]
                %207 = vst [vmem:[%s183 + $0x58] sm:%s175] %v206
                %v208 = vld [vmem:[%s182 + $0x120] sm:%s175]
                %209 = vst [vmem:[%s183 + $0x60] sm:%s175] %v208
                %v210 = vld [vmem:[%s182 + $0x138] sm:%s175]
                %211 = vst [vmem:[%s183 + $0x68] sm:%s175] %v210
                %v212 = vld [vmem:[%s182 + $0x150] sm:%s175]
                %213 = vst [vmem:[%s183 + $0x70] sm:%s175] %v212
                %v214 = vld [vmem:[%s182 + $0x168] sm:%s175]
                %215 = vst [vmem:[%s183 + $0x78] sm:%s175] %v214
                %v216 = vld [vmem:[%s182 + $0x180] sm:%s175]
                %217 = vst [vmem:[%s183 + $0x80] sm:%s175] %v216
                %v218 = vld [vmem:[%s182 + $0x198] sm:%s175]
                %219 = vst [vmem:[%s183 + $0x88] sm:%s175] %v218
                %v220 = vld [vmem:[%s182 + $0x1b0] sm:%s175]
                %221 = vst [vmem:[%s183 + $0x90] sm:%s175] %v220
                %v222 = vld [vmem:[%s182 + $0x1c8] sm:%s175]
                %223 = vst [vmem:[%s183 + $0x98] sm:%s175] %v222
                %v224 = vld [vmem:[%s182 + $0x1e0] sm:%s175]
                %225 = vst [vmem:[%s183 + $0xa0] sm:%s175] %v224
                %v226 = vld [vmem:[%s182 + $0x1f8] sm:%s175]
                %227 = vst [vmem:[%s183 + $0xa8] sm:%s175] %v226
                %v228 = vld [vmem:[%s182 + $0x210] sm:%s175]
                %229 = vst [vmem:[%s183 + $0xb0] sm:%s175] %v228
                %v230 = vld [vmem:[%s182 + $0x228] sm:%s175]
                %231 = vst [vmem:[%s183 + $0xb8] sm:%s175] %v230
                %v232 = vld [vmem:[%s182 + $0x240] sm:%s175]
                %233 = vst [vmem:[%s183 + $0xc0] sm:%s175] %v232
                %v234 = vld [vmem:[%s182 + $0x258] sm:%s175]
                %235 = vst [vmem:[%s183 + $0xc8] sm:%s175] %v234
                %v236 = vld [vmem:[%s182 + $0x270] sm:%s175]
                %237 = vst [vmem:[%s183 + $0xd0] sm:%s175] %v236
                %v238 = vld [vmem:[%s182 + $0x288] sm:%s175]
                %239 = vst [vmem:[%s183 + $0xd8] sm:%s175] %v238
                %v240 = vld [vmem:[%s182 + $0x2a0] sm:%s175]
                %241 = vst [vmem:[%s183 + $0xe0] sm:%s175] %v240
                %v242 = vld [vmem:[%s182 + $0x2b8] sm:%s175]
                %243 = vst [vmem:[%s183 + $0xe8] sm:%s175] %v242
                %v244 = vld [vmem:[%s182 + $0x2d0] sm:%s175]
                %245 = vst [vmem:[%s183 + $0xf0] sm:%s175] %v244
                %v246 = vld [vmem:[%s182 + $0x2e8] sm:%s175]
                %247 = vst [vmem:[%s183 + $0xf8] sm:%s175] %v246
                %v248 = vld [vmem:[%s182 + $0x300] sm:%s175]
                %249 = vst [vmem:[%s183 + $0x100] sm:%s175] %v248
                %v250 = vld [vmem:[%s182 + $0x318] sm:%s175]
                %251 = vst [vmem:[%s183 + $0x108] sm:%s175] %v250
                %v252 = vld [vmem:[%s182 + $0x330] sm:%s175]
                %253 = vst [vmem:[%s183 + $0x110] sm:%s175] %v252
                %v254 = vld [vmem:[%s182 + $0x348] sm:%s175]
                %255 = vst [vmem:[%s183 + $0x118] sm:%s175] %v254
                %v256 = vld [vmem:[%s182 + $0x360] sm:%s175]
                %257 = vst [vmem:[%s183 + $0x120] sm:%s175] %v256
                %v258 = vld [vmem:[%s182 + $0x378] sm:%s175]
                %259 = vst [vmem:[%s183 + $0x128] sm:%s175] %v258
                %v260 = vld [vmem:[%s182 + $0x390] sm:%s175]
                %261 = vst [vmem:[%s183 + $0x130] sm:%s175] %v260
                %v262 = vld [vmem:[%s182 + $0x3a8] sm:%s175]
                %263 = vst [vmem:[%s183 + $0x138] sm:%s175] %v262
                %v264 = vld [vmem:[%s182 + $0x3c0] sm:%s175]
                %265 = vst [vmem:[%s183 + $0x140] sm:%s175] %v264
                %v266 = vld [vmem:[%s182 + $0x3d8] sm:%s175]
                %267 = vst [vmem:[%s183 + $0x148] sm:%s175] %v266
                %v268 = vld [vmem:[%s182 + $0x3f0] sm:%s175]
                %269 = vst [vmem:[%s183 + $0x150] sm:%s175] %v268
                %v270 = vld [vmem:[%s182 + $0x408] sm:%s175]
                %271 = vst [vmem:[%s183 + $0x158] sm:%s175] %v270
                %v272 = vld [vmem:[%s182 + $0x420] sm:%s175]
                %273 = vst [vmem:[%s183 + $0x160] sm:%s175] %v272
                %v274 = vld [vmem:[%s182 + $0x438] sm:%s175]
                %275 = vst [vmem:[%s183 + $0x168] sm:%s175] %v274
                %v276 = vld [vmem:[%s182 + $0x450] sm:%s175]
                %277 = vst [vmem:[%s183 + $0x170] sm:%s175] %v276
                %v278 = vld [vmem:[%s182 + $0x468] sm:%s175]
                %279 = vst [vmem:[%s183 + $0x178] sm:%s175] %v278
                %v280 = vld [vmem:[%s182 + $0x480] sm:%s175]
                %281 = vst [vmem:[%s183 + $0x180] sm:%s175] %v280
                %v282 = vld [vmem:[%s182 + $0x498] sm:%s175]
                %283 = vst [vmem:[%s183 + $0x188] sm:%s175] %v282
                %v284 = vld [vmem:[%s182 + $0x4b0] sm:%s175]
                %285 = vst [vmem:[%s183 + $0x190] sm:%s175] %v284
                %v286 = vld [vmem:[%s182 + $0x4c8] sm:%s175]
                %287 = vst [vmem:[%s183 + $0x198] sm:%s175] %v286
                %v288 = vld [vmem:[%s182 + $0x4e0] sm:%s175]
                %289 = vst [vmem:[%s183 + $0x1a0] sm:%s175] %v288
                %v290 = vld [vmem:[%s182 + $0x4f8] sm:%s175]
                %291 = vst [vmem:[%s183 + $0x1a8] sm:%s175] %v290
                %v292 = vld [vmem:[%s182 + $0x510] sm:%s175]
                %293 = vst [vmem:[%s183 + $0x1b0] sm:%s175] %v292
                %v294 = vld [vmem:[%s182 + $0x528] sm:%s175]
                %295 = vst [vmem:[%s183 + $0x1b8] sm:%s175] %v294
              $region37: #{tpu_custom_call.1} parent=31 // loop_footer
                %s181 = sadd.s32 1, %s177
              $region38: #{tpu_custom_call.1} parent=31 // loop_footer_branch
                %176 = sbr.rel target = $region34
              $region39: #{tpu_custom_call.1} parent=31 // loop_exit
                _
            $region32: #{tpu_custom_call.1} parent=23 // pred_fallthru
              _
          $region24: #{tpu_custom_call.1} parent=19 // pred_fallthru
            _
          %420 = vnop
        $region20: #{tpu_custom_call.1} parent=15 // pred_fallthru
          _
        // Predicated region
        $region55: #{tpu_custom_call.1} parent=15 // pred_check
          %p421 = pneg %p56
        $region56: #{tpu_custom_call.1} parent=15 // pred_check_branch
          %423 = sbr.rel (%p421) target = $region58
        $region57: #{tpu_custom_call.1} parent=15 // pred_region
          %s424 = sand.u32 %s46, 1
          %s425 = sand.u32 %s46, 1
          %s426 = smul.addr %s425, 40
          %s427 = scalar_lea.vmem [#allocation4], %s426
          %s428 = smul.addr %s10, 8
          %s429 = scalar_lea.vmem %s1, %s428
          // Predicated region
          $region59: #{tpu_custom_call.1} parent=57 // pred_check
            _
          $region60: #{tpu_custom_call.1} parent=57 // pred_check_branch
            %431 = sbr.rel (0) target = $region62
          $region61: #{tpu_custom_call.1} parent=57 // pred_region
            // Predicated region
            $region63: #{tpu_custom_call.1} parent=61 // pred_check
              _
            $region64: #{tpu_custom_call.1} parent=61 // pred_check_branch
              %433 = sbr.rel (0) target = $region66
            $region65: #{tpu_custom_call.1} parent=61 // pred_region
              // Predicated region
              $region78: #{tpu_custom_call.1} parent=65 // pred_check
                _
              $region79: #{tpu_custom_call.1} parent=65 // pred_check_branch
                %457 = sbr.rel (0) target = $region81
              $region80: #{tpu_custom_call.1} parent=65 // pred_region
                loop: start=0, step=1, limit=1
                $region82: #{tpu_custom_call.1} parent=80 // loop_pre_header
                  _
                $region83: #{tpu_custom_call.1} parent=80 // loop_header
                  %s459 = sphi 0, %s463
                  %p460 = scmp.ge.s32.totalorder %s459, 1
                  %s464 = sphi %s429, %s429
                  %s465 = sphi %s427, %s427
                $region84: #{tpu_custom_call.1} parent=80 // loop_header_branch
                  %462 = sbr.rel (%p460) target = $region88
                $region85: #{tpu_custom_call.1} parent=80 // loop_body
                  %v466 = vld [vmem:[%s464] sm:$0xff]
                  %467 = vst [vmem:[%s465] sm:$0xff] %v466
                  %v468 = vld [vmem:[%s464 + $0x18] sm:$0xff]
                  %469 = vst [vmem:[%s465 + $0x8] sm:$0xff] %v468
                  %v470 = vld [vmem:[%s464 + $0x30] sm:$0xff]
                  %471 = vst [vmem:[%s465 + $0x10] sm:$0xff] %v470
                  %v472 = vld [vmem:[%s464 + $0x48] sm:$0xff]
                  %473 = vst [vmem:[%s465 + $0x18] sm:$0xff] %v472
                  %v474 = vld [vmem:[%s464 + $0x60] sm:$0xff]
                  %475 = vst [vmem:[%s465 + $0x20] sm:$0xff] %v474
                $region86: #{tpu_custom_call.1} parent=80 // loop_footer
                  %s463 = sadd.s32 1, %s459
                $region87: #{tpu_custom_call.1} parent=80 // loop_footer_branch
                  %458 = sbr.rel target = $region83
                $region88: #{tpu_custom_call.1} parent=80 // loop_exit
                  _
              $region81: #{tpu_custom_call.1} parent=65 // pred_fallthru
                _
              // Predicated region
              $region89: #{tpu_custom_call.1} parent=65 // pred_check
                _
              $region90: #{tpu_custom_call.1} parent=65 // pred_check_branch
                %477 = sbr.rel target = $region92
              $region91: #{tpu_custom_call.1} parent=65 // pred_region
                _
              $region92: #{tpu_custom_call.1} parent=65 // pred_fallthru
                _
            $region66: #{tpu_custom_call.1} parent=61 // pred_fallthru
              _
            // Predicated region
            $region67: #{tpu_custom_call.1} parent=61 // pred_check
              _
            $region68: #{tpu_custom_call.1} parent=61 // pred_check_branch
              %435 = sbr.rel target = $region70
            $region69: #{tpu_custom_call.1} parent=61 // pred_region
              %s437 = ssub.s32 256, 1
              loop: start=0, step=1, limit=1
              $region71: #{tpu_custom_call.1} parent=69 // loop_pre_header
                _
              $region72: #{tpu_custom_call.1} parent=69 // loop_header
                %s439 = sphi 0, %s443
                %p440 = scmp.ge.s32.totalorder %s439, 1
                %s444 = sphi %s429, %s429
                %s445 = sphi %s427, %s427
              $region73: #{tpu_custom_call.1} parent=69 // loop_header_branch
                %442 = sbr.rel (%p440) target = $region77
              $region74: #{tpu_custom_call.1} parent=69 // loop_body
                %v446 = vld [vmem:[%s444] sm:%s437]
                %447 = vst [vmem:[%s445] sm:%s437] %v446
                %v448 = vld [vmem:[%s444 + $0x18] sm:%s437]
                %449 = vst [vmem:[%s445 + $0x8] sm:%s437] %v448
                %v450 = vld [vmem:[%s444 + $0x30] sm:%s437]
                %451 = vst [vmem:[%s445 + $0x10] sm:%s437] %v450
                %v452 = vld [vmem:[%s444 + $0x48] sm:%s437]
                %453 = vst [vmem:[%s445 + $0x18] sm:%s437] %v452
                %v454 = vld [vmem:[%s444 + $0x60] sm:%s437]
                %455 = vst [vmem:[%s445 + $0x20] sm:%s437] %v454
              $region75: #{tpu_custom_call.1} parent=69 // loop_footer
                %s443 = sadd.s32 1, %s439
              $region76: #{tpu_custom_call.1} parent=69 // loop_footer_branch
                %438 = sbr.rel target = $region72
              $region77: #{tpu_custom_call.1} parent=69 // loop_exit
                _
            $region70: #{tpu_custom_call.1} parent=61 // pred_fallthru
              _
          $region62: #{tpu_custom_call.1} parent=57 // pred_fallthru
            _
          %478 = vnop
        $region58: #{tpu_custom_call.1} parent=15 // pred_fallthru
          _
        // Predicated region
        $region93: #{tpu_custom_call.1} parent=15 // pred_check
          %p479 = pneg %p82
        $region94: #{tpu_custom_call.1} parent=15 // pred_check_branch
          %481 = sbr.rel (%p479) target = $region96
        $region95: #{tpu_custom_call.1} parent=15 // pred_region
          %p482 = scmp.lt.s32.totalorder %s10, 2
          %s483 = scalar_select %p482, %s10, 2
          %s484 = scalar_lea.vmem %s2, %s483
        $region96: #{tpu_custom_call.1} parent=15 // pred_fallthru
          _
        // Predicated region
        $region97: #{tpu_custom_call.1} parent=15 // pred_check
          %p485 = pneg %p108
        $region98: #{tpu_custom_call.1} parent=15 // pred_check_branch
          %487 = sbr.rel (%p485) target = $region100
        $region99: #{tpu_custom_call.1} parent=15 // pred_region
          %p488 = scmp.lt.s32.totalorder %s10, 2
          %s489 = scalar_select %p488, %s10, 2
          %s490 = scalar_lea.vmem %s3, %s489
        $region100: #{tpu_custom_call.1} parent=15 // pred_fallthru
          _
      $region16: #{tpu_custom_call.1} parent=5 // pred_fallthru
        _
      %p491 = scmp.le.s32.totalorder 1, %s10
      %p492 = scmp.lt.s32.totalorder %s10, 4
      %p493 = pnand %p491, %p492
      %p494 = pneg %p493
      // Predicated region
      $region101: #{tpu_custom_call.1} parent=5 // pred_check
        _
      $region102: #{tpu_custom_call.1} parent=5 // pred_check_branch
        %496 = sbr.rel (%p493) target = $region104
      $region103: #{tpu_custom_call.1} parent=5 // pred_region
        %s497 = ssub.s32 %s10, 1
        %s498 = sand.u32 %s23, 1
        %s499 = sand.u32 %s23, 1
        %s500 = smul.addr %s499, 448
        %s501 = scalar_lea.vmem [#allocation3], %s500
        // Predicated region
        $region105: #{tpu_custom_call.1} parent=103 // pred_check
          %p502 = pneg %p36
        $region106: #{tpu_custom_call.1} parent=103 // pred_check_branch
          %504 = sbr.rel (%p502) target = $region108
        $region107: #{tpu_custom_call.1} parent=103 // pred_region
          _
        $region108: #{tpu_custom_call.1} parent=103 // pred_fallthru
          _
        %s505 = sand.u32 %s49, 1
        %s506 = sand.u32 %s49, 1
        %s507 = smul.addr %s506, 40
        %s508 = scalar_lea.vmem [#allocation4], %s507
        // Predicated region
        $region109: #{tpu_custom_call.1} parent=103 // pred_check
          %p509 = pneg %p62
        $region110: #{tpu_custom_call.1} parent=103 // pred_check_branch
          %511 = sbr.rel (%p509) target = $region112
        $region111: #{tpu_custom_call.1} parent=103 // pred_region
          _
        $region112: #{tpu_custom_call.1} parent=103 // pred_fallthru
          _
        %s512 = sand.u32 %s23, 1
        %s513 = sand.u32 %s23, 1
        %s514 = smul.addr %s513, 448
        %s515 = scalar_lea.vmem [#allocation3], %s514
        %p516 = pneg %p36
        %p517 = pneg %p33
        %s518 = sand.u32 %s49, 1
        %s519 = sand.u32 %s49, 1
        %s520 = smul.addr %s519, 40
        %s521 = scalar_lea.vmem [#allocation4], %s520
        %p522 = pneg %p62
        %p523 = pneg %p59
        %p524 = scmp.lt.s32.totalorder %s15, 2
        %s525 = scalar_select %p524, %s15, 2
        %s526 = scalar_lea.vmem %s2, %s525
        %p527 = pneg %p88
        %p528 = pneg %p85
        %p529 = scmp.lt.s32.totalorder %s15, 2
        %s530 = scalar_select %p529, %s15, 2
        %s531 = scalar_lea.vmem %s3, %s530
        %p532 = pneg %p114
        %p533 = pneg %p111
        %p534 = pneg %p140
        %p535 = pneg %p137
        %s536 = sand.u32 %s127, 1
        %s537 = sand.u32 %s127, 1
        %s538 = smul.addr %s537, 448
        %s539 = scalar_lea.vmem [#allocation5], %s538
        %p540 = scmp.lt.s32.totalorder %s15, 2
        %s541 = scalar_select %p540, %s15, 2
        %s542 = scalar_lea.vmem %s2, %s541
        %p543 = scmp.lt.s32.totalorder %s15, 2
        %s544 = scalar_select %p543, %s15, 2
        %s545 = scalar_lea.vmem %s3, %s544
        %546 = vst [vmem:[#allocation2] sm:$0xff] 0.0
        %547 = vst [vmem:[#allocation2 + $0x8] sm:$0xff] 0.0
        %548 = vst [vmem:[#allocation2 + $0x10] sm:$0x3] 0.0
        %549 = vst [vmem:[#allocation2 + $0x18] sm:$0xff] 0.0
        %550 = vst [vmem:[#allocation2 + $0x20] sm:$0xff] 0.0
        %551 = vst [vmem:[#allocation2 + $0x28] sm:$0x3] 0.0
        %552 = vst [vmem:[#allocation2 + $0x30] sm:$0xff] 0.0
        %553 = vst [vmem:[#allocation2 + $0x38] sm:$0xff] 0.0
        %554 = vst [vmem:[#allocation2 + $0x40] sm:$0x3] 0.0
        %555 = vst [vmem:[#allocation2 + $0x48] sm:$0xff] 0.0
        %556 = vst [vmem:[#allocation2 + $0x50] sm:$0xff] 0.0
        %557 = vst [vmem:[#allocation2 + $0x58] sm:$0x3] 0.0
        %558 = vst [vmem:[#allocation2 + $0x60] sm:$0xff] 0.0
        %559 = vst [vmem:[#allocation2 + $0x68] sm:$0xff] 0.0
        %560 = vst [vmem:[#allocation2 + $0x70] sm:$0x3] 0.0
        %561 = vst [vmem:[#allocation2 + $0x78] sm:$0xff] 0.0
        %562 = vst [vmem:[#allocation2 + $0x80] sm:$0xff] 0.0
        %563 = vst [vmem:[#allocation2 + $0x88] sm:$0x3] 0.0
        %564 = vst [vmem:[#allocation2 + $0x90] sm:$0xff] 0.0
        %565 = vst [vmem:[#allocation2 + $0x98] sm:$0xff] 0.0
        %566 = vst [vmem:[#allocation2 + $0xa0] sm:$0x3] 0.0
        %567 = vst [vmem:[#allocation2 + $0xa8] sm:$0xff] 0.0
        %568 = vst [vmem:[#allocation2 + $0xb0] sm:$0xff] 0.0
        %569 = vst [vmem:[#allocation2 + $0xb8] sm:$0x3] 0.0
        %570 = vst [vmem:[#allocation2 + $0xc0] sm:$0xff] 0.0
        %571 = vst [vmem:[#allocation2 + $0xc8] sm:$0xff] 0.0
        %572 = vst [vmem:[#allocation2 + $0xd0] sm:$0x3] 0.0
        %573 = vst [vmem:[#allocation2 + $0xd8] sm:$0xff] 0.0
        %574 = vst [vmem:[#allocation2 + $0xe0] sm:$0xff] 0.0
        %575 = vst [vmem:[#allocation2 + $0xe8] sm:$0x3] 0.0
        %576 = vst [vmem:[#allocation2 + $0xf0] sm:$0xff] 0.0
        %577 = vst [vmem:[#allocation2 + $0xf8] sm:$0xff] 0.0
        %578 = vst [vmem:[#allocation2 + $0x100] sm:$0x3] 0.0
        %579 = vst [vmem:[#allocation2 + $0x108] sm:$0xff] 0.0
        %580 = vst [vmem:[#allocation2 + $0x110] sm:$0xff] 0.0
        %581 = vst [vmem:[#allocation2 + $0x118] sm:$0x3] 0.0
        %582 = vst [vmem:[#allocation2 + $0x120] sm:$0xff] 0.0
        %583 = vst [vmem:[#allocation2 + $0x128] sm:$0xff] 0.0
        %584 = vst [vmem:[#allocation2 + $0x130] sm:$0x3] 0.0
        %585 = vst [vmem:[#allocation2 + $0x138] sm:$0xff] 0.0
        %586 = vst [vmem:[#allocation2 + $0x140] sm:$0xff] 0.0
        %587 = vst [vmem:[#allocation2 + $0x148] sm:$0x3] 0.0
        %588 = vst [vmem:[#allocation2 + $0x150] sm:$0xff] 0.0
        %589 = vst [vmem:[#allocation2 + $0x158] sm:$0xff] 0.0
        %590 = vst [vmem:[#allocation2 + $0x160] sm:$0x3] 0.0
        %591 = vst [vmem:[#allocation2 + $0x168] sm:$0xff] 0.0
        %592 = vst [vmem:[#allocation2 + $0x170] sm:$0xff] 0.0
        %593 = vst [vmem:[#allocation2 + $0x178] sm:$0x3] 0.0
        %594 = vst [vmem:[#allocation2 + $0x180] sm:$0xff] 0.0
        %595 = vst [vmem:[#allocation2 + $0x188] sm:$0xff] 0.0
        %596 = vst [vmem:[#allocation2 + $0x190] sm:$0x3] 0.0
        %597 = vst [vmem:[#allocation2 + $0x198] sm:$0xff] 0.0
        %598 = vst [vmem:[#allocation2 + $0x1a0] sm:$0xff] 0.0
        %599 = vst [vmem:[#allocation2 + $0x1a8] sm:$0x3] 0.0
        %600 = vst [vmem:[#allocation2 + $0x1b0] sm:$0xff] 0.0
        %601 = vst [vmem:[#allocation2 + $0x1b8] sm:$0xff] 0.0
        %602 = vst [vmem:[#allocation2 + $0x1c0] sm:$0x3] 0.0
        %603 = vst [vmem:[#allocation2 + $0x1c8] sm:$0xff] 0.0
        %604 = vst [vmem:[#allocation2 + $0x1d0] sm:$0xff] 0.0
        %605 = vst [vmem:[#allocation2 + $0x1d8] sm:$0x3] 0.0
        %606 = vst [vmem:[#allocation2 + $0x1e0] sm:$0xff] 0.0
        %607 = vst [vmem:[#allocation2 + $0x1e8] sm:$0xff] 0.0
        %608 = vst [vmem:[#allocation2 + $0x1f0] sm:$0x3] 0.0
        %609 = vst [vmem:[#allocation2 + $0x1f8] sm:$0xff] 0.0
        %610 = vst [vmem:[#allocation2 + $0x200] sm:$0xff] 0.0
        %611 = vst [vmem:[#allocation2 + $0x208] sm:$0x3] 0.0
        %612 = vst [vmem:[#allocation2 + $0x210] sm:$0xff] 0.0
        %613 = vst [vmem:[#allocation2 + $0x218] sm:$0xff] 0.0
        %614 = vst [vmem:[#allocation2 + $0x220] sm:$0x3] 0.0
        %615 = vst [vmem:[#allocation2 + $0x228] sm:$0xff] 0.0
        %616 = vst [vmem:[#allocation2 + $0x230] sm:$0xff] 0.0
        %617 = vst [vmem:[#allocation2 + $0x238] sm:$0x3] 0.0
        %618 = vst [vmem:[#allocation2 + $0x240] sm:$0xff] 0.0
        %619 = vst [vmem:[#allocation2 + $0x248] sm:$0xff] 0.0
        %620 = vst [vmem:[#allocation2 + $0x250] sm:$0x3] 0.0
        %621 = vst [vmem:[#allocation2 + $0x258] sm:$0xff] 0.0
        %622 = vst [vmem:[#allocation2 + $0x260] sm:$0xff] 0.0
        %623 = vst [vmem:[#allocation2 + $0x268] sm:$0x3] 0.0
        %624 = vst [vmem:[#allocation2 + $0x270] sm:$0xff] 0.0
        %625 = vst [vmem:[#allocation2 + $0x278] sm:$0xff] 0.0
        %626 = vst [vmem:[#allocation2 + $0x280] sm:$0x3] 0.0
        %627 = vst [vmem:[#allocation2 + $0x288] sm:$0xff] 0.0
        %628 = vst [vmem:[#allocation2 + $0x290] sm:$0xff] 0.0
        %629 = vst [vmem:[#allocation2 + $0x298] sm:$0x3] 0.0
        %630 = vst [vmem:[#allocation2 + $0x2a0] sm:$0xff] 0.0
        %631 = vst [vmem:[#allocation2 + $0x2a8] sm:$0xff] 0.0
        %632 = vst [vmem:[#allocation2 + $0x2b0] sm:$0x3] 0.0
        %633 = vst [vmem:[#allocation2 + $0x2b8] sm:$0xff] 0.0
        %634 = vst [vmem:[#allocation2 + $0x2c0] sm:$0xff] 0.0
        %635 = vst [vmem:[#allocation2 + $0x2c8] sm:$0x3] 0.0
        %636 = vst [vmem:[#allocation2 + $0x2d0] sm:$0xff] 0.0
        %637 = vst [vmem:[#allocation2 + $0x2d8] sm:$0xff] 0.0
        %638 = vst [vmem:[#allocation2 + $0x2e0] sm:$0x3] 0.0
        %639 = vst [vmem:[#allocation2 + $0x2e8] sm:$0xff] 0.0
        %640 = vst [vmem:[#allocation2 + $0x2f0] sm:$0xff] 0.0
        %641 = vst [vmem:[#allocation2 + $0x2f8] sm:$0x3] 0.0
        %642 = vst [vmem:[#allocation2 + $0x300] sm:$0xff] 0.0
        %643 = vst [vmem:[#allocation2 + $0x308] sm:$0xff] 0.0
        %644 = vst [vmem:[#allocation2 + $0x310] sm:$0x3] 0.0
        %645 = vst [vmem:[#allocation2 + $0x318] sm:$0xff] 0.0
        %646 = vst [vmem:[#allocation2 + $0x320] sm:$0xff] 0.0
        %647 = vst [vmem:[#allocation2 + $0x328] sm:$0x3] 0.0
        %648 = vst [vmem:[#allocation2 + $0x330] sm:$0xff] 0.0
        %649 = vst [vmem:[#allocation2 + $0x338] sm:$0xff] 0.0
        %650 = vst [vmem:[#allocation2 + $0x340] sm:$0x3] 0.0
        %651 = vst [vmem:[#allocation2 + $0x348] sm:$0xff] 0.0
        %652 = vst [vmem:[#allocation2 + $0x350] sm:$0xff] 0.0
        %653 = vst [vmem:[#allocation2 + $0x358] sm:$0x3] 0.0
        %v654 = vld [vmem:[%s501] sm:$0xff]
        %v655 = vld [vmem:[%s501 + $0x8] sm:$0x3f]
        %v656 = vld [vmem:[%s501 + $0x10] sm:$0xff]
        %v657 = vld [vmem:[%s501 + $0x18] sm:$0x3f]
        %v658 = vld [vmem:[%s501 + $0x20] sm:$0xff]
        %v659 = vld [vmem:[%s501 + $0x28] sm:$0x3f]
        %v660 = vld [vmem:[%s501 + $0x30] sm:$0xff]
        %v661 = vld [vmem:[%s501 + $0x38] sm:$0x3f]
        %v662 = vld [vmem:[%s501 + $0x40] sm:$0xff]
        %v663 = vld [vmem:[%s501 + $0x48] sm:$0x3f]
        %v664 = vld [vmem:[%s501 + $0x50] sm:$0xff]
        %v665 = vld [vmem:[%s501 + $0x58] sm:$0x3f]
        %v666 = vld [vmem:[%s501 + $0x60] sm:$0xff]
        %v667 = vld [vmem:[%s501 + $0x68] sm:$0x3f]
        %v668 = vld [vmem:[%s501 + $0x70] sm:$0xff]
        %v669 = vld [vmem:[%s501 + $0x78] sm:$0x3f]
        %v670 = vld [vmem:[%s501 + $0x80] sm:$0xff]
        %v671 = vld [vmem:[%s501 + $0x88] sm:$0x3f]
        %v672 = vld [vmem:[%s501 + $0x90] sm:$0xff]
        %v673 = vld [vmem:[%s501 + $0x98] sm:$0x3f]
        %v674 = vld [vmem:[%s501 + $0xa0] sm:$0xff]
        %v675 = vld [vmem:[%s501 + $0xa8] sm:$0x3f]
        %v676 = vld [vmem:[%s501 + $0xb0] sm:$0xff]
        %v677 = vld [vmem:[%s501 + $0xb8] sm:$0x3f]
        %v678 = vld [vmem:[%s501 + $0xc0] sm:$0xff]
        %v679 = vld [vmem:[%s501 + $0xc8] sm:$0x3f]
        %v680 = vld [vmem:[%s501 + $0xd0] sm:$0xff]
        %v681 = vld [vmem:[%s501 + $0xd8] sm:$0x3f]
        %v682 = vld [vmem:[%s501 + $0xe0] sm:$0xff]
        %v683 = vld [vmem:[%s501 + $0xe8] sm:$0x3f]
        %v684 = vld [vmem:[%s501 + $0xf0] sm:$0xff]
        %v685 = vld [vmem:[%s501 + $0xf8] sm:$0x3f]
        %v686 = vld [vmem:[%s501 + $0x100] sm:$0xff]
        %v687 = vld [vmem:[%s501 + $0x108] sm:$0x3f]
        %v688 = vld [vmem:[%s501 + $0x110] sm:$0xff]
        %v689 = vld [vmem:[%s501 + $0x118] sm:$0x3f]
        %v690 = vld [vmem:[%s501 + $0x120] sm:$0xff]
        %v691 = vld [vmem:[%s501 + $0x128] sm:$0x3f]
        %v692 = vld [vmem:[%s501 + $0x130] sm:$0xff]
        %v693 = vld [vmem:[%s501 + $0x138] sm:$0x3f]
        %v694 = vld [vmem:[%s501 + $0x140] sm:$0xff]
        %v695 = vld [vmem:[%s501 + $0x148] sm:$0x3f]
        %v696 = vld [vmem:[%s501 + $0x150] sm:$0xff]
        %v697 = vld [vmem:[%s501 + $0x158] sm:$0x3f]
        %v698 = vld [vmem:[%s501 + $0x160] sm:$0xff]
        %v699 = vld [vmem:[%s501 + $0x168] sm:$0x3f]
        %v700 = vld [vmem:[%s501 + $0x170] sm:$0xff]
        %v701 = vld [vmem:[%s501 + $0x178] sm:$0x3f]
        %v702 = vld [vmem:[%s501 + $0x180] sm:$0xff]
        %v703 = vld [vmem:[%s501 + $0x188] sm:$0x3f]
        %v704 = vld [vmem:[%s501 + $0x190] sm:$0xff]
        %v705 = vld [vmem:[%s501 + $0x198] sm:$0x3f]
        %v706 = vld [vmem:[%s501 + $0x1a0] sm:$0xff]
        %v707 = vld [vmem:[%s501 + $0x1a8] sm:$0x3f]
        %v708 = vld [vmem:[%s501 + $0x1b0] sm:$0xff]
        %v709 = vld [vmem:[%s501 + $0x1b8] sm:$0x3f]
        %s710 = scalar_lea.vmem [#allocation2], 48
        %711 = vst [vmem:[%s710 + $0x2] sm:$0xff] %v654
        %712 = vst [vmem:[%s710 + $0xa] sm:$0x3f] %v655
        %713 = vst [vmem:[%s710 + $0x1a] sm:$0xff] %v656
        %714 = vst [vmem:[%s710 + $0x22] sm:$0x3f] %v657
        %715 = vst [vmem:[%s710 + $0x32] sm:$0xff] %v658
        %716 = vst [vmem:[%s710 + $0x3a] sm:$0x3f] %v659
        %717 = vst [vmem:[%s710 + $0x4a] sm:$0xff] %v660
        %718 = vst [vmem:[%s710 + $0x52] sm:$0x3f] %v661
        %719 = vst [vmem:[%s710 + $0x62] sm:$0xff] %v662
        %720 = vst [vmem:[%s710 + $0x6a] sm:$0x3f] %v663
        %721 = vst [vmem:[%s710 + $0x7a] sm:$0xff] %v664
        %722 = vst [vmem:[%s710 + $0x82] sm:$0x3f] %v665
        %723 = vst [vmem:[%s710 + $0x92] sm:$0xff] %v666
        %724 = vst [vmem:[%s710 + $0x9a] sm:$0x3f] %v667
        %725 = vst [vmem:[%s710 + $0xaa] sm:$0xff] %v668
        %726 = vst [vmem:[%s710 + $0xb2] sm:$0x3f] %v669
        %727 = vst [vmem:[%s710 + $0xc2] sm:$0xff] %v670
        %728 = vst [vmem:[%s710 + $0xca] sm:$0x3f] %v671
        %729 = vst [vmem:[%s710 + $0xda] sm:$0xff] %v672
        %730 = vst [vmem:[%s710 + $0xe2] sm:$0x3f] %v673
        %731 = vst [vmem:[%s710 + $0xf2] sm:$0xff] %v674
        %732 = vst [vmem:[%s710 + $0xfa] sm:$0x3f] %v675
        %733 = vst [vmem:[%s710 + $0x10a] sm:$0xff] %v676
        %734 = vst [vmem:[%s710 + $0x112] sm:$0x3f] %v677
        %735 = vst [vmem:[%s710 + $0x122] sm:$0xff] %v678
        %736 = vst [vmem:[%s710 + $0x12a] sm:$0x3f] %v679
        %737 = vst [vmem:[%s710 + $0x13a] sm:$0xff] %v680
        %738 = vst [vmem:[%s710 + $0x142] sm:$0x3f] %v681
        %739 = vst [vmem:[%s710 + $0x1b2] sm:$0xff] %v682
        %740 = vst [vmem:[%s710 + $0x1ba] sm:$0x3f] %v683
        %741 = vst [vmem:[%s710 + $0x1ca] sm:$0xff] %v684
        %742 = vst [vmem:[%s710 + $0x1d2] sm:$0x3f] %v685
        %743 = vst [vmem:[%s710 + $0x1e2] sm:$0xff] %v686
        %744 = vst [vmem:[%s710 + $0x1ea] sm:$0x3f] %v687
        %745 = vst [vmem:[%s710 + $0x1fa] sm:$0xff] %v688
        %746 = vst [vmem:[%s710 + $0x202] sm:$0x3f] %v689
        %747 = vst [vmem:[%s710 + $0x212] sm:$0xff] %v690
        %748 = vst [vmem:[%s710 + $0x21a] sm:$0x3f] %v691
        %749 = vst [vmem:[%s710 + $0x22a] sm:$0xff] %v692
        %750 = vst [vmem:[%s710 + $0x232] sm:$0x3f] %v693
        %751 = vst [vmem:[%s710 + $0x242] sm:$0xff] %v694
        %752 = vst [vmem:[%s710 + $0x24a] sm:$0x3f] %v695
        %753 = vst [vmem:[%s710 + $0x25a] sm:$0xff] %v696
        %754 = vst [vmem:[%s710 + $0x262] sm:$0x3f] %v697
        %755 = vst [vmem:[%s710 + $0x272] sm:$0xff] %v698
        %756 = vst [vmem:[%s710 + $0x27a] sm:$0x3f] %v699
        %757 = vst [vmem:[%s710 + $0x28a] sm:$0xff] %v700
        %758 = vst [vmem:[%s710 + $0x292] sm:$0x3f] %v701
        %759 = vst [vmem:[%s710 + $0x2a2] sm:$0xff] %v702
        %760 = vst [vmem:[%s710 + $0x2aa] sm:$0x3f] %v703
        %761 = vst [vmem:[%s710 + $0x2ba] sm:$0xff] %v704
        %762 = vst [vmem:[%s710 + $0x2c2] sm:$0x3f] %v705
        %763 = vst [vmem:[%s710 + $0x2d2] sm:$0xff] %v706
        %764 = vst [vmem:[%s710 + $0x2da] sm:$0x3f] %v707
        %765 = vst [vmem:[%s710 + $0x2ea] sm:$0xff] %v708
        %766 = vst [vmem:[%s710 + $0x2f2] sm:$0x3f] %v709
        %v767 = vld [vmem:[#allocation2] sm:$0xff]
        %v768 = vld [vmem:[#allocation2 + $0x8] sm:$0x3f]
        %v769 = vld [vmem:[#allocation2 + $0x18] sm:$0xff]
        %v770 = vld [vmem:[#allocation2 + $0x20] sm:$0x3f]
        %v771 = vld [vmem:[#allocation2 + $0x30] sm:$0xff]
        %v772 = vld [vmem:[#allocation2 + $0x38] sm:$0x3f]
        %v773 = vld [vmem:[#allocation2 + $0x48] sm:$0xff]
        %v774 = vld [vmem:[#allocation2 + $0x50] sm:$0x3f]
        %v775 = vld [vmem:[#allocation2 + $0x60] sm:$0xff]
        %v776 = vld [vmem:[#allocation2 + $0x68] sm:$0x3f]
        %v777 = vld [vmem:[#allocation2 + $0x78] sm:$0xff]
        %v778 = vld [vmem:[#allocation2 + $0x80] sm:$0x3f]
        %v779 = vld [vmem:[#allocation2 + $0x90] sm:$0xff]
        %v780 = vld [vmem:[#allocation2 + $0x98] sm:$0x3f]
        %v781 = vld [vmem:[#allocation2 + $0xa8] sm:$0xff]
        %v782 = vld [vmem:[#allocation2 + $0xb0] sm:$0x3f]
        %v783 = vld [vmem:[#allocation2 + $0xc0] sm:$0xff]
        %v784 = vld [vmem:[#allocation2 + $0xc8] sm:$0x3f]
        %v785 = vld [vmem:[#allocation2 + $0xd8] sm:$0xff]
        %v786 = vld [vmem:[#allocation2 + $0xe0] sm:$0x3f]
        %v787 = vld [vmem:[#allocation2 + $0xf0] sm:$0xff]
        %v788 = vld [vmem:[#allocation2 + $0xf8] sm:$0x3f]
        %v789 = vld [vmem:[#allocation2 + $0x108] sm:$0xff]
        %v790 = vld [vmem:[#allocation2 + $0x110] sm:$0x3f]
        %v791 = vld [vmem:[#allocation2 + $0x120] sm:$0xff]
        %v792 = vld [vmem:[#allocation2 + $0x128] sm:$0x3f]
        %v793 = vld [vmem:[#allocation2 + $0x138] sm:$0xff]
        %v794 = vld [vmem:[#allocation2 + $0x140] sm:$0x3f]
        %v795 = vld [vmem:[#allocation2 + $0x150] sm:$0xff]
        %v796 = vld [vmem:[#allocation2 + $0x158] sm:$0x3f]
        %v797 = vld [vmem:[#allocation2 + $0x168] sm:$0xff]
        %v798 = vld [vmem:[#allocation2 + $0x170] sm:$0x3f]
        %v799 = vld [vmem:[#allocation2 + $0x180] sm:$0xff]
        %v800 = vld [vmem:[#allocation2 + $0x188] sm:$0x3f]
        %v801 = vld [vmem:[#allocation2 + $0x198] sm:$0xff]
        %v802 = vld [vmem:[#allocation2 + $0x1a0] sm:$0x3f]
        %v803 = vld [vmem:[%s508] sm:$0x1]
        %v804 = vperm.slane %v803, 0
        %v805 = vmul.f32 %v767, %v804
        %v806 = vmul.f32 %v768, %v804
        %v807 = vmul.f32 %v769, %v804
        %v808 = vmul.f32 %v770, %v804
        %v809 = vmul.f32 %v771, %v804
        %v810 = vmul.f32 %v772, %v804
        %v811 = vmul.f32 %v773, %v804
        %v812 = vmul.f32 %v774, %v804
        %v813 = vmul.f32 %v775, %v804
        %v814 = vmul.f32 %v776, %v804
        %v815 = vmul.f32 %v777, %v804
        %v816 = vmul.f32 %v778, %v804
        %v817 = vmul.f32 %v779, %v804
        %v818 = vmul.f32 %v780, %v804
        %v819 = vmul.f32 %v781, %v804
        %v820 = vmul.f32 %v782, %v804
        %v821 = vmul.f32 %v783, %v804
        %v822 = vmul.f32 %v784, %v804
        %v823 = vmul.f32 %v785, %v804
        %v824 = vmul.f32 %v786, %v804
        %v825 = vmul.f32 %v787, %v804
        %v826 = vmul.f32 %v788, %v804
        %v827 = vmul.f32 %v789, %v804
        %v828 = vmul.f32 %v790, %v804
        %v829 = vmul.f32 %v791, %v804
        %v830 = vmul.f32 %v792, %v804
        %v831 = vmul.f32 %v793, %v804
        %v832 = vmul.f32 %v794, %v804
        %s833 = scalar_lea.vmem %s508, 8 [#allocation4]
        %v834 = vld [vmem:[%s833] sm:$0x1]
        %v835 = vperm.slane %v834, 0
        %v836 = vmul.f32 %v769, %v835
        %v837 = vmul.f32 %v770, %v835
        %v838 = vmul.f32 %v771, %v835
        %v839 = vmul.f32 %v772, %v835
        %v840 = vmul.f32 %v773, %v835
        %v841 = vmul.f32 %v774, %v835
        %v842 = vmul.f32 %v775, %v835
        %v843 = vmul.f32 %v776, %v835
        %v844 = vmul.f32 %v777, %v835
        %v845 = vmul.f32 %v778, %v835
        %v846 = vmul.f32 %v779, %v835
        %v847 = vmul.f32 %v780, %v835
        %v848 = vmul.f32 %v781, %v835
        %v849 = vmul.f32 %v782, %v835
        %v850 = vmul.f32 %v783, %v835
        %v851 = vmul.f32 %v784, %v835
        %v852 = vmul.f32 %v785, %v835
        %v853 = vmul.f32 %v786, %v835
        %v854 = vmul.f32 %v787, %v835
        %v855 = vmul.f32 %v788, %v835
        %v856 = vmul.f32 %v789, %v835
        %v857 = vmul.f32 %v790, %v835
        %v858 = vmul.f32 %v791, %v835
        %v859 = vmul.f32 %v792, %v835
        %v860 = vmul.f32 %v793, %v835
        %v861 = vmul.f32 %v794, %v835
        %v862 = vmul.f32 %v795, %v835
        %v863 = vmul.f32 %v796, %v835
        %v864 = vadd.f32 %v805, %v836
        %v865 = vadd.f32 %v806, %v837
        %v866 = vadd.f32 %v807, %v838
        %v867 = vadd.f32 %v808, %v839
        %v868 = vadd.f32 %v809, %v840
        %v869 = vadd.f32 %v810, %v841
        %v870 = vadd.f32 %v811, %v842
        %v871 = vadd.f32 %v812, %v843
        %v872 = vadd.f32 %v813, %v844
        %v873 = vadd.f32 %v814, %v845
        %v874 = vadd.f32 %v815, %v846
        %v875 = vadd.f32 %v816, %v847
        %v876 = vadd.f32 %v817, %v848
        %v877 = vadd.f32 %v818, %v849
        %v878 = vadd.f32 %v819, %v850
        %v879 = vadd.f32 %v820, %v851
        %v880 = vadd.f32 %v821, %v852
        %v881 = vadd.f32 %v822, %v853
        %v882 = vadd.f32 %v823, %v854
        %v883 = vadd.f32 %v824, %v855
        %v884 = vadd.f32 %v825, %v856
        %v885 = vadd.f32 %v826, %v857
        %v886 = vadd.f32 %v827, %v858
        %v887 = vadd.f32 %v828, %v859
        %v888 = vadd.f32 %v829, %v860
        %v889 = vadd.f32 %v830, %v861
        %v890 = vadd.f32 %v831, %v862
        %v891 = vadd.f32 %v832, %v863
        %s892 = scalar_lea.vmem %s508, 16 [#allocation4]
        %v893 = vld [vmem:[%s892] sm:$0x1]
        %v894 = vperm.slane %v893, 0
        %v895 = vmul.f32 %v771, %v894
        %v896 = vmul.f32 %v772, %v894
        %v897 = vmul.f32 %v773, %v894
        %v898 = vmul.f32 %v774, %v894
        %v899 = vmul.f32 %v775, %v894
        %v900 = vmul.f32 %v776, %v894
        %v901 = vmul.f32 %v777, %v894
        %v902 = vmul.f32 %v778, %v894
        %v903 = vmul.f32 %v779, %v894
        %v904 = vmul.f32 %v780, %v894
        %v905 = vmul.f32 %v781, %v894
        %v906 = vmul.f32 %v782, %v894
        %v907 = vmul.f32 %v783, %v894
        %v908 = vmul.f32 %v784, %v894
        %v909 = vmul.f32 %v785, %v894
        %v910 = vmul.f32 %v786, %v894
        %v911 = vmul.f32 %v787, %v894
        %v912 = vmul.f32 %v788, %v894
        %v913 = vmul.f32 %v789, %v894
        %v914 = vmul.f32 %v790, %v894
        %v915 = vmul.f32 %v791, %v894
        %v916 = vmul.f32 %v792, %v894
        %v917 = vmul.f32 %v793, %v894
        %v918 = vmul.f32 %v794, %v894
        %v919 = vmul.f32 %v795, %v894
        %v920 = vmul.f32 %v796, %v894
        %v921 = vmul.f32 %v797, %v894
        %v922 = vmul.f32 %v798, %v894
        %v923 = vadd.f32 %v864, %v895
        %v924 = vadd.f32 %v865, %v896
        %v925 = vadd.f32 %v866, %v897
        %v926 = vadd.f32 %v867, %v898
        %v927 = vadd.f32 %v868, %v899
        %v928 = vadd.f32 %v869, %v900
        %v929 = vadd.f32 %v870, %v901
        %v930 = vadd.f32 %v871, %v902
        %v931 = vadd.f32 %v872, %v903
        %v932 = vadd.f32 %v873, %v904
        %v933 = vadd.f32 %v874, %v905
        %v934 = vadd.f32 %v875, %v906
        %v935 = vadd.f32 %v876, %v907
        %v936 = vadd.f32 %v877, %v908
        %v937 = vadd.f32 %v878, %v909
        %v938 = vadd.f32 %v879, %v910
        %v939 = vadd.f32 %v880, %v911
        %v940 = vadd.f32 %v881, %v912
        %v941 = vadd.f32 %v882, %v913
        %v942 = vadd.f32 %v883, %v914
        %v943 = vadd.f32 %v884, %v915
        %v944 = vadd.f32 %v885, %v916
        %v945 = vadd.f32 %v886, %v917
        %v946 = vadd.f32 %v887, %v918
        %v947 = vadd.f32 %v888, %v919
        %v948 = vadd.f32 %v889, %v920
        %v949 = vadd.f32 %v890, %v921
        %v950 = vadd.f32 %v891, %v922
        %s951 = scalar_lea.vmem %s508, 24 [#allocation4]
        %v952 = vld [vmem:[%s951] sm:$0x1]
        %v953 = vperm.slane %v952, 0
        %v954 = vmul.f32 %v773, %v953
        %v955 = vmul.f32 %v774, %v953
        %v956 = vmul.f32 %v775, %v953
        %v957 = vmul.f32 %v776, %v953
        %v958 = vmul.f32 %v777, %v953
        %v959 = vmul.f32 %v778, %v953
        %v960 = vmul.f32 %v779, %v953
        %v961 = vmul.f32 %v780, %v953
        %v962 = vmul.f32 %v781, %v953
        %v963 = vmul.f32 %v782, %v953
        %v964 = vmul.f32 %v783, %v953
        %v965 = vmul.f32 %v784, %v953
        %v966 = vmul.f32 %v785, %v953
        %v967 = vmul.f32 %v786, %v953
        %v968 = vmul.f32 %v787, %v953
        %v969 = vmul.f32 %v788, %v953
        %v970 = vmul.f32 %v789, %v953
        %v971 = vmul.f32 %v790, %v953
        %v972 = vmul.f32 %v791, %v953
        %v973 = vmul.f32 %v792, %v953
        %v974 = vmul.f32 %v793, %v953
        %v975 = vmul.f32 %v794, %v953
        %v976 = vmul.f32 %v795, %v953
        %v977 = vmul.f32 %v796, %v953
        %v978 = vmul.f32 %v797, %v953
        %v979 = vmul.f32 %v798, %v953
        %v980 = vmul.f32 %v799, %v953
        %v981 = vmul.f32 %v800, %v953
        %v982 = vadd.f32 %v923, %v954
        %v983 = vadd.f32 %v924, %v955
        %v984 = vadd.f32 %v925, %v956
        %v985 = vadd.f32 %v926, %v957
        %v986 = vadd.f32 %v927, %v958
        %v987 = vadd.f32 %v928, %v959
        %v988 = vadd.f32 %v929, %v960
        %v989 = vadd.f32 %v930, %v961
        %v990 = vadd.f32 %v931, %v962
        %v991 = vadd.f32 %v932, %v963
        %v992 = vadd.f32 %v933, %v964
        %v993 = vadd.f32 %v934, %v965
        %v994 = vadd.f32 %v935, %v966
        %v995 = vadd.f32 %v936, %v967
        %v996 = vadd.f32 %v937, %v968
        %v997 = vadd.f32 %v938, %v969
        %v998 = vadd.f32 %v939, %v970
        %v999 = vadd.f32 %v940, %v971
        %v1000 = vadd.f32 %v941, %v972
        %v1001 = vadd.f32 %v942, %v973
        %v1002 = vadd.f32 %v943, %v974
        %v1003 = vadd.f32 %v944, %v975
        %v1004 = vadd.f32 %v945, %v976
        %v1005 = vadd.f32 %v946, %v977
        %v1006 = vadd.f32 %v947, %v978
        %v1007 = vadd.f32 %v948, %v979
        %v1008 = vadd.f32 %v949, %v980
        %v1009 = vadd.f32 %v950, %v981
        %s1010 = scalar_lea.vmem %s508, 32 [#allocation4]
        %v1011 = vld [vmem:[%s1010] sm:$0x1]
        %v1012 = vperm.slane %v1011, 0
        %v1013 = vmul.f32 %v775, %v1012
        %v1014 = vmul.f32 %v776, %v1012
        %v1015 = vmul.f32 %v777, %v1012
        %v1016 = vmul.f32 %v778, %v1012
        %v1017 = vmul.f32 %v779, %v1012
        %v1018 = vmul.f32 %v780, %v1012
        %v1019 = vmul.f32 %v781, %v1012
        %v1020 = vmul.f32 %v782, %v1012
        %v1021 = vmul.f32 %v783, %v1012
        %v1022 = vmul.f32 %v784, %v1012
        %v1023 = vmul.f32 %v785, %v1012
        %v1024 = vmul.f32 %v786, %v1012
        %v1025 = vmul.f32 %v787, %v1012
        %v1026 = vmul.f32 %v788, %v1012
        %v1027 = vmul.f32 %v789, %v1012
        %v1028 = vmul.f32 %v790, %v1012
        %v1029 = vmul.f32 %v791, %v1012
        %v1030 = vmul.f32 %v792, %v1012
        %v1031 = vmul.f32 %v793, %v1012
        %v1032 = vmul.f32 %v794, %v1012
        %v1033 = vmul.f32 %v795, %v1012
        %v1034 = vmul.f32 %v796, %v1012
        %v1035 = vmul.f32 %v797, %v1012
        %v1036 = vmul.f32 %v798, %v1012
        %v1037 = vmul.f32 %v799, %v1012
        %v1038 = vmul.f32 %v800, %v1012
        %v1039 = vmul.f32 %v801, %v1012
        %v1040 = vmul.f32 %v802, %v1012
        %v1041 = vadd.f32 %v982, %v1013
        %v1042 = vadd.f32 %v983, %v1014
        %v1043 = vadd.f32 %v984, %v1015
        %v1044 = vadd.f32 %v985, %v1016
        %v1045 = vadd.f32 %v986, %v1017
        %v1046 = vadd.f32 %v987, %v1018
        %v1047 = vadd.f32 %v988, %v1019
        %v1048 = vadd.f32 %v989, %v1020
        %v1049 = vadd.f32 %v990, %v1021
        %v1050 = vadd.f32 %v991, %v1022
        %v1051 = vadd.f32 %v992, %v1023
        %v1052 = vadd.f32 %v993, %v1024
        %v1053 = vadd.f32 %v994, %v1025
        %v1054 = vadd.f32 %v995, %v1026
        %v1055 = vadd.f32 %v996, %v1027
        %v1056 = vadd.f32 %v997, %v1028
        %v1057 = vadd.f32 %v998, %v1029
        %v1058 = vadd.f32 %v999, %v1030
        %v1059 = vadd.f32 %v1000, %v1031
        %v1060 = vadd.f32 %v1001, %v1032
        %v1061 = vadd.f32 %v1002, %v1033
        %v1062 = vadd.f32 %v1003, %v1034
        %v1063 = vadd.f32 %v1004, %v1035
        %v1064 = vadd.f32 %v1005, %v1036
        %v1065 = vadd.f32 %v1006, %v1037
        %v1066 = vadd.f32 %v1007, %v1038
        %v1067 = vadd.f32 %v1008, %v1039
        %v1068 = vadd.f32 %v1009, %v1040
        %v1069 = vld [vmem:[#allocation2 + $0x1] sm:$0xff]
        %v1070 = vld [vmem:[#allocation2 + $0x9] sm:$0x3f]
        %v1071 = vld [vmem:[#allocation2 + $0x19] sm:$0xff]
        %v1072 = vld [vmem:[#allocation2 + $0x21] sm:$0x3f]
        %v1073 = vld [vmem:[#allocation2 + $0x31] sm:$0xff]
        %v1074 = vld [vmem:[#allocation2 + $0x39] sm:$0x3f]
        %v1075 = vld [vmem:[#allocation2 + $0x49] sm:$0xff]
        %v1076 = vld [vmem:[#allocation2 + $0x51] sm:$0x3f]
        %v1077 = vld [vmem:[#allocation2 + $0x61] sm:$0xff]
        %v1078 = vld [vmem:[#allocation2 + $0x69] sm:$0x3f]
        %v1079 = vld [vmem:[#allocation2 + $0x79] sm:$0xff]
        %v1080 = vld [vmem:[#allocation2 + $0x81] sm:$0x3f]
        %v1081 = vld [vmem:[#allocation2 + $0x91] sm:$0xff]
        %v1082 = vld [vmem:[#allocation2 + $0x99] sm:$0x3f]
        %v1083 = vld [vmem:[#allocation2 + $0xa9] sm:$0xff]
        %v1084 = vld [vmem:[#allocation2 + $0xb1] sm:$0x3f]
        %v1085 = vld [vmem:[#allocation2 + $0xc1] sm:$0xff]
        %v1086 = vld [vmem:[#allocation2 + $0xc9] sm:$0x3f]
        %v1087 = vld [vmem:[#allocation2 + $0xd9] sm:$0xff]
        %v1088 = vld [vmem:[#allocation2 + $0xe1] sm:$0x3f]
        %v1089 = vld [vmem:[#allocation2 + $0xf1] sm:$0xff]
        %v1090 = vld [vmem:[#allocation2 + $0xf9] sm:$0x3f]
        %v1091 = vld [vmem:[#allocation2 + $0x109] sm:$0xff]
        %v1092 = vld [vmem:[#allocation2 + $0x111] sm:$0x3f]
        %v1093 = vld [vmem:[#allocation2 + $0x121] sm:$0xff]
        %v1094 = vld [vmem:[#allocation2 + $0x129] sm:$0x3f]
        %v1095 = vld [vmem:[#allocation2 + $0x139] sm:$0xff]
        %v1096 = vld [vmem:[#allocation2 + $0x141] sm:$0x3f]
        %v1097 = vld [vmem:[#allocation2 + $0x151] sm:$0xff]
        %v1098 = vld [vmem:[#allocation2 + $0x159] sm:$0x3f]
        %v1099 = vld [vmem:[#allocation2 + $0x169] sm:$0xff]
        %v1100 = vld [vmem:[#allocation2 + $0x171] sm:$0x3f]
        %v1101 = vld [vmem:[#allocation2 + $0x181] sm:$0xff]
        %v1102 = vld [vmem:[#allocation2 + $0x189] sm:$0x3f]
        %v1103 = vld [vmem:[#allocation2 + $0x199] sm:$0xff]
        %v1104 = vld [vmem:[#allocation2 + $0x1a1] sm:$0x3f]
        %v1105 = vld [vmem:[%s508 + $0x1] sm:$0x1]
        %v1106 = vperm.slane %v1105, 0
        %v1107 = vmul.f32 %v1069, %v1106
        %v1108 = vmul.f32 %v1070, %v1106
        %v1109 = vmul.f32 %v1071, %v1106
        %v1110 = vmul.f32 %v1072, %v1106
        %v1111 = vmul.f32 %v1073, %v1106
        %v1112 = vmul.f32 %v1074, %v1106
        %v1113 = vmul.f32 %v1075, %v1106
        %v1114 = vmul.f32 %v1076, %v1106
        %v1115 = vmul.f32 %v1077, %v1106
        %v1116 = vmul.f32 %v1078, %v1106
        %v1117 = vmul.f32 %v1079, %v1106
        %v1118 = vmul.f32 %v1080, %v1106
        %v1119 = vmul.f32 %v1081, %v1106
        %v1120 = vmul.f32 %v1082, %v1106
        %v1121 = vmul.f32 %v1083, %v1106
        %v1122 = vmul.f32 %v1084, %v1106
        %v1123 = vmul.f32 %v1085, %v1106
        %v1124 = vmul.f32 %v1086, %v1106
        %v1125 = vmul.f32 %v1087, %v1106
        %v1126 = vmul.f32 %v1088, %v1106
        %v1127 = vmul.f32 %v1089, %v1106
        %v1128 = vmul.f32 %v1090, %v1106
        %v1129 = vmul.f32 %v1091, %v1106
        %v1130 = vmul.f32 %v1092, %v1106
        %v1131 = vmul.f32 %v1093, %v1106
        %v1132 = vmul.f32 %v1094, %v1106
        %v1133 = vmul.f32 %v1095, %v1106
        %v1134 = vmul.f32 %v1096, %v1106
        %v1135 = vld [vmem:[%s833 + $0x1] sm:$0x1]
        %v1136 = vperm.slane %v1135, 0
        %v1137 = vmul.f32 %v1071, %v1136
        %v1138 = vmul.f32 %v1072, %v1136
        %v1139 = vmul.f32 %v1073, %v1136
        %v1140 = vmul.f32 %v1074, %v1136
        %v1141 = vmul.f32 %v1075, %v1136
        %v1142 = vmul.f32 %v1076, %v1136
        %v1143 = vmul.f32 %v1077, %v1136
        %v1144 = vmul.f32 %v1078, %v1136
        %v1145 = vmul.f32 %v1079, %v1136
        %v1146 = vmul.f32 %v1080, %v1136
        %v1147 = vmul.f32 %v1081, %v1136
        %v1148 = vmul.f32 %v1082, %v1136
        %v1149 = vmul.f32 %v1083, %v1136
        %v1150 = vmul.f32 %v1084, %v1136
        %v1151 = vmul.f32 %v1085, %v1136
        %v1152 = vmul.f32 %v1086, %v1136
        %v1153 = vmul.f32 %v1087, %v1136
        %v1154 = vmul.f32 %v1088, %v1136
        %v1155 = vmul.f32 %v1089, %v1136
        %v1156 = vmul.f32 %v1090, %v1136
        %v1157 = vmul.f32 %v1091, %v1136
        %v1158 = vmul.f32 %v1092, %v1136
        %v1159 = vmul.f32 %v1093, %v1136
        %v1160 = vmul.f32 %v1094, %v1136
        %v1161 = vmul.f32 %v1095, %v1136
        %v1162 = vmul.f32 %v1096, %v1136
        %v1163 = vmul.f32 %v1097, %v1136
        %v1164 = vmul.f32 %v1098, %v1136
        %v1165 = vadd.f32 %v1107, %v1137
        %v1166 = vadd.f32 %v1108, %v1138
        %v1167 = vadd.f32 %v1109, %v1139
        %v1168 = vadd.f32 %v1110, %v1140
        %v1169 = vadd.f32 %v1111, %v1141
        %v1170 = vadd.f32 %v1112, %v1142
        %v1171 = vadd.f32 %v1113, %v1143
        %v1172 = vadd.f32 %v1114, %v1144
        %v1173 = vadd.f32 %v1115, %v1145
        %v1174 = vadd.f32 %v1116, %v1146
        %v1175 = vadd.f32 %v1117, %v1147
        %v1176 = vadd.f32 %v1118, %v1148
        %v1177 = vadd.f32 %v1119, %v1149
        %v1178 = vadd.f32 %v1120, %v1150
        %v1179 = vadd.f32 %v1121, %v1151
        %v1180 = vadd.f32 %v1122, %v1152
        %v1181 = vadd.f32 %v1123, %v1153
        %v1182 = vadd.f32 %v1124, %v1154
        %v1183 = vadd.f32 %v1125, %v1155
        %v1184 = vadd.f32 %v1126, %v1156
        %v1185 = vadd.f32 %v1127, %v1157
        %v1186 = vadd.f32 %v1128, %v1158
        %v1187 = vadd.f32 %v1129, %v1159
        %v1188 = vadd.f32 %v1130, %v1160
        %v1189 = vadd.f32 %v1131, %v1161
        %v1190 = vadd.f32 %v1132, %v1162
        %v1191 = vadd.f32 %v1133, %v1163
        %v1192 = vadd.f32 %v1134, %v1164
        %v1193 = vld [vmem:[%s892 + $0x1] sm:$0x1]
        %v1194 = vperm.slane %v1193, 0
        %v1195 = vmul.f32 %v1073, %v1194
        %v1196 = vmul.f32 %v1074, %v1194
        %v1197 = vmul.f32 %v1075, %v1194
        %v1198 = vmul.f32 %v1076, %v1194
        %v1199 = vmul.f32 %v1077, %v1194
        %v1200 = vmul.f32 %v1078, %v1194
        %v1201 = vmul.f32 %v1079, %v1194
        %v1202 = vmul.f32 %v1080, %v1194
        %v1203 = vmul.f32 %v1081, %v1194
        %v1204 = vmul.f32 %v1082, %v1194
        %v1205 = vmul.f32 %v1083, %v1194
        %v1206 = vmul.f32 %v1084, %v1194
        %v1207 = vmul.f32 %v1085, %v1194
        %v1208 = vmul.f32 %v1086, %v1194
        %v1209 = vmul.f32 %v1087, %v1194
        %v1210 = vmul.f32 %v1088, %v1194
        %v1211 = vmul.f32 %v1089, %v1194
        %v1212 = vmul.f32 %v1090, %v1194
        %v1213 = vmul.f32 %v1091, %v1194
        %v1214 = vmul.f32 %v1092, %v1194
        %v1215 = vmul.f32 %v1093, %v1194
        %v1216 = vmul.f32 %v1094, %v1194
        %v1217 = vmul.f32 %v1095, %v1194
        %v1218 = vmul.f32 %v1096, %v1194
        %v1219 = vmul.f32 %v1097, %v1194
        %v1220 = vmul.f32 %v1098, %v1194
        %v1221 = vmul.f32 %v1099, %v1194
        %v1222 = vmul.f32 %v1100, %v1194
        %v1223 = vadd.f32 %v1165, %v1195
        %v1224 = vadd.f32 %v1166, %v1196
        %v1225 = vadd.f32 %v1167, %v1197
        %v1226 = vadd.f32 %v1168, %v1198
        %v1227 = vadd.f32 %v1169, %v1199
        %v1228 = vadd.f32 %v1170, %v1200
        %v1229 = vadd.f32 %v1171, %v1201
        %v1230 = vadd.f32 %v1172, %v1202
        %v1231 = vadd.f32 %v1173, %v1203
        %v1232 = vadd.f32 %v1174, %v1204
        %v1233 = vadd.f32 %v1175, %v1205
        %v1234 = vadd.f32 %v1176, %v1206
        %v1235 = vadd.f32 %v1177, %v1207
        %v1236 = vadd.f32 %v1178, %v1208
        %v1237 = vadd.f32 %v1179, %v1209
        %v1238 = vadd.f32 %v1180, %v1210
        %v1239 = vadd.f32 %v1181, %v1211
        %v1240 = vadd.f32 %v1182, %v1212
        %v1241 = vadd.f32 %v1183, %v1213
        %v1242 = vadd.f32 %v1184, %v1214
        %v1243 = vadd.f32 %v1185, %v1215
        %v1244 = vadd.f32 %v1186, %v1216
        %v1245 = vadd.f32 %v1187, %v1217
        %v1246 = vadd.f32 %v1188, %v1218
        %v1247 = vadd.f32 %v1189, %v1219
        %v1248 = vadd.f32 %v1190, %v1220
        %v1249 = vadd.f32 %v1191, %v1221
        %v1250 = vadd.f32 %v1192, %v1222
        %v1251 = vld [vmem:[%s951 + $0x1] sm:$0x1]
        %v1252 = vperm.slane %v1251, 0
        %v1253 = vmul.f32 %v1075, %v1252
        %v1254 = vmul.f32 %v1076, %v1252
        %v1255 = vmul.f32 %v1077, %v1252
        %v1256 = vmul.f32 %v1078, %v1252
        %v1257 = vmul.f32 %v1079, %v1252
        %v1258 = vmul.f32 %v1080, %v1252
        %v1259 = vmul.f32 %v1081, %v1252
        %v1260 = vmul.f32 %v1082, %v1252
        %v1261 = vmul.f32 %v1083, %v1252
        %v1262 = vmul.f32 %v1084, %v1252
        %v1263 = vmul.f32 %v1085, %v1252
        %v1264 = vmul.f32 %v1086, %v1252
        %v1265 = vmul.f32 %v1087, %v1252
        %v1266 = vmul.f32 %v1088, %v1252
        %v1267 = vmul.f32 %v1089, %v1252
        %v1268 = vmul.f32 %v1090, %v1252
        %v1269 = vmul.f32 %v1091, %v1252
        %v1270 = vmul.f32 %v1092, %v1252
        %v1271 = vmul.f32 %v1093, %v1252
        %v1272 = vmul.f32 %v1094, %v1252
        %v1273 = vmul.f32 %v1095, %v1252
        %v1274 = vmul.f32 %v1096, %v1252
        %v1275 = vmul.f32 %v1097, %v1252
        %v1276 = vmul.f32 %v1098, %v1252
        %v1277 = vmul.f32 %v1099, %v1252
        %v1278 = vmul.f32 %v1100, %v1252
        %v1279 = vmul.f32 %v1101, %v1252
        %v1280 = vmul.f32 %v1102, %v1252
        %v1281 = vadd.f32 %v1223, %v1253
        %v1282 = vadd.f32 %v1224, %v1254
        %v1283 = vadd.f32 %v1225, %v1255
        %v1284 = vadd.f32 %v1226, %v1256
        %v1285 = vadd.f32 %v1227, %v1257
        %v1286 = vadd.f32 %v1228, %v1258
        %v1287 = vadd.f32 %v1229, %v1259
        %v1288 = vadd.f32 %v1230, %v1260
        %v1289 = vadd.f32 %v1231, %v1261
        %v1290 = vadd.f32 %v1232, %v1262
        %v1291 = vadd.f32 %v1233, %v1263
        %v1292 = vadd.f32 %v1234, %v1264
        %v1293 = vadd.f32 %v1235, %v1265
        %v1294 = vadd.f32 %v1236, %v1266
        %v1295 = vadd.f32 %v1237, %v1267
        %v1296 = vadd.f32 %v1238, %v1268
        %v1297 = vadd.f32 %v1239, %v1269
        %v1298 = vadd.f32 %v1240, %v1270
        %v1299 = vadd.f32 %v1241, %v1271
        %v1300 = vadd.f32 %v1242, %v1272
        %v1301 = vadd.f32 %v1243, %v1273
        %v1302 = vadd.f32 %v1244, %v1274
        %v1303 = vadd.f32 %v1245, %v1275
        %v1304 = vadd.f32 %v1246, %v1276
        %v1305 = vadd.f32 %v1247, %v1277
        %v1306 = vadd.f32 %v1248, %v1278
        %v1307 = vadd.f32 %v1249, %v1279
        %v1308 = vadd.f32 %v1250, %v1280
        %v1309 = vld [vmem:[%s1010 + $0x1] sm:$0x1]
        %v1310 = vperm.slane %v1309, 0
        %v1311 = vmul.f32 %v1077, %v1310
        %v1312 = vmul.f32 %v1078, %v1310
        %v1313 = vmul.f32 %v1079, %v1310
        %v1314 = vmul.f32 %v1080, %v1310
        %v1315 = vmul.f32 %v1081, %v1310
        %v1316 = vmul.f32 %v1082, %v1310
        %v1317 = vmul.f32 %v1083, %v1310
        %v1318 = vmul.f32 %v1084, %v1310
        %v1319 = vmul.f32 %v1085, %v1310
        %v1320 = vmul.f32 %v1086, %v1310
        %v1321 = vmul.f32 %v1087, %v1310
        %v1322 = vmul.f32 %v1088, %v1310
        %v1323 = vmul.f32 %v1089, %v1310
        %v1324 = vmul.f32 %v1090, %v1310
        %v1325 = vmul.f32 %v1091, %v1310
        %v1326 = vmul.f32 %v1092, %v1310
        %v1327 = vmul.f32 %v1093, %v1310
        %v1328 = vmul.f32 %v1094, %v1310
        %v1329 = vmul.f32 %v1095, %v1310
        %v1330 = vmul.f32 %v1096, %v1310
        %v1331 = vmul.f32 %v1097, %v1310
        %v1332 = vmul.f32 %v1098, %v1310
        %v1333 = vmul.f32 %v1099, %v1310
        %v1334 = vmul.f32 %v1100, %v1310
        %v1335 = vmul.f32 %v1101, %v1310
        %v1336 = vmul.f32 %v1102, %v1310
        %v1337 = vmul.f32 %v1103, %v1310
        %v1338 = vmul.f32 %v1104, %v1310
        %v1339 = vadd.f32 %v1281, %v1311
        %v1340 = vadd.f32 %v1282, %v1312
        %v1341 = vadd.f32 %v1283, %v1313
        %v1342 = vadd.f32 %v1284, %v1314
        %v1343 = vadd.f32 %v1285, %v1315
        %v1344 = vadd.f32 %v1286, %v1316
        %v1345 = vadd.f32 %v1287, %v1317
        %v1346 = vadd.f32 %v1288, %v1318
        %v1347 = vadd.f32 %v1289, %v1319
        %v1348 = vadd.f32 %v1290, %v1320
        %v1349 = vadd.f32 %v1291, %v1321
        %v1350 = vadd.f32 %v1292, %v1322
        %v1351 = vadd.f32 %v1293, %v1323
        %v1352 = vadd.f32 %v1294, %v1324
        %v1353 = vadd.f32 %v1295, %v1325
        %v1354 = vadd.f32 %v1296, %v1326
        %v1355 = vadd.f32 %v1297, %v1327
        %v1356 = vadd.f32 %v1298, %v1328
        %v1357 = vadd.f32 %v1299, %v1329
        %v1358 = vadd.f32 %v1300, %v1330
        %v1359 = vadd.f32 %v1301, %v1331
        %v1360 = vadd.f32 %v1302, %v1332
        %v1361 = vadd.f32 %v1303, %v1333
        %v1362 = vadd.f32 %v1304, %v1334
        %v1363 = vadd.f32 %v1305, %v1335
        %v1364 = vadd.f32 %v1306, %v1336
        %v1365 = vadd.f32 %v1307, %v1337
        %v1366 = vadd.f32 %v1308, %v1338
        %v1367 = vadd.f32 %v1041, %v1339
        %v1368 = vadd.f32 %v1042, %v1340
        %v1369 = vadd.f32 %v1043, %v1341
        %v1370 = vadd.f32 %v1044, %v1342
        %v1371 = vadd.f32 %v1045, %v1343
        %v1372 = vadd.f32 %v1046, %v1344
        %v1373 = vadd.f32 %v1047, %v1345
        %v1374 = vadd.f32 %v1048, %v1346
        %v1375 = vadd.f32 %v1049, %v1347
        %v1376 = vadd.f32 %v1050, %v1348
        %v1377 = vadd.f32 %v1051, %v1349
        %v1378 = vadd.f32 %v1052, %v1350
        %v1379 = vadd.f32 %v1053, %v1351
        %v1380 = vadd.f32 %v1054, %v1352
        %v1381 = vadd.f32 %v1055, %v1353
        %v1382 = vadd.f32 %v1056, %v1354
        %v1383 = vadd.f32 %v1057, %v1355
        %v1384 = vadd.f32 %v1058, %v1356
        %v1385 = vadd.f32 %v1059, %v1357
        %v1386 = vadd.f32 %v1060, %v1358
        %v1387 = vadd.f32 %v1061, %v1359
        %v1388 = vadd.f32 %v1062, %v1360
        %v1389 = vadd.f32 %v1063, %v1361
        %v1390 = vadd.f32 %v1064, %v1362
        %v1391 = vadd.f32 %v1065, %v1363
        %v1392 = vadd.f32 %v1066, %v1364
        %v1393 = vadd.f32 %v1067, %v1365
        %v1394 = vadd.f32 %v1068, %v1366
        %v1395 = vld [vmem:[#allocation2 + $0x2] sm:$0xff]
        %v1396 = vld [vmem:[#allocation2 + $0xa] sm:$0x3f]
        %v1397 = vld [vmem:[#allocation2 + $0x1a] sm:$0xff]
        %v1398 = vld [vmem:[#allocation2 + $0x22] sm:$0x3f]
        %v1399 = vld [vmem:[#allocation2 + $0x32] sm:$0xff]
        %v1400 = vld [vmem:[#allocation2 + $0x3a] sm:$0x3f]
        %v1401 = vld [vmem:[#allocation2 + $0x4a] sm:$0xff]
        %v1402 = vld [vmem:[#allocation2 + $0x52] sm:$0x3f]
        %v1403 = vld [vmem:[#allocation2 + $0x62] sm:$0xff]
        %v1404 = vld [vmem:[#allocation2 + $0x6a] sm:$0x3f]
        %v1405 = vld [vmem:[#allocation2 + $0x7a] sm:$0xff]
        %v1406 = vld [vmem:[#allocation2 + $0x82] sm:$0x3f]
        %v1407 = vld [vmem:[#allocation2 + $0x92] sm:$0xff]
        %v1408 = vld [vmem:[#allocation2 + $0x9a] sm:$0x3f]
        %v1409 = vld [vmem:[#allocation2 + $0xaa] sm:$0xff]
        %v1410 = vld [vmem:[#allocation2 + $0xb2] sm:$0x3f]
        %v1411 = vld [vmem:[#allocation2 + $0xc2] sm:$0xff]
        %v1412 = vld [vmem:[#allocation2 + $0xca] sm:$0x3f]
        %v1413 = vld [vmem:[#allocation2 + $0xda] sm:$0xff]
        %v1414 = vld [vmem:[#allocation2 + $0xe2] sm:$0x3f]
        %v1415 = vld [vmem:[#allocation2 + $0xf2] sm:$0xff]
        %v1416 = vld [vmem:[#allocation2 + $0xfa] sm:$0x3f]
        %v1417 = vld [vmem:[#allocation2 + $0x10a] sm:$0xff]
        %v1418 = vld [vmem:[#allocation2 + $0x112] sm:$0x3f]
        %v1419 = vld [vmem:[#allocation2 + $0x122] sm:$0xff]
        %v1420 = vld [vmem:[#allocation2 + $0x12a] sm:$0x3f]
        %v1421 = vld [vmem:[#allocation2 + $0x13a] sm:$0xff]
        %v1422 = vld [vmem:[#allocation2 + $0x142] sm:$0x3f]
        %v1423 = vld [vmem:[#allocation2 + $0x152] sm:$0xff]
        %v1424 = vld [vmem:[#allocation2 + $0x15a] sm:$0x3f]
        %v1425 = vld [vmem:[#allocation2 + $0x16a] sm:$0xff]
        %v1426 = vld [vmem:[#allocation2 + $0x172] sm:$0x3f]
        %v1427 = vld [vmem:[#allocation2 + $0x182] sm:$0xff]
        %v1428 = vld [vmem:[#allocation2 + $0x18a] sm:$0x3f]
        %v1429 = vld [vmem:[#allocation2 + $0x19a] sm:$0xff]
        %v1430 = vld [vmem:[#allocation2 + $0x1a2] sm:$0x3f]
        %v1431 = vld [vmem:[%s508 + $0x2] sm:$0x1]
        %v1432 = vperm.slane %v1431, 0
        %v1433 = vmul.f32 %v1395, %v1432
        %v1434 = vmul.f32 %v1396, %v1432
        %v1435 = vmul.f32 %v1397, %v1432
        %v1436 = vmul.f32 %v1398, %v1432
        %v1437 = vmul.f32 %v1399, %v1432
        %v1438 = vmul.f32 %v1400, %v1432
        %v1439 = vmul.f32 %v1401, %v1432
        %v1440 = vmul.f32 %v1402, %v1432
        %v1441 = vmul.f32 %v1403, %v1432
        %v1442 = vmul.f32 %v1404, %v1432
        %v1443 = vmul.f32 %v1405, %v1432
        %v1444 = vmul.f32 %v1406, %v1432
        %v1445 = vmul.f32 %v1407, %v1432
        %v1446 = vmul.f32 %v1408, %v1432
        %v1447 = vmul.f32 %v1409, %v1432
        %v1448 = vmul.f32 %v1410, %v1432
        %v1449 = vmul.f32 %v1411, %v1432
        %v1450 = vmul.f32 %v1412, %v1432
        %v1451 = vmul.f32 %v1413, %v1432
        %v1452 = vmul.f32 %v1414, %v1432
        %v1453 = vmul.f32 %v1415, %v1432
        %v1454 = vmul.f32 %v1416, %v1432
        %v1455 = vmul.f32 %v1417, %v1432
        %v1456 = vmul.f32 %v1418, %v1432
        %v1457 = vmul.f32 %v1419, %v1432
        %v1458 = vmul.f32 %v1420, %v1432
        %v1459 = vmul.f32 %v1421, %v1432
        %v1460 = vmul.f32 %v1422, %v1432
        %v1461 = vld [vmem:[%s833 + $0x2] sm:$0x1]
        %v1462 = vperm.slane %v1461, 0
        %v1463 = vmul.f32 %v1397, %v1462
        %v1464 = vmul.f32 %v1398, %v1462
        %v1465 = vmul.f32 %v1399, %v1462
        %v1466 = vmul.f32 %v1400, %v1462
        %v1467 = vmul.f32 %v1401, %v1462
        %v1468 = vmul.f32 %v1402, %v1462
        %v1469 = vmul.f32 %v1403, %v1462
        %v1470 = vmul.f32 %v1404, %v1462
        %v1471 = vmul.f32 %v1405, %v1462
        %v1472 = vmul.f32 %v1406, %v1462
        %v1473 = vmul.f32 %v1407, %v1462
        %v1474 = vmul.f32 %v1408, %v1462
        %v1475 = vmul.f32 %v1409, %v1462
        %v1476 = vmul.f32 %v1410, %v1462
        %v1477 = vmul.f32 %v1411, %v1462
        %v1478 = vmul.f32 %v1412, %v1462
        %v1479 = vmul.f32 %v1413, %v1462
        %v1480 = vmul.f32 %v1414, %v1462
        %v1481 = vmul.f32 %v1415, %v1462
        %v1482 = vmul.f32 %v1416, %v1462
        %v1483 = vmul.f32 %v1417, %v1462
        %v1484 = vmul.f32 %v1418, %v1462
        %v1485 = vmul.f32 %v1419, %v1462
        %v1486 = vmul.f32 %v1420, %v1462
        %v1487 = vmul.f32 %v1421, %v1462
        %v1488 = vmul.f32 %v1422, %v1462
        %v1489 = vmul.f32 %v1423, %v1462
        %v1490 = vmul.f32 %v1424, %v1462
        %v1491 = vadd.f32 %v1433, %v1463
        %v1492 = vadd.f32 %v1434, %v1464
        %v1493 = vadd.f32 %v1435, %v1465
        %v1494 = vadd.f32 %v1436, %v1466
        %v1495 = vadd.f32 %v1437, %v1467
        %v1496 = vadd.f32 %v1438, %v1468
        %v1497 = vadd.f32 %v1439, %v1469
        %v1498 = vadd.f32 %v1440, %v1470
        %v1499 = vadd.f32 %v1441, %v1471
        %v1500 = vadd.f32 %v1442, %v1472
        %v1501 = vadd.f32 %v1443, %v1473
        %v1502 = vadd.f32 %v1444, %v1474
        %v1503 = vadd.f32 %v1445, %v1475
        %v1504 = vadd.f32 %v1446, %v1476
        %v1505 = vadd.f32 %v1447, %v1477
        %v1506 = vadd.f32 %v1448, %v1478
        %v1507 = vadd.f32 %v1449, %v1479
        %v1508 = vadd.f32 %v1450, %v1480
        %v1509 = vadd.f32 %v1451, %v1481
        %v1510 = vadd.f32 %v1452, %v1482
        %v1511 = vadd.f32 %v1453, %v1483
        %v1512 = vadd.f32 %v1454, %v1484
        %v1513 = vadd.f32 %v1455, %v1485
        %v1514 = vadd.f32 %v1456, %v1486
        %v1515 = vadd.f32 %v1457, %v1487
        %v1516 = vadd.f32 %v1458, %v1488
        %v1517 = vadd.f32 %v1459, %v1489
        %v1518 = vadd.f32 %v1460, %v1490
        %v1519 = vld [vmem:[%s892 + $0x2] sm:$0x1]
        %v1520 = vperm.slane %v1519, 0
        %v1521 = vmul.f32 %v1399, %v1520
        %v1522 = vmul.f32 %v1400, %v1520
        %v1523 = vmul.f32 %v1401, %v1520
        %v1524 = vmul.f32 %v1402, %v1520
        %v1525 = vmul.f32 %v1403, %v1520
        %v1526 = vmul.f32 %v1404, %v1520
        %v1527 = vmul.f32 %v1405, %v1520
        %v1528 = vmul.f32 %v1406, %v1520
        %v1529 = vmul.f32 %v1407, %v1520
        %v1530 = vmul.f32 %v1408, %v1520
        %v1531 = vmul.f32 %v1409, %v1520
        %v1532 = vmul.f32 %v1410, %v1520
        %v1533 = vmul.f32 %v1411, %v1520
        %v1534 = vmul.f32 %v1412, %v1520
        %v1535 = vmul.f32 %v1413, %v1520
        %v1536 = vmul.f32 %v1414, %v1520
        %v1537 = vmul.f32 %v1415, %v1520
        %v1538 = vmul.f32 %v1416, %v1520
        %v1539 = vmul.f32 %v1417, %v1520
        %v1540 = vmul.f32 %v1418, %v1520
        %v1541 = vmul.f32 %v1419, %v1520
        %v1542 = vmul.f32 %v1420, %v1520
        %v1543 = vmul.f32 %v1421, %v1520
        %v1544 = vmul.f32 %v1422, %v1520
        %v1545 = vmul.f32 %v1423, %v1520
        %v1546 = vmul.f32 %v1424, %v1520
        %v1547 = vmul.f32 %v1425, %v1520
        %v1548 = vmul.f32 %v1426, %v1520
        %v1549 = vadd.f32 %v1491, %v1521
        %v1550 = vadd.f32 %v1492, %v1522
        %v1551 = vadd.f32 %v1493, %v1523
        %v1552 = vadd.f32 %v1494, %v1524
        %v1553 = vadd.f32 %v1495, %v1525
        %v1554 = vadd.f32 %v1496, %v1526
        %v1555 = vadd.f32 %v1497, %v1527
        %v1556 = vadd.f32 %v1498, %v1528
        %v1557 = vadd.f32 %v1499, %v1529
        %v1558 = vadd.f32 %v1500, %v1530
        %v1559 = vadd.f32 %v1501, %v1531
        %v1560 = vadd.f32 %v1502, %v1532
        %v1561 = vadd.f32 %v1503, %v1533
        %v1562 = vadd.f32 %v1504, %v1534
        %v1563 = vadd.f32 %v1505, %v1535
        %v1564 = vadd.f32 %v1506, %v1536
        %v1565 = vadd.f32 %v1507, %v1537
        %v1566 = vadd.f32 %v1508, %v1538
        %v1567 = vadd.f32 %v1509, %v1539
        %v1568 = vadd.f32 %v1510, %v1540
        %v1569 = vadd.f32 %v1511, %v1541
        %v1570 = vadd.f32 %v1512, %v1542
        %v1571 = vadd.f32 %v1513, %v1543
        %v1572 = vadd.f32 %v1514, %v1544
        %v1573 = vadd.f32 %v1515, %v1545
        %v1574 = vadd.f32 %v1516, %v1546
        %v1575 = vadd.f32 %v1517, %v1547
        %v1576 = vadd.f32 %v1518, %v1548
        %v1577 = vld [vmem:[%s951 + $0x2] sm:$0x1]
        %v1578 = vperm.slane %v1577, 0
        %v1579 = vmul.f32 %v1401, %v1578
        %v1580 = vmul.f32 %v1402, %v1578
        %v1581 = vmul.f32 %v1403, %v1578
        %v1582 = vmul.f32 %v1404, %v1578
        %v1583 = vmul.f32 %v1405, %v1578
        %v1584 = vmul.f32 %v1406, %v1578
        %v1585 = vmul.f32 %v1407, %v1578
        %v1586 = vmul.f32 %v1408, %v1578
        %v1587 = vmul.f32 %v1409, %v1578
        %v1588 = vmul.f32 %v1410, %v1578
        %v1589 = vmul.f32 %v1411, %v1578
        %v1590 = vmul.f32 %v1412, %v1578
        %v1591 = vmul.f32 %v1413, %v1578
        %v1592 = vmul.f32 %v1414, %v1578
        %v1593 = vmul.f32 %v1415, %v1578
        %v1594 = vmul.f32 %v1416, %v1578
        %v1595 = vmul.f32 %v1417, %v1578
        %v1596 = vmul.f32 %v1418, %v1578
        %v1597 = vmul.f32 %v1419, %v1578
        %v1598 = vmul.f32 %v1420, %v1578
        %v1599 = vmul.f32 %v1421, %v1578
        %v1600 = vmul.f32 %v1422, %v1578
        %v1601 = vmul.f32 %v1423, %v1578
        %v1602 = vmul.f32 %v1424, %v1578
        %v1603 = vmul.f32 %v1425, %v1578
        %v1604 = vmul.f32 %v1426, %v1578
        %v1605 = vmul.f32 %v1427, %v1578
        %v1606 = vmul.f32 %v1428, %v1578
        %v1607 = vadd.f32 %v1549, %v1579
        %v1608 = vadd.f32 %v1550, %v1580
        %v1609 = vadd.f32 %v1551, %v1581
        %v1610 = vadd.f32 %v1552, %v1582
        %v1611 = vadd.f32 %v1553, %v1583
        %v1612 = vadd.f32 %v1554, %v1584
        %v1613 = vadd.f32 %v1555, %v1585
        %v1614 = vadd.f32 %v1556, %v1586
        %v1615 = vadd.f32 %v1557, %v1587
        %v1616 = vadd.f32 %v1558, %v1588
        %v1617 = vadd.f32 %v1559, %v1589
        %v1618 = vadd.f32 %v1560, %v1590
        %v1619 = vadd.f32 %v1561, %v1591
        %v1620 = vadd.f32 %v1562, %v1592
        %v1621 = vadd.f32 %v1563, %v1593
        %v1622 = vadd.f32 %v1564, %v1594
        %v1623 = vadd.f32 %v1565, %v1595
        %v1624 = vadd.f32 %v1566, %v1596
        %v1625 = vadd.f32 %v1567, %v1597
        %v1626 = vadd.f32 %v1568, %v1598
        %v1627 = vadd.f32 %v1569, %v1599
        %v1628 = vadd.f32 %v1570, %v1600
        %v1629 = vadd.f32 %v1571, %v1601
        %v1630 = vadd.f32 %v1572, %v1602
        %v1631 = vadd.f32 %v1573, %v1603
        %v1632 = vadd.f32 %v1574, %v1604
        %v1633 = vadd.f32 %v1575, %v1605
        %v1634 = vadd.f32 %v1576, %v1606
        %v1635 = vld [vmem:[%s1010 + $0x2] sm:$0x1]
        %v1636 = vperm.slane %v1635, 0
        %v1637 = vmul.f32 %v1403, %v1636
        %v1638 = vmul.f32 %v1404, %v1636
        %v1639 = vmul.f32 %v1405, %v1636
        %v1640 = vmul.f32 %v1406, %v1636
        %v1641 = vmul.f32 %v1407, %v1636
        %v1642 = vmul.f32 %v1408, %v1636
        %v1643 = vmul.f32 %v1409, %v1636
        %v1644 = vmul.f32 %v1410, %v1636
        %v1645 = vmul.f32 %v1411, %v1636
        %v1646 = vmul.f32 %v1412, %v1636
        %v1647 = vmul.f32 %v1413, %v1636
        %v1648 = vmul.f32 %v1414, %v1636
        %v1649 = vmul.f32 %v1415, %v1636
        %v1650 = vmul.f32 %v1416, %v1636
        %v1651 = vmul.f32 %v1417, %v1636
        %v1652 = vmul.f32 %v1418, %v1636
        %v1653 = vmul.f32 %v1419, %v1636
        %v1654 = vmul.f32 %v1420, %v1636
        %v1655 = vmul.f32 %v1421, %v1636
        %v1656 = vmul.f32 %v1422, %v1636
        %v1657 = vmul.f32 %v1423, %v1636
        %v1658 = vmul.f32 %v1424, %v1636
        %v1659 = vmul.f32 %v1425, %v1636
        %v1660 = vmul.f32 %v1426, %v1636
        %v1661 = vmul.f32 %v1427, %v1636
        %v1662 = vmul.f32 %v1428, %v1636
        %v1663 = vmul.f32 %v1429, %v1636
        %v1664 = vmul.f32 %v1430, %v1636
        %v1665 = vadd.f32 %v1607, %v1637
        %v1666 = vadd.f32 %v1608, %v1638
        %v1667 = vadd.f32 %v1609, %v1639
        %v1668 = vadd.f32 %v1610, %v1640
        %v1669 = vadd.f32 %v1611, %v1641
        %v1670 = vadd.f32 %v1612, %v1642
        %v1671 = vadd.f32 %v1613, %v1643
        %v1672 = vadd.f32 %v1614, %v1644
        %v1673 = vadd.f32 %v1615, %v1645
        %v1674 = vadd.f32 %v1616, %v1646
        %v1675 = vadd.f32 %v1617, %v1647
        %v1676 = vadd.f32 %v1618, %v1648
        %v1677 = vadd.f32 %v1619, %v1649
        %v1678 = vadd.f32 %v1620, %v1650
        %v1679 = vadd.f32 %v1621, %v1651
        %v1680 = vadd.f32 %v1622, %v1652
        %v1681 = vadd.f32 %v1623, %v1653
        %v1682 = vadd.f32 %v1624, %v1654
        %v1683 = vadd.f32 %v1625, %v1655
        %v1684 = vadd.f32 %v1626, %v1656
        %v1685 = vadd.f32 %v1627, %v1657
        %v1686 = vadd.f32 %v1628, %v1658
        %v1687 = vadd.f32 %v1629, %v1659
        %v1688 = vadd.f32 %v1630, %v1660
        %v1689 = vadd.f32 %v1631, %v1661
        %v1690 = vadd.f32 %v1632, %v1662
        %v1691 = vadd.f32 %v1633, %v1663
        %v1692 = vadd.f32 %v1634, %v1664
        %v1693 = vadd.f32 %v1367, %v1665
        %v1694 = vadd.f32 %v1368, %v1666
        %v1695 = vadd.f32 %v1369, %v1667
        %v1696 = vadd.f32 %v1370, %v1668
        %v1697 = vadd.f32 %v1371, %v1669
        %v1698 = vadd.f32 %v1372, %v1670
        %v1699 = vadd.f32 %v1373, %v1671
        %v1700 = vadd.f32 %v1374, %v1672
        %v1701 = vadd.f32 %v1375, %v1673
        %v1702 = vadd.f32 %v1376, %v1674
        %v1703 = vadd.f32 %v1377, %v1675
        %v1704 = vadd.f32 %v1378, %v1676
        %v1705 = vadd.f32 %v1379, %v1677
        %v1706 = vadd.f32 %v1380, %v1678
        %v1707 = vadd.f32 %v1381, %v1679
        %v1708 = vadd.f32 %v1382, %v1680
        %v1709 = vadd.f32 %v1383, %v1681
        %v1710 = vadd.f32 %v1384, %v1682
        %v1711 = vadd.f32 %v1385, %v1683
        %v1712 = vadd.f32 %v1386, %v1684
        %v1713 = vadd.f32 %v1387, %v1685
        %v1714 = vadd.f32 %v1388, %v1686
        %v1715 = vadd.f32 %v1389, %v1687
        %v1716 = vadd.f32 %v1390, %v1688
        %v1717 = vadd.f32 %v1391, %v1689
        %v1718 = vadd.f32 %v1392, %v1690
        %v1719 = vadd.f32 %v1393, %v1691
        %v1720 = vadd.f32 %v1394, %v1692
        %v1721 = vld [vmem:[#allocation2 + $0x3] sm:$0xff]
        %v1722 = vld [vmem:[#allocation2 + $0xb] sm:$0x3f]
        %v1723 = vld [vmem:[#allocation2 + $0x1b] sm:$0xff]
        %v1724 = vld [vmem:[#allocation2 + $0x23] sm:$0x3f]
        %v1725 = vld [vmem:[#allocation2 + $0x33] sm:$0xff]
        %v1726 = vld [vmem:[#allocation2 + $0x3b] sm:$0x3f]
        %v1727 = vld [vmem:[#allocation2 + $0x4b] sm:$0xff]
        %v1728 = vld [vmem:[#allocation2 + $0x53] sm:$0x3f]
        %v1729 = vld [vmem:[#allocation2 + $0x63] sm:$0xff]
        %v1730 = vld [vmem:[#allocation2 + $0x6b] sm:$0x3f]
        %v1731 = vld [vmem:[#allocation2 + $0x7b] sm:$0xff]
        %v1732 = vld [vmem:[#allocation2 + $0x83] sm:$0x3f]
        %v1733 = vld [vmem:[#allocation2 + $0x93] sm:$0xff]
        %v1734 = vld [vmem:[#allocation2 + $0x9b] sm:$0x3f]
        %v1735 = vld [vmem:[#allocation2 + $0xab] sm:$0xff]
        %v1736 = vld [vmem:[#allocation2 + $0xb3] sm:$0x3f]
        %v1737 = vld [vmem:[#allocation2 + $0xc3] sm:$0xff]
        %v1738 = vld [vmem:[#allocation2 + $0xcb] sm:$0x3f]
        %v1739 = vld [vmem:[#allocation2 + $0xdb] sm:$0xff]
        %v1740 = vld [vmem:[#allocation2 + $0xe3] sm:$0x3f]
        %v1741 = vld [vmem:[#allocation2 + $0xf3] sm:$0xff]
        %v1742 = vld [vmem:[#allocation2 + $0xfb] sm:$0x3f]
        %v1743 = vld [vmem:[#allocation2 + $0x10b] sm:$0xff]
        %v1744 = vld [vmem:[#allocation2 + $0x113] sm:$0x3f]
        %v1745 = vld [vmem:[#allocation2 + $0x123] sm:$0xff]
        %v1746 = vld [vmem:[#allocation2 + $0x12b] sm:$0x3f]
        %v1747 = vld [vmem:[#allocation2 + $0x13b] sm:$0xff]
        %v1748 = vld [vmem:[#allocation2 + $0x143] sm:$0x3f]
        %v1749 = vld [vmem:[#allocation2 + $0x153] sm:$0xff]
        %v1750 = vld [vmem:[#allocation2 + $0x15b] sm:$0x3f]
        %v1751 = vld [vmem:[#allocation2 + $0x16b] sm:$0xff]
        %v1752 = vld [vmem:[#allocation2 + $0x173] sm:$0x3f]
        %v1753 = vld [vmem:[#allocation2 + $0x183] sm:$0xff]
        %v1754 = vld [vmem:[#allocation2 + $0x18b] sm:$0x3f]
        %v1755 = vld [vmem:[#allocation2 + $0x19b] sm:$0xff]
        %v1756 = vld [vmem:[#allocation2 + $0x1a3] sm:$0x3f]
        %v1757 = vld [vmem:[%s508 + $0x3] sm:$0x1]
        %v1758 = vperm.slane %v1757, 0
        %v1759 = vmul.f32 %v1721, %v1758
        %v1760 = vmul.f32 %v1722, %v1758
        %v1761 = vmul.f32 %v1723, %v1758
        %v1762 = vmul.f32 %v1724, %v1758
        %v1763 = vmul.f32 %v1725, %v1758
        %v1764 = vmul.f32 %v1726, %v1758
        %v1765 = vmul.f32 %v1727, %v1758
        %v1766 = vmul.f32 %v1728, %v1758
        %v1767 = vmul.f32 %v1729, %v1758
        %v1768 = vmul.f32 %v1730, %v1758
        %v1769 = vmul.f32 %v1731, %v1758
        %v1770 = vmul.f32 %v1732, %v1758
        %v1771 = vmul.f32 %v1733, %v1758
        %v1772 = vmul.f32 %v1734, %v1758
        %v1773 = vmul.f32 %v1735, %v1758
        %v1774 = vmul.f32 %v1736, %v1758
        %v1775 = vmul.f32 %v1737, %v1758
        %v1776 = vmul.f32 %v1738, %v1758
        %v1777 = vmul.f32 %v1739, %v1758
        %v1778 = vmul.f32 %v1740, %v1758
        %v1779 = vmul.f32 %v1741, %v1758
        %v1780 = vmul.f32 %v1742, %v1758
        %v1781 = vmul.f32 %v1743, %v1758
        %v1782 = vmul.f32 %v1744, %v1758
        %v1783 = vmul.f32 %v1745, %v1758
        %v1784 = vmul.f32 %v1746, %v1758
        %v1785 = vmul.f32 %v1747, %v1758
        %v1786 = vmul.f32 %v1748, %v1758
        %v1787 = vld [vmem:[%s833 + $0x3] sm:$0x1]
        %v1788 = vperm.slane %v1787, 0
        %v1789 = vmul.f32 %v1723, %v1788
        %v1790 = vmul.f32 %v1724, %v1788
        %v1791 = vmul.f32 %v1725, %v1788
        %v1792 = vmul.f32 %v1726, %v1788
        %v1793 = vmul.f32 %v1727, %v1788
        %v1794 = vmul.f32 %v1728, %v1788
        %v1795 = vmul.f32 %v1729, %v1788
        %v1796 = vmul.f32 %v1730, %v1788
        %v1797 = vmul.f32 %v1731, %v1788
        %v1798 = vmul.f32 %v1732, %v1788
        %v1799 = vmul.f32 %v1733, %v1788
        %v1800 = vmul.f32 %v1734, %v1788
        %v1801 = vmul.f32 %v1735, %v1788
        %v1802 = vmul.f32 %v1736, %v1788
        %v1803 = vmul.f32 %v1737, %v1788
        %v1804 = vmul.f32 %v1738, %v1788
        %v1805 = vmul.f32 %v1739, %v1788
        %v1806 = vmul.f32 %v1740, %v1788
        %v1807 = vmul.f32 %v1741, %v1788
        %v1808 = vmul.f32 %v1742, %v1788
        %v1809 = vmul.f32 %v1743, %v1788
        %v1810 = vmul.f32 %v1744, %v1788
        %v1811 = vmul.f32 %v1745, %v1788
        %v1812 = vmul.f32 %v1746, %v1788
        %v1813 = vmul.f32 %v1747, %v1788
        %v1814 = vmul.f32 %v1748, %v1788
        %v1815 = vmul.f32 %v1749, %v1788
        %v1816 = vmul.f32 %v1750, %v1788
        %v1817 = vadd.f32 %v1759, %v1789
        %v1818 = vadd.f32 %v1760, %v1790
        %v1819 = vadd.f32 %v1761, %v1791
        %v1820 = vadd.f32 %v1762, %v1792
        %v1821 = vadd.f32 %v1763, %v1793
        %v1822 = vadd.f32 %v1764, %v1794
        %v1823 = vadd.f32 %v1765, %v1795
        %v1824 = vadd.f32 %v1766, %v1796
        %v1825 = vadd.f32 %v1767, %v1797
        %v1826 = vadd.f32 %v1768, %v1798
        %v1827 = vadd.f32 %v1769, %v1799
        %v1828 = vadd.f32 %v1770, %v1800
        %v1829 = vadd.f32 %v1771, %v1801
        %v1830 = vadd.f32 %v1772, %v1802
        %v1831 = vadd.f32 %v1773, %v1803
        %v1832 = vadd.f32 %v1774, %v1804
        %v1833 = vadd.f32 %v1775, %v1805
        %v1834 = vadd.f32 %v1776, %v1806
        %v1835 = vadd.f32 %v1777, %v1807
        %v1836 = vadd.f32 %v1778, %v1808
        %v1837 = vadd.f32 %v1779, %v1809
        %v1838 = vadd.f32 %v1780, %v1810
        %v1839 = vadd.f32 %v1781, %v1811
        %v1840 = vadd.f32 %v1782, %v1812
        %v1841 = vadd.f32 %v1783, %v1813
        %v1842 = vadd.f32 %v1784, %v1814
        %v1843 = vadd.f32 %v1785, %v1815
        %v1844 = vadd.f32 %v1786, %v1816
        %v1845 = vld [vmem:[%s892 + $0x3] sm:$0x1]
        %v1846 = vperm.slane %v1845, 0
        %v1847 = vmul.f32 %v1725, %v1846
        %v1848 = vmul.f32 %v1726, %v1846
        %v1849 = vmul.f32 %v1727, %v1846
        %v1850 = vmul.f32 %v1728, %v1846
        %v1851 = vmul.f32 %v1729, %v1846
        %v1852 = vmul.f32 %v1730, %v1846
        %v1853 = vmul.f32 %v1731, %v1846
        %v1854 = vmul.f32 %v1732, %v1846
        %v1855 = vmul.f32 %v1733, %v1846
        %v1856 = vmul.f32 %v1734, %v1846
        %v1857 = vmul.f32 %v1735, %v1846
        %v1858 = vmul.f32 %v1736, %v1846
        %v1859 = vmul.f32 %v1737, %v1846
        %v1860 = vmul.f32 %v1738, %v1846
        %v1861 = vmul.f32 %v1739, %v1846
        %v1862 = vmul.f32 %v1740, %v1846
        %v1863 = vmul.f32 %v1741, %v1846
        %v1864 = vmul.f32 %v1742, %v1846
        %v1865 = vmul.f32 %v1743, %v1846
        %v1866 = vmul.f32 %v1744, %v1846
        %v1867 = vmul.f32 %v1745, %v1846
        %v1868 = vmul.f32 %v1746, %v1846
        %v1869 = vmul.f32 %v1747, %v1846
        %v1870 = vmul.f32 %v1748, %v1846
        %v1871 = vmul.f32 %v1749, %v1846
        %v1872 = vmul.f32 %v1750, %v1846
        %v1873 = vmul.f32 %v1751, %v1846
        %v1874 = vmul.f32 %v1752, %v1846
        %v1875 = vadd.f32 %v1817, %v1847
        %v1876 = vadd.f32 %v1818, %v1848
        %v1877 = vadd.f32 %v1819, %v1849
        %v1878 = vadd.f32 %v1820, %v1850
        %v1879 = vadd.f32 %v1821, %v1851
        %v1880 = vadd.f32 %v1822, %v1852
        %v1881 = vadd.f32 %v1823, %v1853
        %v1882 = vadd.f32 %v1824, %v1854
        %v1883 = vadd.f32 %v1825, %v1855
        %v1884 = vadd.f32 %v1826, %v1856
        %v1885 = vadd.f32 %v1827, %v1857
        %v1886 = vadd.f32 %v1828, %v1858
        %v1887 = vadd.f32 %v1829, %v1859
        %v1888 = vadd.f32 %v1830, %v1860
        %v1889 = vadd.f32 %v1831, %v1861
        %v1890 = vadd.f32 %v1832, %v1862
        %v1891 = vadd.f32 %v1833, %v1863
        %v1892 = vadd.f32 %v1834, %v1864
        %v1893 = vadd.f32 %v1835, %v1865
        %v1894 = vadd.f32 %v1836, %v1866
        %v1895 = vadd.f32 %v1837, %v1867
        %v1896 = vadd.f32 %v1838, %v1868
        %v1897 = vadd.f32 %v1839, %v1869
        %v1898 = vadd.f32 %v1840, %v1870
        %v1899 = vadd.f32 %v1841, %v1871
        %v1900 = vadd.f32 %v1842, %v1872
        %v1901 = vadd.f32 %v1843, %v1873
        %v1902 = vadd.f32 %v1844, %v1874
        %v1903 = vld [vmem:[%s951 + $0x3] sm:$0x1]
        %v1904 = vperm.slane %v1903, 0
        %v1905 = vmul.f32 %v1727, %v1904
        %v1906 = vmul.f32 %v1728, %v1904
        %v1907 = vmul.f32 %v1729, %v1904
        %v1908 = vmul.f32 %v1730, %v1904
        %v1909 = vmul.f32 %v1731, %v1904
        %v1910 = vmul.f32 %v1732, %v1904
        %v1911 = vmul.f32 %v1733, %v1904
        %v1912 = vmul.f32 %v1734, %v1904
        %v1913 = vmul.f32 %v1735, %v1904
        %v1914 = vmul.f32 %v1736, %v1904
        %v1915 = vmul.f32 %v1737, %v1904
        %v1916 = vmul.f32 %v1738, %v1904
        %v1917 = vmul.f32 %v1739, %v1904
        %v1918 = vmul.f32 %v1740, %v1904
        %v1919 = vmul.f32 %v1741, %v1904
        %v1920 = vmul.f32 %v1742, %v1904
        %v1921 = vmul.f32 %v1743, %v1904
        %v1922 = vmul.f32 %v1744, %v1904
        %v1923 = vmul.f32 %v1745, %v1904
        %v1924 = vmul.f32 %v1746, %v1904
        %v1925 = vmul.f32 %v1747, %v1904
        %v1926 = vmul.f32 %v1748, %v1904
        %v1927 = vmul.f32 %v1749, %v1904
        %v1928 = vmul.f32 %v1750, %v1904
        %v1929 = vmul.f32 %v1751, %v1904
        %v1930 = vmul.f32 %v1752, %v1904
        %v1931 = vmul.f32 %v1753, %v1904
        %v1932 = vmul.f32 %v1754, %v1904
        %v1933 = vadd.f32 %v1875, %v1905
        %v1934 = vadd.f32 %v1876, %v1906
        %v1935 = vadd.f32 %v1877, %v1907
        %v1936 = vadd.f32 %v1878, %v1908
        %v1937 = vadd.f32 %v1879, %v1909
        %v1938 = vadd.f32 %v1880, %v1910
        %v1939 = vadd.f32 %v1881, %v1911
        %v1940 = vadd.f32 %v1882, %v1912
        %v1941 = vadd.f32 %v1883, %v1913
        %v1942 = vadd.f32 %v1884, %v1914
        %v1943 = vadd.f32 %v1885, %v1915
        %v1944 = vadd.f32 %v1886, %v1916
        %v1945 = vadd.f32 %v1887, %v1917
        %v1946 = vadd.f32 %v1888, %v1918
        %v1947 = vadd.f32 %v1889, %v1919
        %v1948 = vadd.f32 %v1890, %v1920
        %v1949 = vadd.f32 %v1891, %v1921
        %v1950 = vadd.f32 %v1892, %v1922
        %v1951 = vadd.f32 %v1893, %v1923
        %v1952 = vadd.f32 %v1894, %v1924
        %v1953 = vadd.f32 %v1895, %v1925
        %v1954 = vadd.f32 %v1896, %v1926
        %v1955 = vadd.f32 %v1897, %v1927
        %v1956 = vadd.f32 %v1898, %v1928
        %v1957 = vadd.f32 %v1899, %v1929
        %v1958 = vadd.f32 %v1900, %v1930
        %v1959 = vadd.f32 %v1901, %v1931
        %v1960 = vadd.f32 %v1902, %v1932
        %v1961 = vld [vmem:[%s1010 + $0x3] sm:$0x1]
        %v1962 = vperm.slane %v1961, 0
        %v1963 = vmul.f32 %v1729, %v1962
        %v1964 = vmul.f32 %v1730, %v1962
        %v1965 = vmul.f32 %v1731, %v1962
        %v1966 = vmul.f32 %v1732, %v1962
        %v1967 = vmul.f32 %v1733, %v1962
        %v1968 = vmul.f32 %v1734, %v1962
        %v1969 = vmul.f32 %v1735, %v1962
        %v1970 = vmul.f32 %v1736, %v1962
        %v1971 = vmul.f32 %v1737, %v1962
        %v1972 = vmul.f32 %v1738, %v1962
        %v1973 = vmul.f32 %v1739, %v1962
        %v1974 = vmul.f32 %v1740, %v1962
        %v1975 = vmul.f32 %v1741, %v1962
        %v1976 = vmul.f32 %v1742, %v1962
        %v1977 = vmul.f32 %v1743, %v1962
        %v1978 = vmul.f32 %v1744, %v1962
        %v1979 = vmul.f32 %v1745, %v1962
        %v1980 = vmul.f32 %v1746, %v1962
        %v1981 = vmul.f32 %v1747, %v1962
        %v1982 = vmul.f32 %v1748, %v1962
        %v1983 = vmul.f32 %v1749, %v1962
        %v1984 = vmul.f32 %v1750, %v1962
        %v1985 = vmul.f32 %v1751, %v1962
        %v1986 = vmul.f32 %v1752, %v1962
        %v1987 = vmul.f32 %v1753, %v1962
        %v1988 = vmul.f32 %v1754, %v1962
        %v1989 = vmul.f32 %v1755, %v1962
        %v1990 = vmul.f32 %v1756, %v1962
        %v1991 = vadd.f32 %v1933, %v1963
        %v1992 = vadd.f32 %v1934, %v1964
        %v1993 = vadd.f32 %v1935, %v1965
        %v1994 = vadd.f32 %v1936, %v1966
        %v1995 = vadd.f32 %v1937, %v1967
        %v1996 = vadd.f32 %v1938, %v1968
        %v1997 = vadd.f32 %v1939, %v1969
        %v1998 = vadd.f32 %v1940, %v1970
        %v1999 = vadd.f32 %v1941, %v1971
        %v2000 = vadd.f32 %v1942, %v1972
        %v2001 = vadd.f32 %v1943, %v1973
        %v2002 = vadd.f32 %v1944, %v1974
        %v2003 = vadd.f32 %v1945, %v1975
        %v2004 = vadd.f32 %v1946, %v1976
        %v2005 = vadd.f32 %v1947, %v1977
        %v2006 = vadd.f32 %v1948, %v1978
        %v2007 = vadd.f32 %v1949, %v1979
        %v2008 = vadd.f32 %v1950, %v1980
        %v2009 = vadd.f32 %v1951, %v1981
        %v2010 = vadd.f32 %v1952, %v1982
        %v2011 = vadd.f32 %v1953, %v1983
        %v2012 = vadd.f32 %v1954, %v1984
        %v2013 = vadd.f32 %v1955, %v1985
        %v2014 = vadd.f32 %v1956, %v1986
        %v2015 = vadd.f32 %v1957, %v1987
        %v2016 = vadd.f32 %v1958, %v1988
        %v2017 = vadd.f32 %v1959, %v1989
        %v2018 = vadd.f32 %v1960, %v1990
        %v2019 = vadd.f32 %v1693, %v1991
        %v2020 = vadd.f32 %v1694, %v1992
        %v2021 = vadd.f32 %v1695, %v1993
        %v2022 = vadd.f32 %v1696, %v1994
        %v2023 = vadd.f32 %v1697, %v1995
        %v2024 = vadd.f32 %v1698, %v1996
        %v2025 = vadd.f32 %v1699, %v1997
        %v2026 = vadd.f32 %v1700, %v1998
        %v2027 = vadd.f32 %v1701, %v1999
        %v2028 = vadd.f32 %v1702, %v2000
        %v2029 = vadd.f32 %v1703, %v2001
        %v2030 = vadd.f32 %v1704, %v2002
        %v2031 = vadd.f32 %v1705, %v2003
        %v2032 = vadd.f32 %v1706, %v2004
        %v2033 = vadd.f32 %v1707, %v2005
        %v2034 = vadd.f32 %v1708, %v2006
        %v2035 = vadd.f32 %v1709, %v2007
        %v2036 = vadd.f32 %v1710, %v2008
        %v2037 = vadd.f32 %v1711, %v2009
        %v2038 = vadd.f32 %v1712, %v2010
        %v2039 = vadd.f32 %v1713, %v2011
        %v2040 = vadd.f32 %v1714, %v2012
        %v2041 = vadd.f32 %v1715, %v2013
        %v2042 = vadd.f32 %v1716, %v2014
        %v2043 = vadd.f32 %v1717, %v2015
        %v2044 = vadd.f32 %v1718, %v2016
        %v2045 = vadd.f32 %v1719, %v2017
        %v2046 = vadd.f32 %v1720, %v2018
        %v2047 = vld [vmem:[#allocation2 + $0x4] sm:$0xff]
        %v2048 = vld [vmem:[#allocation2 + $0xc] sm:$0x3f]
        %v2049 = vld [vmem:[#allocation2 + $0x1c] sm:$0xff]
        %v2050 = vld [vmem:[#allocation2 + $0x24] sm:$0x3f]
        %v2051 = vld [vmem:[#allocation2 + $0x34] sm:$0xff]
        %v2052 = vld [vmem:[#allocation2 + $0x3c] sm:$0x3f]
        %v2053 = vld [vmem:[#allocation2 + $0x4c] sm:$0xff]
        %v2054 = vld [vmem:[#allocation2 + $0x54] sm:$0x3f]
        %v2055 = vld [vmem:[#allocation2 + $0x64] sm:$0xff]
        %v2056 = vld [vmem:[#allocation2 + $0x6c] sm:$0x3f]
        %v2057 = vld [vmem:[#allocation2 + $0x7c] sm:$0xff]
        %v2058 = vld [vmem:[#allocation2 + $0x84] sm:$0x3f]
        %v2059 = vld [vmem:[#allocation2 + $0x94] sm:$0xff]
        %v2060 = vld [vmem:[#allocation2 + $0x9c] sm:$0x3f]
        %v2061 = vld [vmem:[#allocation2 + $0xac] sm:$0xff]
        %v2062 = vld [vmem:[#allocation2 + $0xb4] sm:$0x3f]
        %v2063 = vld [vmem:[#allocation2 + $0xc4] sm:$0xff]
        %v2064 = vld [vmem:[#allocation2 + $0xcc] sm:$0x3f]
        %v2065 = vld [vmem:[#allocation2 + $0xdc] sm:$0xff]
        %v2066 = vld [vmem:[#allocation2 + $0xe4] sm:$0x3f]
        %v2067 = vld [vmem:[#allocation2 + $0xf4] sm:$0xff]
        %v2068 = vld [vmem:[#allocation2 + $0xfc] sm:$0x3f]
        %v2069 = vld [vmem:[#allocation2 + $0x10c] sm:$0xff]
        %v2070 = vld [vmem:[#allocation2 + $0x114] sm:$0x3f]
        %v2071 = vld [vmem:[#allocation2 + $0x124] sm:$0xff]
        %v2072 = vld [vmem:[#allocation2 + $0x12c] sm:$0x3f]
        %v2073 = vld [vmem:[#allocation2 + $0x13c] sm:$0xff]
        %v2074 = vld [vmem:[#allocation2 + $0x144] sm:$0x3f]
        %v2075 = vld [vmem:[#allocation2 + $0x154] sm:$0xff]
        %v2076 = vld [vmem:[#allocation2 + $0x15c] sm:$0x3f]
        %v2077 = vld [vmem:[#allocation2 + $0x16c] sm:$0xff]
        %v2078 = vld [vmem:[#allocation2 + $0x174] sm:$0x3f]
        %v2079 = vld [vmem:[#allocation2 + $0x184] sm:$0xff]
        %v2080 = vld [vmem:[#allocation2 + $0x18c] sm:$0x3f]
        %v2081 = vld [vmem:[#allocation2 + $0x19c] sm:$0xff]
        %v2082 = vld [vmem:[#allocation2 + $0x1a4] sm:$0x3f]
        %v2083 = vld [vmem:[%s508 + $0x4] sm:$0x1]
        %v2084 = vperm.slane %v2083, 0
        %v2085 = vmul.f32 %v2047, %v2084
        %v2086 = vmul.f32 %v2048, %v2084
        %v2087 = vmul.f32 %v2049, %v2084
        %v2088 = vmul.f32 %v2050, %v2084
        %v2089 = vmul.f32 %v2051, %v2084
        %v2090 = vmul.f32 %v2052, %v2084
        %v2091 = vmul.f32 %v2053, %v2084
        %v2092 = vmul.f32 %v2054, %v2084
        %v2093 = vmul.f32 %v2055, %v2084
        %v2094 = vmul.f32 %v2056, %v2084
        %v2095 = vmul.f32 %v2057, %v2084
        %v2096 = vmul.f32 %v2058, %v2084
        %v2097 = vmul.f32 %v2059, %v2084
        %v2098 = vmul.f32 %v2060, %v2084
        %v2099 = vmul.f32 %v2061, %v2084
        %v2100 = vmul.f32 %v2062, %v2084
        %v2101 = vmul.f32 %v2063, %v2084
        %v2102 = vmul.f32 %v2064, %v2084
        %v2103 = vmul.f32 %v2065, %v2084
        %v2104 = vmul.f32 %v2066, %v2084
        %v2105 = vmul.f32 %v2067, %v2084
        %v2106 = vmul.f32 %v2068, %v2084
        %v2107 = vmul.f32 %v2069, %v2084
        %v2108 = vmul.f32 %v2070, %v2084
        %v2109 = vmul.f32 %v2071, %v2084
        %v2110 = vmul.f32 %v2072, %v2084
        %v2111 = vmul.f32 %v2073, %v2084
        %v2112 = vmul.f32 %v2074, %v2084
        %v2113 = vld [vmem:[%s833 + $0x4] sm:$0x1]
        %v2114 = vperm.slane %v2113, 0
        %v2115 = vmul.f32 %v2049, %v2114
        %v2116 = vmul.f32 %v2050, %v2114
        %v2117 = vmul.f32 %v2051, %v2114
        %v2118 = vmul.f32 %v2052, %v2114
        %v2119 = vmul.f32 %v2053, %v2114
        %v2120 = vmul.f32 %v2054, %v2114
        %v2121 = vmul.f32 %v2055, %v2114
        %v2122 = vmul.f32 %v2056, %v2114
        %v2123 = vmul.f32 %v2057, %v2114
        %v2124 = vmul.f32 %v2058, %v2114
        %v2125 = vmul.f32 %v2059, %v2114
        %v2126 = vmul.f32 %v2060, %v2114
        %v2127 = vmul.f32 %v2061, %v2114
        %v2128 = vmul.f32 %v2062, %v2114
        %v2129 = vmul.f32 %v2063, %v2114
        %v2130 = vmul.f32 %v2064, %v2114
        %v2131 = vmul.f32 %v2065, %v2114
        %v2132 = vmul.f32 %v2066, %v2114
        %v2133 = vmul.f32 %v2067, %v2114
        %v2134 = vmul.f32 %v2068, %v2114
        %v2135 = vmul.f32 %v2069, %v2114
        %v2136 = vmul.f32 %v2070, %v2114
        %v2137 = vmul.f32 %v2071, %v2114
        %v2138 = vmul.f32 %v2072, %v2114
        %v2139 = vmul.f32 %v2073, %v2114
        %v2140 = vmul.f32 %v2074, %v2114
        %v2141 = vmul.f32 %v2075, %v2114
        %v2142 = vmul.f32 %v2076, %v2114
        %v2143 = vadd.f32 %v2085, %v2115
        %v2144 = vadd.f32 %v2086, %v2116
        %v2145 = vadd.f32 %v2087, %v2117
        %v2146 = vadd.f32 %v2088, %v2118
        %v2147 = vadd.f32 %v2089, %v2119
        %v2148 = vadd.f32 %v2090, %v2120
        %v2149 = vadd.f32 %v2091, %v2121
        %v2150 = vadd.f32 %v2092, %v2122
        %v2151 = vadd.f32 %v2093, %v2123
        %v2152 = vadd.f32 %v2094, %v2124
        %v2153 = vadd.f32 %v2095, %v2125
        %v2154 = vadd.f32 %v2096, %v2126
        %v2155 = vadd.f32 %v2097, %v2127
        %v2156 = vadd.f32 %v2098, %v2128
        %v2157 = vadd.f32 %v2099, %v2129
        %v2158 = vadd.f32 %v2100, %v2130
        %v2159 = vadd.f32 %v2101, %v2131
        %v2160 = vadd.f32 %v2102, %v2132
        %v2161 = vadd.f32 %v2103, %v2133
        %v2162 = vadd.f32 %v2104, %v2134
        %v2163 = vadd.f32 %v2105, %v2135
        %v2164 = vadd.f32 %v2106, %v2136
        %v2165 = vadd.f32 %v2107, %v2137
        %v2166 = vadd.f32 %v2108, %v2138
        %v2167 = vadd.f32 %v2109, %v2139
        %v2168 = vadd.f32 %v2110, %v2140
        %v2169 = vadd.f32 %v2111, %v2141
        %v2170 = vadd.f32 %v2112, %v2142
        %v2171 = vld [vmem:[%s892 + $0x4] sm:$0x1]
        %v2172 = vperm.slane %v2171, 0
        %v2173 = vmul.f32 %v2051, %v2172
        %v2174 = vmul.f32 %v2052, %v2172
        %v2175 = vmul.f32 %v2053, %v2172
        %v2176 = vmul.f32 %v2054, %v2172
        %v2177 = vmul.f32 %v2055, %v2172
        %v2178 = vmul.f32 %v2056, %v2172
        %v2179 = vmul.f32 %v2057, %v2172
        %v2180 = vmul.f32 %v2058, %v2172
        %v2181 = vmul.f32 %v2059, %v2172
        %v2182 = vmul.f32 %v2060, %v2172
        %v2183 = vmul.f32 %v2061, %v2172
        %v2184 = vmul.f32 %v2062, %v2172
        %v2185 = vmul.f32 %v2063, %v2172
        %v2186 = vmul.f32 %v2064, %v2172
        %v2187 = vmul.f32 %v2065, %v2172
        %v2188 = vmul.f32 %v2066, %v2172
        %v2189 = vmul.f32 %v2067, %v2172
        %v2190 = vmul.f32 %v2068, %v2172
        %v2191 = vmul.f32 %v2069, %v2172
        %v2192 = vmul.f32 %v2070, %v2172
        %v2193 = vmul.f32 %v2071, %v2172
        %v2194 = vmul.f32 %v2072, %v2172
        %v2195 = vmul.f32 %v2073, %v2172
        %v2196 = vmul.f32 %v2074, %v2172
        %v2197 = vmul.f32 %v2075, %v2172
        %v2198 = vmul.f32 %v2076, %v2172
        %v2199 = vmul.f32 %v2077, %v2172
        %v2200 = vmul.f32 %v2078, %v2172
        %v2201 = vadd.f32 %v2143, %v2173
        %v2202 = vadd.f32 %v2144, %v2174
        %v2203 = vadd.f32 %v2145, %v2175
        %v2204 = vadd.f32 %v2146, %v2176
        %v2205 = vadd.f32 %v2147, %v2177
        %v2206 = vadd.f32 %v2148, %v2178
        %v2207 = vadd.f32 %v2149, %v2179
        %v2208 = vadd.f32 %v2150, %v2180
        %v2209 = vadd.f32 %v2151, %v2181
        %v2210 = vadd.f32 %v2152, %v2182
        %v2211 = vadd.f32 %v2153, %v2183
        %v2212 = vadd.f32 %v2154, %v2184
        %v2213 = vadd.f32 %v2155, %v2185
        %v2214 = vadd.f32 %v2156, %v2186
        %v2215 = vadd.f32 %v2157, %v2187
        %v2216 = vadd.f32 %v2158, %v2188
        %v2217 = vadd.f32 %v2159, %v2189
        %v2218 = vadd.f32 %v2160, %v2190
        %v2219 = vadd.f32 %v2161, %v2191
        %v2220 = vadd.f32 %v2162, %v2192
        %v2221 = vadd.f32 %v2163, %v2193
        %v2222 = vadd.f32 %v2164, %v2194
        %v2223 = vadd.f32 %v2165, %v2195
        %v2224 = vadd.f32 %v2166, %v2196
        %v2225 = vadd.f32 %v2167, %v2197
        %v2226 = vadd.f32 %v2168, %v2198
        %v2227 = vadd.f32 %v2169, %v2199
        %v2228 = vadd.f32 %v2170, %v2200
        %v2229 = vld [vmem:[%s951 + $0x4] sm:$0x1]
        %v2230 = vperm.slane %v2229, 0
        %v2231 = vmul.f32 %v2053, %v2230
        %v2232 = vmul.f32 %v2054, %v2230
        %v2233 = vmul.f32 %v2055, %v2230
        %v2234 = vmul.f32 %v2056, %v2230
        %v2235 = vmul.f32 %v2057, %v2230
        %v2236 = vmul.f32 %v2058, %v2230
        %v2237 = vmul.f32 %v2059, %v2230
        %v2238 = vmul.f32 %v2060, %v2230
        %v2239 = vmul.f32 %v2061, %v2230
        %v2240 = vmul.f32 %v2062, %v2230
        %v2241 = vmul.f32 %v2063, %v2230
        %v2242 = vmul.f32 %v2064, %v2230
        %v2243 = vmul.f32 %v2065, %v2230
        %v2244 = vmul.f32 %v2066, %v2230
        %v2245 = vmul.f32 %v2067, %v2230
        %v2246 = vmul.f32 %v2068, %v2230
        %v2247 = vmul.f32 %v2069, %v2230
        %v2248 = vmul.f32 %v2070, %v2230
        %v2249 = vmul.f32 %v2071, %v2230
        %v2250 = vmul.f32 %v2072, %v2230
        %v2251 = vmul.f32 %v2073, %v2230
        %v2252 = vmul.f32 %v2074, %v2230
        %v2253 = vmul.f32 %v2075, %v2230
        %v2254 = vmul.f32 %v2076, %v2230
        %v2255 = vmul.f32 %v2077, %v2230
        %v2256 = vmul.f32 %v2078, %v2230
        %v2257 = vmul.f32 %v2079, %v2230
        %v2258 = vmul.f32 %v2080, %v2230
        %v2259 = vadd.f32 %v2201, %v2231
        %v2260 = vadd.f32 %v2202, %v2232
        %v2261 = vadd.f32 %v2203, %v2233
        %v2262 = vadd.f32 %v2204, %v2234
        %v2263 = vadd.f32 %v2205, %v2235
        %v2264 = vadd.f32 %v2206, %v2236
        %v2265 = vadd.f32 %v2207, %v2237
        %v2266 = vadd.f32 %v2208, %v2238
        %v2267 = vadd.f32 %v2209, %v2239
        %v2268 = vadd.f32 %v2210, %v2240
        %v2269 = vadd.f32 %v2211, %v2241
        %v2270 = vadd.f32 %v2212, %v2242
        %v2271 = vadd.f32 %v2213, %v2243
        %v2272 = vadd.f32 %v2214, %v2244
        %v2273 = vadd.f32 %v2215, %v2245
        %v2274 = vadd.f32 %v2216, %v2246
        %v2275 = vadd.f32 %v2217, %v2247
        %v2276 = vadd.f32 %v2218, %v2248
        %v2277 = vadd.f32 %v2219, %v2249
        %v2278 = vadd.f32 %v2220, %v2250
        %v2279 = vadd.f32 %v2221, %v2251
        %v2280 = vadd.f32 %v2222, %v2252
        %v2281 = vadd.f32 %v2223, %v2253
        %v2282 = vadd.f32 %v2224, %v2254
        %v2283 = vadd.f32 %v2225, %v2255
        %v2284 = vadd.f32 %v2226, %v2256
        %v2285 = vadd.f32 %v2227, %v2257
        %v2286 = vadd.f32 %v2228, %v2258
        %v2287 = vld [vmem:[%s1010 + $0x4] sm:$0x1]
        %v2288 = vperm.slane %v2287, 0
        %v2289 = vmul.f32 %v2055, %v2288
        %v2290 = vmul.f32 %v2056, %v2288
        %v2291 = vmul.f32 %v2057, %v2288
        %v2292 = vmul.f32 %v2058, %v2288
        %v2293 = vmul.f32 %v2059, %v2288
        %v2294 = vmul.f32 %v2060, %v2288
        %v2295 = vmul.f32 %v2061, %v2288
        %v2296 = vmul.f32 %v2062, %v2288
        %v2297 = vmul.f32 %v2063, %v2288
        %v2298 = vmul.f32 %v2064, %v2288
        %v2299 = vmul.f32 %v2065, %v2288
        %v2300 = vmul.f32 %v2066, %v2288
        %v2301 = vmul.f32 %v2067, %v2288
        %v2302 = vmul.f32 %v2068, %v2288
        %v2303 = vmul.f32 %v2069, %v2288
        %v2304 = vmul.f32 %v2070, %v2288
        %v2305 = vmul.f32 %v2071, %v2288
        %v2306 = vmul.f32 %v2072, %v2288
        %v2307 = vmul.f32 %v2073, %v2288
        %v2308 = vmul.f32 %v2074, %v2288
        %v2309 = vmul.f32 %v2075, %v2288
        %v2310 = vmul.f32 %v2076, %v2288
        %v2311 = vmul.f32 %v2077, %v2288
        %v2312 = vmul.f32 %v2078, %v2288
        %v2313 = vmul.f32 %v2079, %v2288
        %v2314 = vmul.f32 %v2080, %v2288
        %v2315 = vmul.f32 %v2081, %v2288
        %v2316 = vmul.f32 %v2082, %v2288
        %v2317 = vadd.f32 %v2259, %v2289
        %v2318 = vadd.f32 %v2260, %v2290
        %v2319 = vadd.f32 %v2261, %v2291
        %v2320 = vadd.f32 %v2262, %v2292
        %v2321 = vadd.f32 %v2263, %v2293
        %v2322 = vadd.f32 %v2264, %v2294
        %v2323 = vadd.f32 %v2265, %v2295
        %v2324 = vadd.f32 %v2266, %v2296
        %v2325 = vadd.f32 %v2267, %v2297
        %v2326 = vadd.f32 %v2268, %v2298
        %v2327 = vadd.f32 %v2269, %v2299
        %v2328 = vadd.f32 %v2270, %v2300
        %v2329 = vadd.f32 %v2271, %v2301
        %v2330 = vadd.f32 %v2272, %v2302
        %v2331 = vadd.f32 %v2273, %v2303
        %v2332 = vadd.f32 %v2274, %v2304
        %v2333 = vadd.f32 %v2275, %v2305
        %v2334 = vadd.f32 %v2276, %v2306
        %v2335 = vadd.f32 %v2277, %v2307
        %v2336 = vadd.f32 %v2278, %v2308
        %v2337 = vadd.f32 %v2279, %v2309
        %v2338 = vadd.f32 %v2280, %v2310
        %v2339 = vadd.f32 %v2281, %v2311
        %v2340 = vadd.f32 %v2282, %v2312
        %v2341 = vadd.f32 %v2283, %v2313
        %v2342 = vadd.f32 %v2284, %v2314
        %v2343 = vadd.f32 %v2285, %v2315
        %v2344 = vadd.f32 %v2286, %v2316
        %v2345 = vadd.f32 %v2019, %v2317
        %v2346 = vadd.f32 %v2020, %v2318
        %v2347 = vadd.f32 %v2021, %v2319
        %v2348 = vadd.f32 %v2022, %v2320
        %v2349 = vadd.f32 %v2023, %v2321
        %v2350 = vadd.f32 %v2024, %v2322
        %v2351 = vadd.f32 %v2025, %v2323
        %v2352 = vadd.f32 %v2026, %v2324
        %v2353 = vadd.f32 %v2027, %v2325
        %v2354 = vadd.f32 %v2028, %v2326
        %v2355 = vadd.f32 %v2029, %v2327
        %v2356 = vadd.f32 %v2030, %v2328
        %v2357 = vadd.f32 %v2031, %v2329
        %v2358 = vadd.f32 %v2032, %v2330
        %v2359 = vadd.f32 %v2033, %v2331
        %v2360 = vadd.f32 %v2034, %v2332
        %v2361 = vadd.f32 %v2035, %v2333
        %v2362 = vadd.f32 %v2036, %v2334
        %v2363 = vadd.f32 %v2037, %v2335
        %v2364 = vadd.f32 %v2038, %v2336
        %v2365 = vadd.f32 %v2039, %v2337
        %v2366 = vadd.f32 %v2040, %v2338
        %v2367 = vadd.f32 %v2041, %v2339
        %v2368 = vadd.f32 %v2042, %v2340
        %v2369 = vadd.f32 %v2043, %v2341
        %v2370 = vadd.f32 %v2044, %v2342
        %v2371 = vadd.f32 %v2045, %v2343
        %v2372 = vadd.f32 %v2046, %v2344
        %2373 = vst [vmem:[%s539] sm:$0xff] %v2345
        %2374 = vst [vmem:[%s539 + $0x8] sm:$0x3f] %v2346
        %2375 = vst [vmem:[%s539 + $0x10] sm:$0xff] %v2347
        %2376 = vst [vmem:[%s539 + $0x18] sm:$0x3f] %v2348
        %2377 = vst [vmem:[%s539 + $0x20] sm:$0xff] %v2349
        %2378 = vst [vmem:[%s539 + $0x28] sm:$0x3f] %v2350
        %2379 = vst [vmem:[%s539 + $0x30] sm:$0xff] %v2351
        %2380 = vst [vmem:[%s539 + $0x38] sm:$0x3f] %v2352
        %2381 = vst [vmem:[%s539 + $0x40] sm:$0xff] %v2353
        %2382 = vst [vmem:[%s539 + $0x48] sm:$0x3f] %v2354
        %2383 = vst [vmem:[%s539 + $0x50] sm:$0xff] %v2355
        %2384 = vst [vmem:[%s539 + $0x58] sm:$0x3f] %v2356
        %2385 = vst [vmem:[%s539 + $0x60] sm:$0xff] %v2357
        %2386 = vst [vmem:[%s539 + $0x68] sm:$0x3f] %v2358
        %2387 = vst [vmem:[%s539 + $0x70] sm:$0xff] %v2359
        %2388 = vst [vmem:[%s539 + $0x78] sm:$0x3f] %v2360
        %2389 = vst [vmem:[%s539 + $0x80] sm:$0xff] %v2361
        %2390 = vst [vmem:[%s539 + $0x88] sm:$0x3f] %v2362
        %2391 = vst [vmem:[%s539 + $0x90] sm:$0xff] %v2363
        %2392 = vst [vmem:[%s539 + $0x98] sm:$0x3f] %v2364
        %2393 = vst [vmem:[%s539 + $0xa0] sm:$0xff] %v2365
        %2394 = vst [vmem:[%s539 + $0xa8] sm:$0x3f] %v2366
        %2395 = vst [vmem:[%s539 + $0xb0] sm:$0xff] %v2367
        %2396 = vst [vmem:[%s539 + $0xb8] sm:$0x3f] %v2368
        %2397 = vst [vmem:[%s539 + $0xc0] sm:$0xff] %v2369
        %2398 = vst [vmem:[%s539 + $0xc8] sm:$0x3f] %v2370
        %2399 = vst [vmem:[%s539 + $0xd0] sm:$0xff] %v2371
        %2400 = vst [vmem:[%s539 + $0xd8] sm:$0x3f] %v2372
        %vm2401 = vcmask 1045504
        %v2402 = vsel %vm2401, %v2346, 0.0
        %v2403 = vadd.f32 %v2345, %v2402
        %v2404 = vadd.f32 %v2403, %v2347
        %v2405 = vsel %vm2401, %v2348, 0.0
        %v2406 = vadd.f32 %v2404, %v2405
        %v2407 = vadd.f32 %v2406, %v2349
        %v2408 = vsel %vm2401, %v2350, 0.0
        %v2409 = vadd.f32 %v2407, %v2408
        %v2410 = vadd.f32 %v2409, %v2351
        %v2411 = vsel %vm2401, %v2352, 0.0
        %v2412 = vadd.f32 %v2410, %v2411
        %v2413 = vadd.f32 %v2412, %v2353
        %v2414 = vsel %vm2401, %v2354, 0.0
        %v2415 = vadd.f32 %v2413, %v2414
        %v2416 = vadd.f32 %v2415, %v2355
        %v2417 = vsel %vm2401, %v2356, 0.0
        %v2418 = vadd.f32 %v2416, %v2417
        %v2419 = vadd.f32 %v2418, %v2357
        %v2420 = vsel %vm2401, %v2358, 0.0
        %v2421 = vadd.f32 %v2419, %v2420
        %v2422 = vadd.f32 %v2421, %v2359
        %v2423 = vsel %vm2401, %v2360, 0.0
        %v2424 = vadd.f32 %v2422, %v2423
        %v2425 = vadd.f32 %v2424, %v2361
        %v2426 = vsel %vm2401, %v2362, 0.0
        %v2427 = vadd.f32 %v2425, %v2426
        %v2428 = vadd.f32 %v2427, %v2363
        %v2429 = vsel %vm2401, %v2364, 0.0
        %v2430 = vadd.f32 %v2428, %v2429
        %v2431 = vadd.f32 %v2430, %v2365
        %v2432 = vsel %vm2401, %v2366, 0.0
        %v2433 = vadd.f32 %v2431, %v2432
        %v2434 = vadd.f32 %v2433, %v2367
        %v2435 = vsel %vm2401, %v2368, 0.0
        %v2436 = vadd.f32 %v2434, %v2435
        %v2437 = vadd.f32 %v2436, %v2369
        %v2438 = vsel %vm2401, %v2370, 0.0
        %v2439 = vadd.f32 %v2437, %v2438
        %v2440 = vadd.f32 %v2439, %v2371
        %v2441 = vsel %vm2401, %v2372, 0.0
        %v2442 = vadd.f32 %v2440, %v2441
        %v2443 = vrot.slane %v2442, 4
        %v2444 = vadd.f32 %v2442, %v2443
        %v2445 = vrot.slane %v2444, 2
        %v2446 = vadd.f32 %v2444, %v2445
        %v2447 = vrot.slane %v2446, 1
        %v2448 = vadd.f32 %v2446, %v2447
        %v2449 = vadd.f32 %v2448, 0.0
        %v2450 = vmul.f32 %v2345, %v2345
        %v2451 = vmul.f32 %v2346, %v2346
        %v2452 = vmul.f32 %v2347, %v2347
        %v2453 = vmul.f32 %v2348, %v2348
        %v2454 = vmul.f32 %v2349, %v2349
        %v2455 = vmul.f32 %v2350, %v2350
        %v2456 = vmul.f32 %v2351, %v2351
        %v2457 = vmul.f32 %v2352, %v2352
        %v2458 = vmul.f32 %v2353, %v2353
        %v2459 = vmul.f32 %v2354, %v2354
        %v2460 = vmul.f32 %v2355, %v2355
        %v2461 = vmul.f32 %v2356, %v2356
        %v2462 = vmul.f32 %v2357, %v2357
        %v2463 = vmul.f32 %v2358, %v2358
        %v2464 = vmul.f32 %v2359, %v2359
        %v2465 = vmul.f32 %v2360, %v2360
        %v2466 = vmul.f32 %v2361, %v2361
        %v2467 = vmul.f32 %v2362, %v2362
        %v2468 = vmul.f32 %v2363, %v2363
        %v2469 = vmul.f32 %v2364, %v2364
        %v2470 = vmul.f32 %v2365, %v2365
        %v2471 = vmul.f32 %v2366, %v2366
        %v2472 = vmul.f32 %v2367, %v2367
        %v2473 = vmul.f32 %v2368, %v2368
        %v2474 = vmul.f32 %v2369, %v2369
        %v2475 = vmul.f32 %v2370, %v2370
        %v2476 = vmul.f32 %v2371, %v2371
        %v2477 = vmul.f32 %v2372, %v2372
        %v2478 = vsel %vm2401, %v2451, 0.0
        %v2479 = vadd.f32 %v2450, %v2478
        %v2480 = vadd.f32 %v2479, %v2452
        %v2481 = vsel %vm2401, %v2453, 0.0
        %v2482 = vadd.f32 %v2480, %v2481
        %v2483 = vadd.f32 %v2482, %v2454
        %v2484 = vsel %vm2401, %v2455, 0.0
        %v2485 = vadd.f32 %v2483, %v2484
        %v2486 = vadd.f32 %v2485, %v2456
        %v2487 = vsel %vm2401, %v2457, 0.0
        %v2488 = vadd.f32 %v2486, %v2487
        %v2489 = vadd.f32 %v2488, %v2458
        %v2490 = vsel %vm2401, %v2459, 0.0
        %v2491 = vadd.f32 %v2489, %v2490
        %v2492 = vadd.f32 %v2491, %v2460
        %v2493 = vsel %vm2401, %v2461, 0.0
        %v2494 = vadd.f32 %v2492, %v2493
        %v2495 = vadd.f32 %v2494, %v2462
        %v2496 = vsel %vm2401, %v2463, 0.0
        %v2497 = vadd.f32 %v2495, %v2496
        %v2498 = vadd.f32 %v2497, %v2464
        %v2499 = vsel %vm2401, %v2465, 0.0
        %v2500 = vadd.f32 %v2498, %v2499
        %v2501 = vadd.f32 %v2500, %v2466
        %v2502 = vsel %vm2401, %v2467, 0.0
        %v2503 = vadd.f32 %v2501, %v2502
        %v2504 = vadd.f32 %v2503, %v2468
        %v2505 = vsel %vm2401, %v2469, 0.0
        %v2506 = vadd.f32 %v2504, %v2505
        %v2507 = vadd.f32 %v2506, %v2470
        %v2508 = vsel %vm2401, %v2471, 0.0
        %v2509 = vadd.f32 %v2507, %v2508
        %v2510 = vadd.f32 %v2509, %v2472
        %v2511 = vsel %vm2401, %v2473, 0.0
        %v2512 = vadd.f32 %v2510, %v2511
        %v2513 = vadd.f32 %v2512, %v2474
        %v2514 = vsel %vm2401, %v2475, 0.0
        %v2515 = vadd.f32 %v2513, %v2514
        %v2516 = vadd.f32 %v2515, %v2476
        %v2517 = vsel %vm2401, %v2477, 0.0
        %v2518 = vadd.f32 %v2516, %v2517
        %v2519 = vrot.slane %v2518, 4
        %v2520 = vadd.f32 %v2518, %v2519
        %v2521 = vrot.slane %v2520, 2
        %v2522 = vadd.f32 %v2520, %v2521
        %v2523 = vrot.slane %v2522, 1
        %v2524 = vadd.f32 %v2522, %v2523
        %v2525 = vadd.f32 %v2524, 0.0
        %s2526 = scalar_lea.vmem [#allocation2], 432
        %v2527 = vld [vmem:[%s2526] sm:$0xff]
        %v2528 = vld [vmem:[%s2526 + $0x8] sm:$0x3f]
        %v2529 = vld [vmem:[%s2526 + $0x18] sm:$0xff]
        %v2530 = vld [vmem:[%s2526 + $0x20] sm:$0x3f]
        %v2531 = vld [vmem:[%s2526 + $0x30] sm:$0xff]
        %v2532 = vld [vmem:[%s2526 + $0x38] sm:$0x3f]
        %v2533 = vld [vmem:[%s2526 + $0x48] sm:$0xff]
        %v2534 = vld [vmem:[%s2526 + $0x50] sm:$0x3f]
        %v2535 = vld [vmem:[%s2526 + $0x60] sm:$0xff]
        %v2536 = vld [vmem:[%s2526 + $0x68] sm:$0x3f]
        %v2537 = vld [vmem:[%s2526 + $0x78] sm:$0xff]
        %v2538 = vld [vmem:[%s2526 + $0x80] sm:$0x3f]
        %v2539 = vld [vmem:[%s2526 + $0x90] sm:$0xff]
        %v2540 = vld [vmem:[%s2526 + $0x98] sm:$0x3f]
        %v2541 = vld [vmem:[%s2526 + $0xa8] sm:$0xff]
        %v2542 = vld [vmem:[%s2526 + $0xb0] sm:$0x3f]
        %v2543 = vld [vmem:[%s2526 + $0xc0] sm:$0xff]
        %v2544 = vld [vmem:[%s2526 + $0xc8] sm:$0x3f]
        %v2545 = vld [vmem:[%s2526 + $0xd8] sm:$0xff]
        %v2546 = vld [vmem:[%s2526 + $0xe0] sm:$0x3f]
        %v2547 = vld [vmem:[%s2526 + $0xf0] sm:$0xff]
        %v2548 = vld [vmem:[%s2526 + $0xf8] sm:$0x3f]
        %v2549 = vld [vmem:[%s2526 + $0x108] sm:$0xff]
        %v2550 = vld [vmem:[%s2526 + $0x110] sm:$0x3f]
        %v2551 = vld [vmem:[%s2526 + $0x120] sm:$0xff]
        %v2552 = vld [vmem:[%s2526 + $0x128] sm:$0x3f]
        %v2553 = vld [vmem:[%s2526 + $0x138] sm:$0xff]
        %v2554 = vld [vmem:[%s2526 + $0x140] sm:$0x3f]
        %v2555 = vld [vmem:[%s2526 + $0x150] sm:$0xff]
        %v2556 = vld [vmem:[%s2526 + $0x158] sm:$0x3f]
        %v2557 = vld [vmem:[%s2526 + $0x168] sm:$0xff]
        %v2558 = vld [vmem:[%s2526 + $0x170] sm:$0x3f]
        %v2559 = vld [vmem:[%s2526 + $0x180] sm:$0xff]
        %v2560 = vld [vmem:[%s2526 + $0x188] sm:$0x3f]
        %v2561 = vld [vmem:[%s2526 + $0x198] sm:$0xff]
        %v2562 = vld [vmem:[%s2526 + $0x1a0] sm:$0x3f]
        %v2563 = vld [vmem:[%s508] sm:$0x1]
        %v2564 = vperm.slane %v2563, 0
        %v2565 = vmul.f32 %v2527, %v2564
        %v2566 = vmul.f32 %v2528, %v2564
        %v2567 = vmul.f32 %v2529, %v2564
        %v2568 = vmul.f32 %v2530, %v2564
        %v2569 = vmul.f32 %v2531, %v2564
        %v2570 = vmul.f32 %v2532, %v2564
        %v2571 = vmul.f32 %v2533, %v2564
        %v2572 = vmul.f32 %v2534, %v2564
        %v2573 = vmul.f32 %v2535, %v2564
        %v2574 = vmul.f32 %v2536, %v2564
        %v2575 = vmul.f32 %v2537, %v2564
        %v2576 = vmul.f32 %v2538, %v2564
        %v2577 = vmul.f32 %v2539, %v2564
        %v2578 = vmul.f32 %v2540, %v2564
        %v2579 = vmul.f32 %v2541, %v2564
        %v2580 = vmul.f32 %v2542, %v2564
        %v2581 = vmul.f32 %v2543, %v2564
        %v2582 = vmul.f32 %v2544, %v2564
        %v2583 = vmul.f32 %v2545, %v2564
        %v2584 = vmul.f32 %v2546, %v2564
        %v2585 = vmul.f32 %v2547, %v2564
        %v2586 = vmul.f32 %v2548, %v2564
        %v2587 = vmul.f32 %v2549, %v2564
        %v2588 = vmul.f32 %v2550, %v2564
        %v2589 = vmul.f32 %v2551, %v2564
        %v2590 = vmul.f32 %v2552, %v2564
        %v2591 = vmul.f32 %v2553, %v2564
        %v2592 = vmul.f32 %v2554, %v2564
        %v2593 = vld [vmem:[%s833] sm:$0x1]
        %v2594 = vperm.slane %v2593, 0
        %v2595 = vmul.f32 %v2529, %v2594
        %v2596 = vmul.f32 %v2530, %v2594
        %v2597 = vmul.f32 %v2531, %v2594
        %v2598 = vmul.f32 %v2532, %v2594
        %v2599 = vmul.f32 %v2533, %v2594
        %v2600 = vmul.f32 %v2534, %v2594
        %v2601 = vmul.f32 %v2535, %v2594
        %v2602 = vmul.f32 %v2536, %v2594
        %v2603 = vmul.f32 %v2537, %v2594
        %v2604 = vmul.f32 %v2538, %v2594
        %v2605 = vmul.f32 %v2539, %v2594
        %v2606 = vmul.f32 %v2540, %v2594
        %v2607 = vmul.f32 %v2541, %v2594
        %v2608 = vmul.f32 %v2542, %v2594
        %v2609 = vmul.f32 %v2543, %v2594
        %v2610 = vmul.f32 %v2544, %v2594
        %v2611 = vmul.f32 %v2545, %v2594
        %v2612 = vmul.f32 %v2546, %v2594
        %v2613 = vmul.f32 %v2547, %v2594
        %v2614 = vmul.f32 %v2548, %v2594
        %v2615 = vmul.f32 %v2549, %v2594
        %v2616 = vmul.f32 %v2550, %v2594
        %v2617 = vmul.f32 %v2551, %v2594
        %v2618 = vmul.f32 %v2552, %v2594
        %v2619 = vmul.f32 %v2553, %v2594
        %v2620 = vmul.f32 %v2554, %v2594
        %v2621 = vmul.f32 %v2555, %v2594
        %v2622 = vmul.f32 %v2556, %v2594
        %v2623 = vadd.f32 %v2565, %v2595
        %v2624 = vadd.f32 %v2566, %v2596
        %v2625 = vadd.f32 %v2567, %v2597
        %v2626 = vadd.f32 %v2568, %v2598
        %v2627 = vadd.f32 %v2569, %v2599
        %v2628 = vadd.f32 %v2570, %v2600
        %v2629 = vadd.f32 %v2571, %v2601
        %v2630 = vadd.f32 %v2572, %v2602
        %v2631 = vadd.f32 %v2573, %v2603
        %v2632 = vadd.f32 %v2574, %v2604
        %v2633 = vadd.f32 %v2575, %v2605
        %v2634 = vadd.f32 %v2576, %v2606
        %v2635 = vadd.f32 %v2577, %v2607
        %v2636 = vadd.f32 %v2578, %v2608
        %v2637 = vadd.f32 %v2579, %v2609
        %v2638 = vadd.f32 %v2580, %v2610
        %v2639 = vadd.f32 %v2581, %v2611
        %v2640 = vadd.f32 %v2582, %v2612
        %v2641 = vadd.f32 %v2583, %v2613
        %v2642 = vadd.f32 %v2584, %v2614
        %v2643 = vadd.f32 %v2585, %v2615
        %v2644 = vadd.f32 %v2586, %v2616
        %v2645 = vadd.f32 %v2587, %v2617
        %v2646 = vadd.f32 %v2588, %v2618
        %v2647 = vadd.f32 %v2589, %v2619
        %v2648 = vadd.f32 %v2590, %v2620
        %v2649 = vadd.f32 %v2591, %v2621
        %v2650 = vadd.f32 %v2592, %v2622
        %v2651 = vld [vmem:[%s892] sm:$0x1]
        %v2652 = vperm.slane %v2651, 0
        %v2653 = vmul.f32 %v2531, %v2652
        %v2654 = vmul.f32 %v2532, %v2652
        %v2655 = vmul.f32 %v2533, %v2652
        %v2656 = vmul.f32 %v2534, %v2652
        %v2657 = vmul.f32 %v2535, %v2652
        %v2658 = vmul.f32 %v2536, %v2652
        %v2659 = vmul.f32 %v2537, %v2652
        %v2660 = vmul.f32 %v2538, %v2652
        %v2661 = vmul.f32 %v2539, %v2652
        %v2662 = vmul.f32 %v2540, %v2652
        %v2663 = vmul.f32 %v2541, %v2652
        %v2664 = vmul.f32 %v2542, %v2652
        %v2665 = vmul.f32 %v2543, %v2652
        %v2666 = vmul.f32 %v2544, %v2652
        %v2667 = vmul.f32 %v2545, %v2652
        %v2668 = vmul.f32 %v2546, %v2652
        %v2669 = vmul.f32 %v2547, %v2652
        %v2670 = vmul.f32 %v2548, %v2652
        %v2671 = vmul.f32 %v2549, %v2652
        %v2672 = vmul.f32 %v2550, %v2652
        %v2673 = vmul.f32 %v2551, %v2652
        %v2674 = vmul.f32 %v2552, %v2652
        %v2675 = vmul.f32 %v2553, %v2652
        %v2676 = vmul.f32 %v2554, %v2652
        %v2677 = vmul.f32 %v2555, %v2652
        %v2678 = vmul.f32 %v2556, %v2652
        %v2679 = vmul.f32 %v2557, %v2652
        %v2680 = vmul.f32 %v2558, %v2652
        %v2681 = vadd.f32 %v2623, %v2653
        %v2682 = vadd.f32 %v2624, %v2654
        %v2683 = vadd.f32 %v2625, %v2655
        %v2684 = vadd.f32 %v2626, %v2656
        %v2685 = vadd.f32 %v2627, %v2657
        %v2686 = vadd.f32 %v2628, %v2658
        %v2687 = vadd.f32 %v2629, %v2659
        %v2688 = vadd.f32 %v2630, %v2660
        %v2689 = vadd.f32 %v2631, %v2661
        %v2690 = vadd.f32 %v2632, %v2662
        %v2691 = vadd.f32 %v2633, %v2663
        %v2692 = vadd.f32 %v2634, %v2664
        %v2693 = vadd.f32 %v2635, %v2665
        %v2694 = vadd.f32 %v2636, %v2666
        %v2695 = vadd.f32 %v2637, %v2667
        %v2696 = vadd.f32 %v2638, %v2668
        %v2697 = vadd.f32 %v2639, %v2669
        %v2698 = vadd.f32 %v2640, %v2670
        %v2699 = vadd.f32 %v2641, %v2671
        %v2700 = vadd.f32 %v2642, %v2672
        %v2701 = vadd.f32 %v2643, %v2673
        %v2702 = vadd.f32 %v2644, %v2674
        %v2703 = vadd.f32 %v2645, %v2675
        %v2704 = vadd.f32 %v2646, %v2676
        %v2705 = vadd.f32 %v2647, %v2677
        %v2706 = vadd.f32 %v2648, %v2678
        %v2707 = vadd.f32 %v2649, %v2679
        %v2708 = vadd.f32 %v2650, %v2680
        %v2709 = vld [vmem:[%s951] sm:$0x1]
        %v2710 = vperm.slane %v2709, 0
        %v2711 = vmul.f32 %v2533, %v2710
        %v2712 = vmul.f32 %v2534, %v2710
        %v2713 = vmul.f32 %v2535, %v2710
        %v2714 = vmul.f32 %v2536, %v2710
        %v2715 = vmul.f32 %v2537, %v2710
        %v2716 = vmul.f32 %v2538, %v2710
        %v2717 = vmul.f32 %v2539, %v2710
        %v2718 = vmul.f32 %v2540, %v2710
        %v2719 = vmul.f32 %v2541, %v2710
        %v2720 = vmul.f32 %v2542, %v2710
        %v2721 = vmul.f32 %v2543, %v2710
        %v2722 = vmul.f32 %v2544, %v2710
        %v2723 = vmul.f32 %v2545, %v2710
        %v2724 = vmul.f32 %v2546, %v2710
        %v2725 = vmul.f32 %v2547, %v2710
        %v2726 = vmul.f32 %v2548, %v2710
        %v2727 = vmul.f32 %v2549, %v2710
        %v2728 = vmul.f32 %v2550, %v2710
        %v2729 = vmul.f32 %v2551, %v2710
        %v2730 = vmul.f32 %v2552, %v2710
        %v2731 = vmul.f32 %v2553, %v2710
        %v2732 = vmul.f32 %v2554, %v2710
        %v2733 = vmul.f32 %v2555, %v2710
        %v2734 = vmul.f32 %v2556, %v2710
        %v2735 = vmul.f32 %v2557, %v2710
        %v2736 = vmul.f32 %v2558, %v2710
        %v2737 = vmul.f32 %v2559, %v2710
        %v2738 = vmul.f32 %v2560, %v2710
        %v2739 = vadd.f32 %v2681, %v2711
        %v2740 = vadd.f32 %v2682, %v2712
        %v2741 = vadd.f32 %v2683, %v2713
        %v2742 = vadd.f32 %v2684, %v2714
        %v2743 = vadd.f32 %v2685, %v2715
        %v2744 = vadd.f32 %v2686, %v2716
        %v2745 = vadd.f32 %v2687, %v2717
        %v2746 = vadd.f32 %v2688, %v2718
        %v2747 = vadd.f32 %v2689, %v2719
        %v2748 = vadd.f32 %v2690, %v2720
        %v2749 = vadd.f32 %v2691, %v2721
        %v2750 = vadd.f32 %v2692, %v2722
        %v2751 = vadd.f32 %v2693, %v2723
        %v2752 = vadd.f32 %v2694, %v2724
        %v2753 = vadd.f32 %v2695, %v2725
        %v2754 = vadd.f32 %v2696, %v2726
        %v2755 = vadd.f32 %v2697, %v2727
        %v2756 = vadd.f32 %v2698, %v2728
        %v2757 = vadd.f32 %v2699, %v2729
        %v2758 = vadd.f32 %v2700, %v2730
        %v2759 = vadd.f32 %v2701, %v2731
        %v2760 = vadd.f32 %v2702, %v2732
        %v2761 = vadd.f32 %v2703, %v2733
        %v2762 = vadd.f32 %v2704, %v2734
        %v2763 = vadd.f32 %v2705, %v2735
        %v2764 = vadd.f32 %v2706, %v2736
        %v2765 = vadd.f32 %v2707, %v2737
        %v2766 = vadd.f32 %v2708, %v2738
        %v2767 = vld [vmem:[%s1010] sm:$0x1]
        %v2768 = vperm.slane %v2767, 0
        %v2769 = vmul.f32 %v2535, %v2768
        %v2770 = vmul.f32 %v2536, %v2768
        %v2771 = vmul.f32 %v2537, %v2768
        %v2772 = vmul.f32 %v2538, %v2768
        %v2773 = vmul.f32 %v2539, %v2768
        %v2774 = vmul.f32 %v2540, %v2768
        %v2775 = vmul.f32 %v2541, %v2768
        %v2776 = vmul.f32 %v2542, %v2768
        %v2777 = vmul.f32 %v2543, %v2768
        %v2778 = vmul.f32 %v2544, %v2768
        %v2779 = vmul.f32 %v2545, %v2768
        %v2780 = vmul.f32 %v2546, %v2768
        %v2781 = vmul.f32 %v2547, %v2768
        %v2782 = vmul.f32 %v2548, %v2768
        %v2783 = vmul.f32 %v2549, %v2768
        %v2784 = vmul.f32 %v2550, %v2768
        %v2785 = vmul.f32 %v2551, %v2768
        %v2786 = vmul.f32 %v2552, %v2768
        %v2787 = vmul.f32 %v2553, %v2768
        %v2788 = vmul.f32 %v2554, %v2768
        %v2789 = vmul.f32 %v2555, %v2768
        %v2790 = vmul.f32 %v2556, %v2768
        %v2791 = vmul.f32 %v2557, %v2768
        %v2792 = vmul.f32 %v2558, %v2768
        %v2793 = vmul.f32 %v2559, %v2768
        %v2794 = vmul.f32 %v2560, %v2768
        %v2795 = vmul.f32 %v2561, %v2768
        %v2796 = vmul.f32 %v2562, %v2768
        %v2797 = vadd.f32 %v2739, %v2769
        %v2798 = vadd.f32 %v2740, %v2770
        %v2799 = vadd.f32 %v2741, %v2771
        %v2800 = vadd.f32 %v2742, %v2772
        %v2801 = vadd.f32 %v2743, %v2773
        %v2802 = vadd.f32 %v2744, %v2774
        %v2803 = vadd.f32 %v2745, %v2775
        %v2804 = vadd.f32 %v2746, %v2776
        %v2805 = vadd.f32 %v2747, %v2777
        %v2806 = vadd.f32 %v2748, %v2778
        %v2807 = vadd.f32 %v2749, %v2779
        %v2808 = vadd.f32 %v2750, %v2780
        %v2809 = vadd.f32 %v2751, %v2781
        %v2810 = vadd.f32 %v2752, %v2782
        %v2811 = vadd.f32 %v2753, %v2783
        %v2812 = vadd.f32 %v2754, %v2784
        %v2813 = vadd.f32 %v2755, %v2785
        %v2814 = vadd.f32 %v2756, %v2786
        %v2815 = vadd.f32 %v2757, %v2787
        %v2816 = vadd.f32 %v2758, %v2788
        %v2817 = vadd.f32 %v2759, %v2789
        %v2818 = vadd.f32 %v2760, %v2790
        %v2819 = vadd.f32 %v2761, %v2791
        %v2820 = vadd.f32 %v2762, %v2792
        %v2821 = vadd.f32 %v2763, %v2793
        %v2822 = vadd.f32 %v2764, %v2794
        %v2823 = vadd.f32 %v2765, %v2795
        %v2824 = vadd.f32 %v2766, %v2796
        %v2825 = vld [vmem:[%s2526 + $0x1] sm:$0xff]
        %v2826 = vld [vmem:[%s2526 + $0x9] sm:$0x3f]
        %v2827 = vld [vmem:[%s2526 + $0x19] sm:$0xff]
        %v2828 = vld [vmem:[%s2526 + $0x21] sm:$0x3f]
        %v2829 = vld [vmem:[%s2526 + $0x31] sm:$0xff]
        %v2830 = vld [vmem:[%s2526 + $0x39] sm:$0x3f]
        %v2831 = vld [vmem:[%s2526 + $0x49] sm:$0xff]
        %v2832 = vld [vmem:[%s2526 + $0x51] sm:$0x3f]
        %v2833 = vld [vmem:[%s2526 + $0x61] sm:$0xff]
        %v2834 = vld [vmem:[%s2526 + $0x69] sm:$0x3f]
        %v2835 = vld [vmem:[%s2526 + $0x79] sm:$0xff]
        %v2836 = vld [vmem:[%s2526 + $0x81] sm:$0x3f]
        %v2837 = vld [vmem:[%s2526 + $0x91] sm:$0xff]
        %v2838 = vld [vmem:[%s2526 + $0x99] sm:$0x3f]
        %v2839 = vld [vmem:[%s2526 + $0xa9] sm:$0xff]
        %v2840 = vld [vmem:[%s2526 + $0xb1] sm:$0x3f]
        %v2841 = vld [vmem:[%s2526 + $0xc1] sm:$0xff]
        %v2842 = vld [vmem:[%s2526 + $0xc9] sm:$0x3f]
        %v2843 = vld [vmem:[%s2526 + $0xd9] sm:$0xff]
        %v2844 = vld [vmem:[%s2526 + $0xe1] sm:$0x3f]
        %v2845 = vld [vmem:[%s2526 + $0xf1] sm:$0xff]
        %v2846 = vld [vmem:[%s2526 + $0xf9] sm:$0x3f]
        %v2847 = vld [vmem:[%s2526 + $0x109] sm:$0xff]
        %v2848 = vld [vmem:[%s2526 + $0x111] sm:$0x3f]
        %v2849 = vld [vmem:[%s2526 + $0x121] sm:$0xff]
        %v2850 = vld [vmem:[%s2526 + $0x129] sm:$0x3f]
        %v2851 = vld [vmem:[%s2526 + $0x139] sm:$0xff]
        %v2852 = vld [vmem:[%s2526 + $0x141] sm:$0x3f]
        %v2853 = vld [vmem:[%s2526 + $0x151] sm:$0xff]
        %v2854 = vld [vmem:[%s2526 + $0x159] sm:$0x3f]
        %v2855 = vld [vmem:[%s2526 + $0x169] sm:$0xff]
        %v2856 = vld [vmem:[%s2526 + $0x171] sm:$0x3f]
        %v2857 = vld [vmem:[%s2526 + $0x181] sm:$0xff]
        %v2858 = vld [vmem:[%s2526 + $0x189] sm:$0x3f]
        %v2859 = vld [vmem:[%s2526 + $0x199] sm:$0xff]
        %v2860 = vld [vmem:[%s2526 + $0x1a1] sm:$0x3f]
        %v2861 = vld [vmem:[%s508 + $0x1] sm:$0x1]
        %v2862 = vperm.slane %v2861, 0
        %v2863 = vmul.f32 %v2825, %v2862
        %v2864 = vmul.f32 %v2826, %v2862
        %v2865 = vmul.f32 %v2827, %v2862
        %v2866 = vmul.f32 %v2828, %v2862
        %v2867 = vmul.f32 %v2829, %v2862
        %v2868 = vmul.f32 %v2830, %v2862
        %v2869 = vmul.f32 %v2831, %v2862
        %v2870 = vmul.f32 %v2832, %v2862
        %v2871 = vmul.f32 %v2833, %v2862
        %v2872 = vmul.f32 %v2834, %v2862
        %v2873 = vmul.f32 %v2835, %v2862
        %v2874 = vmul.f32 %v2836, %v2862
        %v2875 = vmul.f32 %v2837, %v2862
        %v2876 = vmul.f32 %v2838, %v2862
        %v2877 = vmul.f32 %v2839, %v2862
        %v2878 = vmul.f32 %v2840, %v2862
        %v2879 = vmul.f32 %v2841, %v2862
        %v2880 = vmul.f32 %v2842, %v2862
        %v2881 = vmul.f32 %v2843, %v2862
        %v2882 = vmul.f32 %v2844, %v2862
        %v2883 = vmul.f32 %v2845, %v2862
        %v2884 = vmul.f32 %v2846, %v2862
        %v2885 = vmul.f32 %v2847, %v2862
        %v2886 = vmul.f32 %v2848, %v2862
        %v2887 = vmul.f32 %v2849, %v2862
        %v2888 = vmul.f32 %v2850, %v2862
        %v2889 = vmul.f32 %v2851, %v2862
        %v2890 = vmul.f32 %v2852, %v2862
        %v2891 = vld [vmem:[%s833 + $0x1] sm:$0x1]
        %v2892 = vperm.slane %v2891, 0
        %v2893 = vmul.f32 %v2827, %v2892
        %v2894 = vmul.f32 %v2828, %v2892
        %v2895 = vmul.f32 %v2829, %v2892
        %v2896 = vmul.f32 %v2830, %v2892
        %v2897 = vmul.f32 %v2831, %v2892
        %v2898 = vmul.f32 %v2832, %v2892
        %v2899 = vmul.f32 %v2833, %v2892
        %v2900 = vmul.f32 %v2834, %v2892
        %v2901 = vmul.f32 %v2835, %v2892
        %v2902 = vmul.f32 %v2836, %v2892
        %v2903 = vmul.f32 %v2837, %v2892
        %v2904 = vmul.f32 %v2838, %v2892
        %v2905 = vmul.f32 %v2839, %v2892
        %v2906 = vmul.f32 %v2840, %v2892
        %v2907 = vmul.f32 %v2841, %v2892
        %v2908 = vmul.f32 %v2842, %v2892
        %v2909 = vmul.f32 %v2843, %v2892
        %v2910 = vmul.f32 %v2844, %v2892
        %v2911 = vmul.f32 %v2845, %v2892
        %v2912 = vmul.f32 %v2846, %v2892
        %v2913 = vmul.f32 %v2847, %v2892
        %v2914 = vmul.f32 %v2848, %v2892
        %v2915 = vmul.f32 %v2849, %v2892
        %v2916 = vmul.f32 %v2850, %v2892
        %v2917 = vmul.f32 %v2851, %v2892
        %v2918 = vmul.f32 %v2852, %v2892
        %v2919 = vmul.f32 %v2853, %v2892
        %v2920 = vmul.f32 %v2854, %v2892
        %v2921 = vadd.f32 %v2863, %v2893
        %v2922 = vadd.f32 %v2864, %v2894
        %v2923 = vadd.f32 %v2865, %v2895
        %v2924 = vadd.f32 %v2866, %v2896
        %v2925 = vadd.f32 %v2867, %v2897
        %v2926 = vadd.f32 %v2868, %v2898
        %v2927 = vadd.f32 %v2869, %v2899
        %v2928 = vadd.f32 %v2870, %v2900
        %v2929 = vadd.f32 %v2871, %v2901
        %v2930 = vadd.f32 %v2872, %v2902
        %v2931 = vadd.f32 %v2873, %v2903
        %v2932 = vadd.f32 %v2874, %v2904
        %v2933 = vadd.f32 %v2875, %v2905
        %v2934 = vadd.f32 %v2876, %v2906
        %v2935 = vadd.f32 %v2877, %v2907
        %v2936 = vadd.f32 %v2878, %v2908
        %v2937 = vadd.f32 %v2879, %v2909
        %v2938 = vadd.f32 %v2880, %v2910
        %v2939 = vadd.f32 %v2881, %v2911
        %v2940 = vadd.f32 %v2882, %v2912
        %v2941 = vadd.f32 %v2883, %v2913
        %v2942 = vadd.f32 %v2884, %v2914
        %v2943 = vadd.f32 %v2885, %v2915
        %v2944 = vadd.f32 %v2886, %v2916
        %v2945 = vadd.f32 %v2887, %v2917
        %v2946 = vadd.f32 %v2888, %v2918
        %v2947 = vadd.f32 %v2889, %v2919
        %v2948 = vadd.f32 %v2890, %v2920
        %v2949 = vld [vmem:[%s892 + $0x1] sm:$0x1]
        %v2950 = vperm.slane %v2949, 0
        %v2951 = vmul.f32 %v2829, %v2950
        %v2952 = vmul.f32 %v2830, %v2950
        %v2953 = vmul.f32 %v2831, %v2950
        %v2954 = vmul.f32 %v2832, %v2950
        %v2955 = vmul.f32 %v2833, %v2950
        %v2956 = vmul.f32 %v2834, %v2950
        %v2957 = vmul.f32 %v2835, %v2950
        %v2958 = vmul.f32 %v2836, %v2950
        %v2959 = vmul.f32 %v2837, %v2950
        %v2960 = vmul.f32 %v2838, %v2950
        %v2961 = vmul.f32 %v2839, %v2950
        %v2962 = vmul.f32 %v2840, %v2950
        %v2963 = vmul.f32 %v2841, %v2950
        %v2964 = vmul.f32 %v2842, %v2950
        %v2965 = vmul.f32 %v2843, %v2950
        %v2966 = vmul.f32 %v2844, %v2950
        %v2967 = vmul.f32 %v2845, %v2950
        %v2968 = vmul.f32 %v2846, %v2950
        %v2969 = vmul.f32 %v2847, %v2950
        %v2970 = vmul.f32 %v2848, %v2950
        %v2971 = vmul.f32 %v2849, %v2950
        %v2972 = vmul.f32 %v2850, %v2950
        %v2973 = vmul.f32 %v2851, %v2950
        %v2974 = vmul.f32 %v2852, %v2950
        %v2975 = vmul.f32 %v2853, %v2950
        %v2976 = vmul.f32 %v2854, %v2950
        %v2977 = vmul.f32 %v2855, %v2950
        %v2978 = vmul.f32 %v2856, %v2950
        %v2979 = vadd.f32 %v2921, %v2951
        %v2980 = vadd.f32 %v2922, %v2952
        %v2981 = vadd.f32 %v2923, %v2953
        %v2982 = vadd.f32 %v2924, %v2954
        %v2983 = vadd.f32 %v2925, %v2955
        %v2984 = vadd.f32 %v2926, %v2956
        %v2985 = vadd.f32 %v2927, %v2957
        %v2986 = vadd.f32 %v2928, %v2958
        %v2987 = vadd.f32 %v2929, %v2959
        %v2988 = vadd.f32 %v2930, %v2960
        %v2989 = vadd.f32 %v2931, %v2961
        %v2990 = vadd.f32 %v2932, %v2962
        %v2991 = vadd.f32 %v2933, %v2963
        %v2992 = vadd.f32 %v2934, %v2964
        %v2993 = vadd.f32 %v2935, %v2965
        %v2994 = vadd.f32 %v2936, %v2966
        %v2995 = vadd.f32 %v2937, %v2967
        %v2996 = vadd.f32 %v2938, %v2968
        %v2997 = vadd.f32 %v2939, %v2969
        %v2998 = vadd.f32 %v2940, %v2970
        %v2999 = vadd.f32 %v2941, %v2971
        %v3000 = vadd.f32 %v2942, %v2972
        %v3001 = vadd.f32 %v2943, %v2973
        %v3002 = vadd.f32 %v2944, %v2974
        %v3003 = vadd.f32 %v2945, %v2975
        %v3004 = vadd.f32 %v2946, %v2976
        %v3005 = vadd.f32 %v2947, %v2977
        %v3006 = vadd.f32 %v2948, %v2978
        %v3007 = vld [vmem:[%s951 + $0x1] sm:$0x1]
        %v3008 = vperm.slane %v3007, 0
        %v3009 = vmul.f32 %v2831, %v3008
        %v3010 = vmul.f32 %v2832, %v3008
        %v3011 = vmul.f32 %v2833, %v3008
        %v3012 = vmul.f32 %v2834, %v3008
        %v3013 = vmul.f32 %v2835, %v3008
        %v3014 = vmul.f32 %v2836, %v3008
        %v3015 = vmul.f32 %v2837, %v3008
        %v3016 = vmul.f32 %v2838, %v3008
        %v3017 = vmul.f32 %v2839, %v3008
        %v3018 = vmul.f32 %v2840, %v3008
        %v3019 = vmul.f32 %v2841, %v3008
        %v3020 = vmul.f32 %v2842, %v3008
        %v3021 = vmul.f32 %v2843, %v3008
        %v3022 = vmul.f32 %v2844, %v3008
        %v3023 = vmul.f32 %v2845, %v3008
        %v3024 = vmul.f32 %v2846, %v3008
        %v3025 = vmul.f32 %v2847, %v3008
        %v3026 = vmul.f32 %v2848, %v3008
        %v3027 = vmul.f32 %v2849, %v3008
        %v3028 = vmul.f32 %v2850, %v3008
        %v3029 = vmul.f32 %v2851, %v3008
        %v3030 = vmul.f32 %v2852, %v3008
        %v3031 = vmul.f32 %v2853, %v3008
        %v3032 = vmul.f32 %v2854, %v3008
        %v3033 = vmul.f32 %v2855, %v3008
        %v3034 = vmul.f32 %v2856, %v3008
        %v3035 = vmul.f32 %v2857, %v3008
        %v3036 = vmul.f32 %v2858, %v3008
        %v3037 = vadd.f32 %v2979, %v3009
        %v3038 = vadd.f32 %v2980, %v3010
        %v3039 = vadd.f32 %v2981, %v3011
        %v3040 = vadd.f32 %v2982, %v3012
        %v3041 = vadd.f32 %v2983, %v3013
        %v3042 = vadd.f32 %v2984, %v3014
        %v3043 = vadd.f32 %v2985, %v3015
        %v3044 = vadd.f32 %v2986, %v3016
        %v3045 = vadd.f32 %v2987, %v3017
        %v3046 = vadd.f32 %v2988, %v3018
        %v3047 = vadd.f32 %v2989, %v3019
        %v3048 = vadd.f32 %v2990, %v3020
        %v3049 = vadd.f32 %v2991, %v3021
        %v3050 = vadd.f32 %v2992, %v3022
        %v3051 = vadd.f32 %v2993, %v3023
        %v3052 = vadd.f32 %v2994, %v3024
        %v3053 = vadd.f32 %v2995, %v3025
        %v3054 = vadd.f32 %v2996, %v3026
        %v3055 = vadd.f32 %v2997, %v3027
        %v3056 = vadd.f32 %v2998, %v3028
        %v3057 = vadd.f32 %v2999, %v3029
        %v3058 = vadd.f32 %v3000, %v3030
        %v3059 = vadd.f32 %v3001, %v3031
        %v3060 = vadd.f32 %v3002, %v3032
        %v3061 = vadd.f32 %v3003, %v3033
        %v3062 = vadd.f32 %v3004, %v3034
        %v3063 = vadd.f32 %v3005, %v3035
        %v3064 = vadd.f32 %v3006, %v3036
        %v3065 = vld [vmem:[%s1010 + $0x1] sm:$0x1]
        %v3066 = vperm.slane %v3065, 0
        %v3067 = vmul.f32 %v2833, %v3066
        %v3068 = vmul.f32 %v2834, %v3066
        %v3069 = vmul.f32 %v2835, %v3066
        %v3070 = vmul.f32 %v2836, %v3066
        %v3071 = vmul.f32 %v2837, %v3066
        %v3072 = vmul.f32 %v2838, %v3066
        %v3073 = vmul.f32 %v2839, %v3066
        %v3074 = vmul.f32 %v2840, %v3066
        %v3075 = vmul.f32 %v2841, %v3066
        %v3076 = vmul.f32 %v2842, %v3066
        %v3077 = vmul.f32 %v2843, %v3066
        %v3078 = vmul.f32 %v2844, %v3066
        %v3079 = vmul.f32 %v2845, %v3066
        %v3080 = vmul.f32 %v2846, %v3066
        %v3081 = vmul.f32 %v2847, %v3066
        %v3082 = vmul.f32 %v2848, %v3066
        %v3083 = vmul.f32 %v2849, %v3066
        %v3084 = vmul.f32 %v2850, %v3066
        %v3085 = vmul.f32 %v2851, %v3066
        %v3086 = vmul.f32 %v2852, %v3066
        %v3087 = vmul.f32 %v2853, %v3066
        %v3088 = vmul.f32 %v2854, %v3066
        %v3089 = vmul.f32 %v2855, %v3066
        %v3090 = vmul.f32 %v2856, %v3066
        %v3091 = vmul.f32 %v2857, %v3066
        %v3092 = vmul.f32 %v2858, %v3066
        %v3093 = vmul.f32 %v2859, %v3066
        %v3094 = vmul.f32 %v2860, %v3066
        %v3095 = vadd.f32 %v3037, %v3067
        %v3096 = vadd.f32 %v3038, %v3068
        %v3097 = vadd.f32 %v3039, %v3069
        %v3098 = vadd.f32 %v3040, %v3070
        %v3099 = vadd.f32 %v3041, %v3071
        %v3100 = vadd.f32 %v3042, %v3072
        %v3101 = vadd.f32 %v3043, %v3073
        %v3102 = vadd.f32 %v3044, %v3074
        %v3103 = vadd.f32 %v3045, %v3075
        %v3104 = vadd.f32 %v3046, %v3076
        %v3105 = vadd.f32 %v3047, %v3077
        %v3106 = vadd.f32 %v3048, %v3078
        %v3107 = vadd.f32 %v3049, %v3079
        %v3108 = vadd.f32 %v3050, %v3080
        %v3109 = vadd.f32 %v3051, %v3081
        %v3110 = vadd.f32 %v3052, %v3082
        %v3111 = vadd.f32 %v3053, %v3083
        %v3112 = vadd.f32 %v3054, %v3084
        %v3113 = vadd.f32 %v3055, %v3085
        %v3114 = vadd.f32 %v3056, %v3086
        %v3115 = vadd.f32 %v3057, %v3087
        %v3116 = vadd.f32 %v3058, %v3088
        %v3117 = vadd.f32 %v3059, %v3089
        %v3118 = vadd.f32 %v3060, %v3090
        %v3119 = vadd.f32 %v3061, %v3091
        %v3120 = vadd.f32 %v3062, %v3092
        %v3121 = vadd.f32 %v3063, %v3093
        %v3122 = vadd.f32 %v3064, %v3094
        %v3123 = vadd.f32 %v2797, %v3095
        %v3124 = vadd.f32 %v2798, %v3096
        %v3125 = vadd.f32 %v2799, %v3097
        %v3126 = vadd.f32 %v2800, %v3098
        %v3127 = vadd.f32 %v2801, %v3099
        %v3128 = vadd.f32 %v2802, %v3100
        %v3129 = vadd.f32 %v2803, %v3101
        %v3130 = vadd.f32 %v2804, %v3102
        %v3131 = vadd.f32 %v2805, %v3103
        %v3132 = vadd.f32 %v2806, %v3104
        %v3133 = vadd.f32 %v2807, %v3105
        %v3134 = vadd.f32 %v2808, %v3106
        %v3135 = vadd.f32 %v2809, %v3107
        %v3136 = vadd.f32 %v2810, %v3108
        %v3137 = vadd.f32 %v2811, %v3109
        %v3138 = vadd.f32 %v2812, %v3110
        %v3139 = vadd.f32 %v2813, %v3111
        %v3140 = vadd.f32 %v2814, %v3112
        %v3141 = vadd.f32 %v2815, %v3113
        %v3142 = vadd.f32 %v2816, %v3114
        %v3143 = vadd.f32 %v2817, %v3115
        %v3144 = vadd.f32 %v2818, %v3116
        %v3145 = vadd.f32 %v2819, %v3117
        %v3146 = vadd.f32 %v2820, %v3118
        %v3147 = vadd.f32 %v2821, %v3119
        %v3148 = vadd.f32 %v2822, %v3120
        %v3149 = vadd.f32 %v2823, %v3121
        %v3150 = vadd.f32 %v2824, %v3122
        %v3151 = vld [vmem:[%s2526 + $0x2] sm:$0xff]
        %v3152 = vld [vmem:[%s2526 + $0xa] sm:$0x3f]
        %v3153 = vld [vmem:[%s2526 + $0x1a] sm:$0xff]
        %v3154 = vld [vmem:[%s2526 + $0x22] sm:$0x3f]
        %v3155 = vld [vmem:[%s2526 + $0x32] sm:$0xff]
        %v3156 = vld [vmem:[%s2526 + $0x3a] sm:$0x3f]
        %v3157 = vld [vmem:[%s2526 + $0x4a] sm:$0xff]
        %v3158 = vld [vmem:[%s2526 + $0x52] sm:$0x3f]
        %v3159 = vld [vmem:[%s2526 + $0x62] sm:$0xff]
        %v3160 = vld [vmem:[%s2526 + $0x6a] sm:$0x3f]
        %v3161 = vld [vmem:[%s2526 + $0x7a] sm:$0xff]
        %v3162 = vld [vmem:[%s2526 + $0x82] sm:$0x3f]
        %v3163 = vld [vmem:[%s2526 + $0x92] sm:$0xff]
        %v3164 = vld [vmem:[%s2526 + $0x9a] sm:$0x3f]
        %v3165 = vld [vmem:[%s2526 + $0xaa] sm:$0xff]
        %v3166 = vld [vmem:[%s2526 + $0xb2] sm:$0x3f]
        %v3167 = vld [vmem:[%s2526 + $0xc2] sm:$0xff]
        %v3168 = vld [vmem:[%s2526 + $0xca] sm:$0x3f]
        %v3169 = vld [vmem:[%s2526 + $0xda] sm:$0xff]
        %v3170 = vld [vmem:[%s2526 + $0xe2] sm:$0x3f]
        %v3171 = vld [vmem:[%s2526 + $0xf2] sm:$0xff]
        %v3172 = vld [vmem:[%s2526 + $0xfa] sm:$0x3f]
        %v3173 = vld [vmem:[%s2526 + $0x10a] sm:$0xff]
        %v3174 = vld [vmem:[%s2526 + $0x112] sm:$0x3f]
        %v3175 = vld [vmem:[%s2526 + $0x122] sm:$0xff]
        %v3176 = vld [vmem:[%s2526 + $0x12a] sm:$0x3f]
        %v3177 = vld [vmem:[%s2526 + $0x13a] sm:$0xff]
        %v3178 = vld [vmem:[%s2526 + $0x142] sm:$0x3f]
        %v3179 = vld [vmem:[%s2526 + $0x152] sm:$0xff]
        %v3180 = vld [vmem:[%s2526 + $0x15a] sm:$0x3f]
        %v3181 = vld [vmem:[%s2526 + $0x16a] sm:$0xff]
        %v3182 = vld [vmem:[%s2526 + $0x172] sm:$0x3f]
        %v3183 = vld [vmem:[%s2526 + $0x182] sm:$0xff]
        %v3184 = vld [vmem:[%s2526 + $0x18a] sm:$0x3f]
        %v3185 = vld [vmem:[%s2526 + $0x19a] sm:$0xff]
        %v3186 = vld [vmem:[%s2526 + $0x1a2] sm:$0x3f]
        %v3187 = vld [vmem:[%s508 + $0x2] sm:$0x1]
        %v3188 = vperm.slane %v3187, 0
        %v3189 = vmul.f32 %v3151, %v3188
        %v3190 = vmul.f32 %v3152, %v3188
        %v3191 = vmul.f32 %v3153, %v3188
        %v3192 = vmul.f32 %v3154, %v3188
        %v3193 = vmul.f32 %v3155, %v3188
        %v3194 = vmul.f32 %v3156, %v3188
        %v3195 = vmul.f32 %v3157, %v3188
        %v3196 = vmul.f32 %v3158, %v3188
        %v3197 = vmul.f32 %v3159, %v3188
        %v3198 = vmul.f32 %v3160, %v3188
        %v3199 = vmul.f32 %v3161, %v3188
        %v3200 = vmul.f32 %v3162, %v3188
        %v3201 = vmul.f32 %v3163, %v3188
        %v3202 = vmul.f32 %v3164, %v3188
        %v3203 = vmul.f32 %v3165, %v3188
        %v3204 = vmul.f32 %v3166, %v3188
        %v3205 = vmul.f32 %v3167, %v3188
        %v3206 = vmul.f32 %v3168, %v3188
        %v3207 = vmul.f32 %v3169, %v3188
        %v3208 = vmul.f32 %v3170, %v3188
        %v3209 = vmul.f32 %v3171, %v3188
        %v3210 = vmul.f32 %v3172, %v3188
        %v3211 = vmul.f32 %v3173, %v3188
        %v3212 = vmul.f32 %v3174, %v3188
        %v3213 = vmul.f32 %v3175, %v3188
        %v3214 = vmul.f32 %v3176, %v3188
        %v3215 = vmul.f32 %v3177, %v3188
        %v3216 = vmul.f32 %v3178, %v3188
        %v3217 = vld [vmem:[%s833 + $0x2] sm:$0x1]
        %v3218 = vperm.slane %v3217, 0
        %v3219 = vmul.f32 %v3153, %v3218
        %v3220 = vmul.f32 %v3154, %v3218
        %v3221 = vmul.f32 %v3155, %v3218
        %v3222 = vmul.f32 %v3156, %v3218
        %v3223 = vmul.f32 %v3157, %v3218
        %v3224 = vmul.f32 %v3158, %v3218
        %v3225 = vmul.f32 %v3159, %v3218
        %v3226 = vmul.f32 %v3160, %v3218
        %v3227 = vmul.f32 %v3161, %v3218
        %v3228 = vmul.f32 %v3162, %v3218
        %v3229 = vmul.f32 %v3163, %v3218
        %v3230 = vmul.f32 %v3164, %v3218
        %v3231 = vmul.f32 %v3165, %v3218
        %v3232 = vmul.f32 %v3166, %v3218
        %v3233 = vmul.f32 %v3167, %v3218
        %v3234 = vmul.f32 %v3168, %v3218
        %v3235 = vmul.f32 %v3169, %v3218
        %v3236 = vmul.f32 %v3170, %v3218
        %v3237 = vmul.f32 %v3171, %v3218
        %v3238 = vmul.f32 %v3172, %v3218
        %v3239 = vmul.f32 %v3173, %v3218
        %v3240 = vmul.f32 %v3174, %v3218
        %v3241 = vmul.f32 %v3175, %v3218
        %v3242 = vmul.f32 %v3176, %v3218
        %v3243 = vmul.f32 %v3177, %v3218
        %v3244 = vmul.f32 %v3178, %v3218
        %v3245 = vmul.f32 %v3179, %v3218
        %v3246 = vmul.f32 %v3180, %v3218
        %v3247 = vadd.f32 %v3189, %v3219
        %v3248 = vadd.f32 %v3190, %v3220
        %v3249 = vadd.f32 %v3191, %v3221
        %v3250 = vadd.f32 %v3192, %v3222
        %v3251 = vadd.f32 %v3193, %v3223
        %v3252 = vadd.f32 %v3194, %v3224
        %v3253 = vadd.f32 %v3195, %v3225
        %v3254 = vadd.f32 %v3196, %v3226
        %v3255 = vadd.f32 %v3197, %v3227
        %v3256 = vadd.f32 %v3198, %v3228
        %v3257 = vadd.f32 %v3199, %v3229
        %v3258 = vadd.f32 %v3200, %v3230
        %v3259 = vadd.f32 %v3201, %v3231
        %v3260 = vadd.f32 %v3202, %v3232
        %v3261 = vadd.f32 %v3203, %v3233
        %v3262 = vadd.f32 %v3204, %v3234
        %v3263 = vadd.f32 %v3205, %v3235
        %v3264 = vadd.f32 %v3206, %v3236
        %v3265 = vadd.f32 %v3207, %v3237
        %v3266 = vadd.f32 %v3208, %v3238
        %v3267 = vadd.f32 %v3209, %v3239
        %v3268 = vadd.f32 %v3210, %v3240
        %v3269 = vadd.f32 %v3211, %v3241
        %v3270 = vadd.f32 %v3212, %v3242
        %v3271 = vadd.f32 %v3213, %v3243
        %v3272 = vadd.f32 %v3214, %v3244
        %v3273 = vadd.f32 %v3215, %v3245
        %v3274 = vadd.f32 %v3216, %v3246
        %v3275 = vld [vmem:[%s892 + $0x2] sm:$0x1]
        %v3276 = vperm.slane %v3275, 0
        %v3277 = vmul.f32 %v3155, %v3276
        %v3278 = vmul.f32 %v3156, %v3276
        %v3279 = vmul.f32 %v3157, %v3276
        %v3280 = vmul.f32 %v3158, %v3276
        %v3281 = vmul.f32 %v3159, %v3276
        %v3282 = vmul.f32 %v3160, %v3276
        %v3283 = vmul.f32 %v3161, %v3276
        %v3284 = vmul.f32 %v3162, %v3276
        %v3285 = vmul.f32 %v3163, %v3276
        %v3286 = vmul.f32 %v3164, %v3276
        %v3287 = vmul.f32 %v3165, %v3276
        %v3288 = vmul.f32 %v3166, %v3276
        %v3289 = vmul.f32 %v3167, %v3276
        %v3290 = vmul.f32 %v3168, %v3276
        %v3291 = vmul.f32 %v3169, %v3276
        %v3292 = vmul.f32 %v3170, %v3276
        %v3293 = vmul.f32 %v3171, %v3276
        %v3294 = vmul.f32 %v3172, %v3276
        %v3295 = vmul.f32 %v3173, %v3276
        %v3296 = vmul.f32 %v3174, %v3276
        %v3297 = vmul.f32 %v3175, %v3276
        %v3298 = vmul.f32 %v3176, %v3276
        %v3299 = vmul.f32 %v3177, %v3276
        %v3300 = vmul.f32 %v3178, %v3276
        %v3301 = vmul.f32 %v3179, %v3276
        %v3302 = vmul.f32 %v3180, %v3276
        %v3303 = vmul.f32 %v3181, %v3276
        %v3304 = vmul.f32 %v3182, %v3276
        %v3305 = vadd.f32 %v3247, %v3277
        %v3306 = vadd.f32 %v3248, %v3278
        %v3307 = vadd.f32 %v3249, %v3279
        %v3308 = vadd.f32 %v3250, %v3280
        %v3309 = vadd.f32 %v3251, %v3281
        %v3310 = vadd.f32 %v3252, %v3282
        %v3311 = vadd.f32 %v3253, %v3283
        %v3312 = vadd.f32 %v3254, %v3284
        %v3313 = vadd.f32 %v3255, %v3285
        %v3314 = vadd.f32 %v3256, %v3286
        %v3315 = vadd.f32 %v3257, %v3287
        %v3316 = vadd.f32 %v3258, %v3288
        %v3317 = vadd.f32 %v3259, %v3289
        %v3318 = vadd.f32 %v3260, %v3290
        %v3319 = vadd.f32 %v3261, %v3291
        %v3320 = vadd.f32 %v3262, %v3292
        %v3321 = vadd.f32 %v3263, %v3293
        %v3322 = vadd.f32 %v3264, %v3294
        %v3323 = vadd.f32 %v3265, %v3295
        %v3324 = vadd.f32 %v3266, %v3296
        %v3325 = vadd.f32 %v3267, %v3297
        %v3326 = vadd.f32 %v3268, %v3298
        %v3327 = vadd.f32 %v3269, %v3299
        %v3328 = vadd.f32 %v3270, %v3300
        %v3329 = vadd.f32 %v3271, %v3301
        %v3330 = vadd.f32 %v3272, %v3302
        %v3331 = vadd.f32 %v3273, %v3303
        %v3332 = vadd.f32 %v3274, %v3304
        %v3333 = vld [vmem:[%s951 + $0x2] sm:$0x1]
        %v3334 = vperm.slane %v3333, 0
        %v3335 = vmul.f32 %v3157, %v3334
        %v3336 = vmul.f32 %v3158, %v3334
        %v3337 = vmul.f32 %v3159, %v3334
        %v3338 = vmul.f32 %v3160, %v3334
        %v3339 = vmul.f32 %v3161, %v3334
        %v3340 = vmul.f32 %v3162, %v3334
        %v3341 = vmul.f32 %v3163, %v3334
        %v3342 = vmul.f32 %v3164, %v3334
        %v3343 = vmul.f32 %v3165, %v3334
        %v3344 = vmul.f32 %v3166, %v3334
        %v3345 = vmul.f32 %v3167, %v3334
        %v3346 = vmul.f32 %v3168, %v3334
        %v3347 = vmul.f32 %v3169, %v3334
        %v3348 = vmul.f32 %v3170, %v3334
        %v3349 = vmul.f32 %v3171, %v3334
        %v3350 = vmul.f32 %v3172, %v3334
        %v3351 = vmul.f32 %v3173, %v3334
        %v3352 = vmul.f32 %v3174, %v3334
        %v3353 = vmul.f32 %v3175, %v3334
        %v3354 = vmul.f32 %v3176, %v3334
        %v3355 = vmul.f32 %v3177, %v3334
        %v3356 = vmul.f32 %v3178, %v3334
        %v3357 = vmul.f32 %v3179, %v3334
        %v3358 = vmul.f32 %v3180, %v3334
        %v3359 = vmul.f32 %v3181, %v3334
        %v3360 = vmul.f32 %v3182, %v3334
        %v3361 = vmul.f32 %v3183, %v3334
        %v3362 = vmul.f32 %v3184, %v3334
        %v3363 = vadd.f32 %v3305, %v3335
        %v3364 = vadd.f32 %v3306, %v3336
        %v3365 = vadd.f32 %v3307, %v3337
        %v3366 = vadd.f32 %v3308, %v3338
        %v3367 = vadd.f32 %v3309, %v3339
        %v3368 = vadd.f32 %v3310, %v3340
        %v3369 = vadd.f32 %v3311, %v3341
        %v3370 = vadd.f32 %v3312, %v3342
        %v3371 = vadd.f32 %v3313, %v3343
        %v3372 = vadd.f32 %v3314, %v3344
        %v3373 = vadd.f32 %v3315, %v3345
        %v3374 = vadd.f32 %v3316, %v3346
        %v3375 = vadd.f32 %v3317, %v3347
        %v3376 = vadd.f32 %v3318, %v3348
        %v3377 = vadd.f32 %v3319, %v3349
        %v3378 = vadd.f32 %v3320, %v3350
        %v3379 = vadd.f32 %v3321, %v3351
        %v3380 = vadd.f32 %v3322, %v3352
        %v3381 = vadd.f32 %v3323, %v3353
        %v3382 = vadd.f32 %v3324, %v3354
        %v3383 = vadd.f32 %v3325, %v3355
        %v3384 = vadd.f32 %v3326, %v3356
        %v3385 = vadd.f32 %v3327, %v3357
        %v3386 = vadd.f32 %v3328, %v3358
        %v3387 = vadd.f32 %v3329, %v3359
        %v3388 = vadd.f32 %v3330, %v3360
        %v3389 = vadd.f32 %v3331, %v3361
        %v3390 = vadd.f32 %v3332, %v3362
        %v3391 = vld [vmem:[%s1010 + $0x2] sm:$0x1]
        %v3392 = vperm.slane %v3391, 0
        %v3393 = vmul.f32 %v3159, %v3392
        %v3394 = vmul.f32 %v3160, %v3392
        %v3395 = vmul.f32 %v3161, %v3392
        %v3396 = vmul.f32 %v3162, %v3392
        %v3397 = vmul.f32 %v3163, %v3392
        %v3398 = vmul.f32 %v3164, %v3392
        %v3399 = vmul.f32 %v3165, %v3392
        %v3400 = vmul.f32 %v3166, %v3392
        %v3401 = vmul.f32 %v3167, %v3392
        %v3402 = vmul.f32 %v3168, %v3392
        %v3403 = vmul.f32 %v3169, %v3392
        %v3404 = vmul.f32 %v3170, %v3392
        %v3405 = vmul.f32 %v3171, %v3392
        %v3406 = vmul.f32 %v3172, %v3392
        %v3407 = vmul.f32 %v3173, %v3392
        %v3408 = vmul.f32 %v3174, %v3392
        %v3409 = vmul.f32 %v3175, %v3392
        %v3410 = vmul.f32 %v3176, %v3392
        %v3411 = vmul.f32 %v3177, %v3392
        %v3412 = vmul.f32 %v3178, %v3392
        %v3413 = vmul.f32 %v3179, %v3392
        %v3414 = vmul.f32 %v3180, %v3392
        %v3415 = vmul.f32 %v3181, %v3392
        %v3416 = vmul.f32 %v3182, %v3392
        %v3417 = vmul.f32 %v3183, %v3392
        %v3418 = vmul.f32 %v3184, %v3392
        %v3419 = vmul.f32 %v3185, %v3392
        %v3420 = vmul.f32 %v3186, %v3392
        %v3421 = vadd.f32 %v3363, %v3393
        %v3422 = vadd.f32 %v3364, %v3394
        %v3423 = vadd.f32 %v3365, %v3395
        %v3424 = vadd.f32 %v3366, %v3396
        %v3425 = vadd.f32 %v3367, %v3397
        %v3426 = vadd.f32 %v3368, %v3398
        %v3427 = vadd.f32 %v3369, %v3399
        %v3428 = vadd.f32 %v3370, %v3400
        %v3429 = vadd.f32 %v3371, %v3401
        %v3430 = vadd.f32 %v3372, %v3402
        %v3431 = vadd.f32 %v3373, %v3403
        %v3432 = vadd.f32 %v3374, %v3404
        %v3433 = vadd.f32 %v3375, %v3405
        %v3434 = vadd.f32 %v3376, %v3406
        %v3435 = vadd.f32 %v3377, %v3407
        %v3436 = vadd.f32 %v3378, %v3408
        %v3437 = vadd.f32 %v3379, %v3409
        %v3438 = vadd.f32 %v3380, %v3410
        %v3439 = vadd.f32 %v3381, %v3411
        %v3440 = vadd.f32 %v3382, %v3412
        %v3441 = vadd.f32 %v3383, %v3413
        %v3442 = vadd.f32 %v3384, %v3414
        %v3443 = vadd.f32 %v3385, %v3415
        %v3444 = vadd.f32 %v3386, %v3416
        %v3445 = vadd.f32 %v3387, %v3417
        %v3446 = vadd.f32 %v3388, %v3418
        %v3447 = vadd.f32 %v3389, %v3419
        %v3448 = vadd.f32 %v3390, %v3420
        %v3449 = vadd.f32 %v3123, %v3421
        %v3450 = vadd.f32 %v3124, %v3422
        %v3451 = vadd.f32 %v3125, %v3423
        %v3452 = vadd.f32 %v3126, %v3424
        %v3453 = vadd.f32 %v3127, %v3425
        %v3454 = vadd.f32 %v3128, %v3426
        %v3455 = vadd.f32 %v3129, %v3427
        %v3456 = vadd.f32 %v3130, %v3428
        %v3457 = vadd.f32 %v3131, %v3429
        %v3458 = vadd.f32 %v3132, %v3430
        %v3459 = vadd.f32 %v3133, %v3431
        %v3460 = vadd.f32 %v3134, %v3432
        %v3461 = vadd.f32 %v3135, %v3433
        %v3462 = vadd.f32 %v3136, %v3434
        %v3463 = vadd.f32 %v3137, %v3435
        %v3464 = vadd.f32 %v3138, %v3436
        %v3465 = vadd.f32 %v3139, %v3437
        %v3466 = vadd.f32 %v3140, %v3438
        %v3467 = vadd.f32 %v3141, %v3439
        %v3468 = vadd.f32 %v3142, %v3440
        %v3469 = vadd.f32 %v3143, %v3441
        %v3470 = vadd.f32 %v3144, %v3442
        %v3471 = vadd.f32 %v3145, %v3443
        %v3472 = vadd.f32 %v3146, %v3444
        %v3473 = vadd.f32 %v3147, %v3445
        %v3474 = vadd.f32 %v3148, %v3446
        %v3475 = vadd.f32 %v3149, %v3447
        %v3476 = vadd.f32 %v3150, %v3448
        %v3477 = vld [vmem:[%s2526 + $0x3] sm:$0xff]
        %v3478 = vld [vmem:[%s2526 + $0xb] sm:$0x3f]
        %v3479 = vld [vmem:[%s2526 + $0x1b] sm:$0xff]
        %v3480 = vld [vmem:[%s2526 + $0x23] sm:$0x3f]
        %v3481 = vld [vmem:[%s2526 + $0x33] sm:$0xff]
        %v3482 = vld [vmem:[%s2526 + $0x3b] sm:$0x3f]
        %v3483 = vld [vmem:[%s2526 + $0x4b] sm:$0xff]
        %v3484 = vld [vmem:[%s2526 + $0x53] sm:$0x3f]
        %v3485 = vld [vmem:[%s2526 + $0x63] sm:$0xff]
        %v3486 = vld [vmem:[%s2526 + $0x6b] sm:$0x3f]
        %v3487 = vld [vmem:[%s2526 + $0x7b] sm:$0xff]
        %v3488 = vld [vmem:[%s2526 + $0x83] sm:$0x3f]
        %v3489 = vld [vmem:[%s2526 + $0x93] sm:$0xff]
        %v3490 = vld [vmem:[%s2526 + $0x9b] sm:$0x3f]
        %v3491 = vld [vmem:[%s2526 + $0xab] sm:$0xff]
        %v3492 = vld [vmem:[%s2526 + $0xb3] sm:$0x3f]
        %v3493 = vld [vmem:[%s2526 + $0xc3] sm:$0xff]
        %v3494 = vld [vmem:[%s2526 + $0xcb] sm:$0x3f]
        %v3495 = vld [vmem:[%s2526 + $0xdb] sm:$0xff]
        %v3496 = vld [vmem:[%s2526 + $0xe3] sm:$0x3f]
        %v3497 = vld [vmem:[%s2526 + $0xf3] sm:$0xff]
        %v3498 = vld [vmem:[%s2526 + $0xfb] sm:$0x3f]
        %v3499 = vld [vmem:[%s2526 + $0x10b] sm:$0xff]
        %v3500 = vld [vmem:[%s2526 + $0x113] sm:$0x3f]
        %v3501 = vld [vmem:[%s2526 + $0x123] sm:$0xff]
        %v3502 = vld [vmem:[%s2526 + $0x12b] sm:$0x3f]
        %v3503 = vld [vmem:[%s2526 + $0x13b] sm:$0xff]
        %v3504 = vld [vmem:[%s2526 + $0x143] sm:$0x3f]
        %v3505 = vld [vmem:[%s2526 + $0x153] sm:$0xff]
        %v3506 = vld [vmem:[%s2526 + $0x15b] sm:$0x3f]
        %v3507 = vld [vmem:[%s2526 + $0x16b] sm:$0xff]
        %v3508 = vld [vmem:[%s2526 + $0x173] sm:$0x3f]
        %v3509 = vld [vmem:[%s2526 + $0x183] sm:$0xff]
        %v3510 = vld [vmem:[%s2526 + $0x18b] sm:$0x3f]
        %v3511 = vld [vmem:[%s2526 + $0x19b] sm:$0xff]
        %v3512 = vld [vmem:[%s2526 + $0x1a3] sm:$0x3f]
        %v3513 = vld [vmem:[%s508 + $0x3] sm:$0x1]
        %v3514 = vperm.slane %v3513, 0
        %v3515 = vmul.f32 %v3477, %v3514
        %v3516 = vmul.f32 %v3478, %v3514
        %v3517 = vmul.f32 %v3479, %v3514
        %v3518 = vmul.f32 %v3480, %v3514
        %v3519 = vmul.f32 %v3481, %v3514
        %v3520 = vmul.f32 %v3482, %v3514
        %v3521 = vmul.f32 %v3483, %v3514
        %v3522 = vmul.f32 %v3484, %v3514
        %v3523 = vmul.f32 %v3485, %v3514
        %v3524 = vmul.f32 %v3486, %v3514
        %v3525 = vmul.f32 %v3487, %v3514
        %v3526 = vmul.f32 %v3488, %v3514
        %v3527 = vmul.f32 %v3489, %v3514
        %v3528 = vmul.f32 %v3490, %v3514
        %v3529 = vmul.f32 %v3491, %v3514
        %v3530 = vmul.f32 %v3492, %v3514
        %v3531 = vmul.f32 %v3493, %v3514
        %v3532 = vmul.f32 %v3494, %v3514
        %v3533 = vmul.f32 %v3495, %v3514
        %v3534 = vmul.f32 %v3496, %v3514
        %v3535 = vmul.f32 %v3497, %v3514
        %v3536 = vmul.f32 %v3498, %v3514
        %v3537 = vmul.f32 %v3499, %v3514
        %v3538 = vmul.f32 %v3500, %v3514
        %v3539 = vmul.f32 %v3501, %v3514
        %v3540 = vmul.f32 %v3502, %v3514
        %v3541 = vmul.f32 %v3503, %v3514
        %v3542 = vmul.f32 %v3504, %v3514
        %v3543 = vld [vmem:[%s833 + $0x3] sm:$0x1]
        %v3544 = vperm.slane %v3543, 0
        %v3545 = vmul.f32 %v3479, %v3544
        %v3546 = vmul.f32 %v3480, %v3544
        %v3547 = vmul.f32 %v3481, %v3544
        %v3548 = vmul.f32 %v3482, %v3544
        %v3549 = vmul.f32 %v3483, %v3544
        %v3550 = vmul.f32 %v3484, %v3544
        %v3551 = vmul.f32 %v3485, %v3544
        %v3552 = vmul.f32 %v3486, %v3544
        %v3553 = vmul.f32 %v3487, %v3544
        %v3554 = vmul.f32 %v3488, %v3544
        %v3555 = vmul.f32 %v3489, %v3544
        %v3556 = vmul.f32 %v3490, %v3544
        %v3557 = vmul.f32 %v3491, %v3544
        %v3558 = vmul.f32 %v3492, %v3544
        %v3559 = vmul.f32 %v3493, %v3544
        %v3560 = vmul.f32 %v3494, %v3544
        %v3561 = vmul.f32 %v3495, %v3544
        %v3562 = vmul.f32 %v3496, %v3544
        %v3563 = vmul.f32 %v3497, %v3544
        %v3564 = vmul.f32 %v3498, %v3544
        %v3565 = vmul.f32 %v3499, %v3544
        %v3566 = vmul.f32 %v3500, %v3544
        %v3567 = vmul.f32 %v3501, %v3544
        %v3568 = vmul.f32 %v3502, %v3544
        %v3569 = vmul.f32 %v3503, %v3544
        %v3570 = vmul.f32 %v3504, %v3544
        %v3571 = vmul.f32 %v3505, %v3544
        %v3572 = vmul.f32 %v3506, %v3544
        %v3573 = vadd.f32 %v3515, %v3545
        %v3574 = vadd.f32 %v3516, %v3546
        %v3575 = vadd.f32 %v3517, %v3547
        %v3576 = vadd.f32 %v3518, %v3548
        %v3577 = vadd.f32 %v3519, %v3549
        %v3578 = vadd.f32 %v3520, %v3550
        %v3579 = vadd.f32 %v3521, %v3551
        %v3580 = vadd.f32 %v3522, %v3552
        %v3581 = vadd.f32 %v3523, %v3553
        %v3582 = vadd.f32 %v3524, %v3554
        %v3583 = vadd.f32 %v3525, %v3555
        %v3584 = vadd.f32 %v3526, %v3556
        %v3585 = vadd.f32 %v3527, %v3557
        %v3586 = vadd.f32 %v3528, %v3558
        %v3587 = vadd.f32 %v3529, %v3559
        %v3588 = vadd.f32 %v3530, %v3560
        %v3589 = vadd.f32 %v3531, %v3561
        %v3590 = vadd.f32 %v3532, %v3562
        %v3591 = vadd.f32 %v3533, %v3563
        %v3592 = vadd.f32 %v3534, %v3564
        %v3593 = vadd.f32 %v3535, %v3565
        %v3594 = vadd.f32 %v3536, %v3566
        %v3595 = vadd.f32 %v3537, %v3567
        %v3596 = vadd.f32 %v3538, %v3568
        %v3597 = vadd.f32 %v3539, %v3569
        %v3598 = vadd.f32 %v3540, %v3570
        %v3599 = vadd.f32 %v3541, %v3571
        %v3600 = vadd.f32 %v3542, %v3572
        %v3601 = vld [vmem:[%s892 + $0x3] sm:$0x1]
        %v3602 = vperm.slane %v3601, 0
        %v3603 = vmul.f32 %v3481, %v3602
        %v3604 = vmul.f32 %v3482, %v3602
        %v3605 = vmul.f32 %v3483, %v3602
        %v3606 = vmul.f32 %v3484, %v3602
        %v3607 = vmul.f32 %v3485, %v3602
        %v3608 = vmul.f32 %v3486, %v3602
        %v3609 = vmul.f32 %v3487, %v3602
        %v3610 = vmul.f32 %v3488, %v3602
        %v3611 = vmul.f32 %v3489, %v3602
        %v3612 = vmul.f32 %v3490, %v3602
        %v3613 = vmul.f32 %v3491, %v3602
        %v3614 = vmul.f32 %v3492, %v3602
        %v3615 = vmul.f32 %v3493, %v3602
        %v3616 = vmul.f32 %v3494, %v3602
        %v3617 = vmul.f32 %v3495, %v3602
        %v3618 = vmul.f32 %v3496, %v3602
        %v3619 = vmul.f32 %v3497, %v3602
        %v3620 = vmul.f32 %v3498, %v3602
        %v3621 = vmul.f32 %v3499, %v3602
        %v3622 = vmul.f32 %v3500, %v3602
        %v3623 = vmul.f32 %v3501, %v3602
        %v3624 = vmul.f32 %v3502, %v3602
        %v3625 = vmul.f32 %v3503, %v3602
        %v3626 = vmul.f32 %v3504, %v3602
        %v3627 = vmul.f32 %v3505, %v3602
        %v3628 = vmul.f32 %v3506, %v3602
        %v3629 = vmul.f32 %v3507, %v3602
        %v3630 = vmul.f32 %v3508, %v3602
        %v3631 = vadd.f32 %v3573, %v3603
        %v3632 = vadd.f32 %v3574, %v3604
        %v3633 = vadd.f32 %v3575, %v3605
        %v3634 = vadd.f32 %v3576, %v3606
        %v3635 = vadd.f32 %v3577, %v3607
        %v3636 = vadd.f32 %v3578, %v3608
        %v3637 = vadd.f32 %v3579, %v3609
        %v3638 = vadd.f32 %v3580, %v3610
        %v3639 = vadd.f32 %v3581, %v3611
        %v3640 = vadd.f32 %v3582, %v3612
        %v3641 = vadd.f32 %v3583, %v3613
        %v3642 = vadd.f32 %v3584, %v3614
        %v3643 = vadd.f32 %v3585, %v3615
        %v3644 = vadd.f32 %v3586, %v3616
        %v3645 = vadd.f32 %v3587, %v3617
        %v3646 = vadd.f32 %v3588, %v3618
        %v3647 = vadd.f32 %v3589, %v3619
        %v3648 = vadd.f32 %v3590, %v3620
        %v3649 = vadd.f32 %v3591, %v3621
        %v3650 = vadd.f32 %v3592, %v3622
        %v3651 = vadd.f32 %v3593, %v3623
        %v3652 = vadd.f32 %v3594, %v3624
        %v3653 = vadd.f32 %v3595, %v3625
        %v3654 = vadd.f32 %v3596, %v3626
        %v3655 = vadd.f32 %v3597, %v3627
        %v3656 = vadd.f32 %v3598, %v3628
        %v3657 = vadd.f32 %v3599, %v3629
        %v3658 = vadd.f32 %v3600, %v3630
        %v3659 = vld [vmem:[%s951 + $0x3] sm:$0x1]
        %v3660 = vperm.slane %v3659, 0
        %v3661 = vmul.f32 %v3483, %v3660
        %v3662 = vmul.f32 %v3484, %v3660
        %v3663 = vmul.f32 %v3485, %v3660
        %v3664 = vmul.f32 %v3486, %v3660
        %v3665 = vmul.f32 %v3487, %v3660
        %v3666 = vmul.f32 %v3488, %v3660
        %v3667 = vmul.f32 %v3489, %v3660
        %v3668 = vmul.f32 %v3490, %v3660
        %v3669 = vmul.f32 %v3491, %v3660
        %v3670 = vmul.f32 %v3492, %v3660
        %v3671 = vmul.f32 %v3493, %v3660
        %v3672 = vmul.f32 %v3494, %v3660
        %v3673 = vmul.f32 %v3495, %v3660
        %v3674 = vmul.f32 %v3496, %v3660
        %v3675 = vmul.f32 %v3497, %v3660
        %v3676 = vmul.f32 %v3498, %v3660
        %v3677 = vmul.f32 %v3499, %v3660
        %v3678 = vmul.f32 %v3500, %v3660
        %v3679 = vmul.f32 %v3501, %v3660
        %v3680 = vmul.f32 %v3502, %v3660
        %v3681 = vmul.f32 %v3503, %v3660
        %v3682 = vmul.f32 %v3504, %v3660
        %v3683 = vmul.f32 %v3505, %v3660
        %v3684 = vmul.f32 %v3506, %v3660
        %v3685 = vmul.f32 %v3507, %v3660
        %v3686 = vmul.f32 %v3508, %v3660
        %v3687 = vmul.f32 %v3509, %v3660
        %v3688 = vmul.f32 %v3510, %v3660
        %v3689 = vadd.f32 %v3631, %v3661
        %v3690 = vadd.f32 %v3632, %v3662
        %v3691 = vadd.f32 %v3633, %v3663
        %v3692 = vadd.f32 %v3634, %v3664
        %v3693 = vadd.f32 %v3635, %v3665
        %v3694 = vadd.f32 %v3636, %v3666
        %v3695 = vadd.f32 %v3637, %v3667
        %v3696 = vadd.f32 %v3638, %v3668
        %v3697 = vadd.f32 %v3639, %v3669
        %v3698 = vadd.f32 %v3640, %v3670
        %v3699 = vadd.f32 %v3641, %v3671
        %v3700 = vadd.f32 %v3642, %v3672
        %v3701 = vadd.f32 %v3643, %v3673
        %v3702 = vadd.f32 %v3644, %v3674
        %v3703 = vadd.f32 %v3645, %v3675
        %v3704 = vadd.f32 %v3646, %v3676
        %v3705 = vadd.f32 %v3647, %v3677
        %v3706 = vadd.f32 %v3648, %v3678
        %v3707 = vadd.f32 %v3649, %v3679
        %v3708 = vadd.f32 %v3650, %v3680
        %v3709 = vadd.f32 %v3651, %v3681
        %v3710 = vadd.f32 %v3652, %v3682
        %v3711 = vadd.f32 %v3653, %v3683
        %v3712 = vadd.f32 %v3654, %v3684
        %v3713 = vadd.f32 %v3655, %v3685
        %v3714 = vadd.f32 %v3656, %v3686
        %v3715 = vadd.f32 %v3657, %v3687
        %v3716 = vadd.f32 %v3658, %v3688
        %v3717 = vld [vmem:[%s1010 + $0x3] sm:$0x1]
        %v3718 = vperm.slane %v3717, 0
        %v3719 = vmul.f32 %v3485, %v3718
        %v3720 = vmul.f32 %v3486, %v3718
        %v3721 = vmul.f32 %v3487, %v3718
        %v3722 = vmul.f32 %v3488, %v3718
        %v3723 = vmul.f32 %v3489, %v3718
        %v3724 = vmul.f32 %v3490, %v3718
        %v3725 = vmul.f32 %v3491, %v3718
        %v3726 = vmul.f32 %v3492, %v3718
        %v3727 = vmul.f32 %v3493, %v3718
        %v3728 = vmul.f32 %v3494, %v3718
        %v3729 = vmul.f32 %v3495, %v3718
        %v3730 = vmul.f32 %v3496, %v3718
        %v3731 = vmul.f32 %v3497, %v3718
        %v3732 = vmul.f32 %v3498, %v3718
        %v3733 = vmul.f32 %v3499, %v3718
        %v3734 = vmul.f32 %v3500, %v3718
        %v3735 = vmul.f32 %v3501, %v3718
        %v3736 = vmul.f32 %v3502, %v3718
        %v3737 = vmul.f32 %v3503, %v3718
        %v3738 = vmul.f32 %v3504, %v3718
        %v3739 = vmul.f32 %v3505, %v3718
        %v3740 = vmul.f32 %v3506, %v3718
        %v3741 = vmul.f32 %v3507, %v3718
        %v3742 = vmul.f32 %v3508, %v3718
        %v3743 = vmul.f32 %v3509, %v3718
        %v3744 = vmul.f32 %v3510, %v3718
        %v3745 = vmul.f32 %v3511, %v3718
        %v3746 = vmul.f32 %v3512, %v3718
        %v3747 = vadd.f32 %v3689, %v3719
        %v3748 = vadd.f32 %v3690, %v3720
        %v3749 = vadd.f32 %v3691, %v3721
        %v3750 = vadd.f32 %v3692, %v3722
        %v3751 = vadd.f32 %v3693, %v3723
        %v3752 = vadd.f32 %v3694, %v3724
        %v3753 = vadd.f32 %v3695, %v3725
        %v3754 = vadd.f32 %v3696, %v3726
        %v3755 = vadd.f32 %v3697, %v3727
        %v3756 = vadd.f32 %v3698, %v3728
        %v3757 = vadd.f32 %v3699, %v3729
        %v3758 = vadd.f32 %v3700, %v3730
        %v3759 = vadd.f32 %v3701, %v3731
        %v3760 = vadd.f32 %v3702, %v3732
        %v3761 = vadd.f32 %v3703, %v3733
        %v3762 = vadd.f32 %v3704, %v3734
        %v3763 = vadd.f32 %v3705, %v3735
        %v3764 = vadd.f32 %v3706, %v3736
        %v3765 = vadd.f32 %v3707, %v3737
        %v3766 = vadd.f32 %v3708, %v3738
        %v3767 = vadd.f32 %v3709, %v3739
        %v3768 = vadd.f32 %v3710, %v3740
        %v3769 = vadd.f32 %v3711, %v3741
        %v3770 = vadd.f32 %v3712, %v3742
        %v3771 = vadd.f32 %v3713, %v3743
        %v3772 = vadd.f32 %v3714, %v3744
        %v3773 = vadd.f32 %v3715, %v3745
        %v3774 = vadd.f32 %v3716, %v3746
        %v3775 = vadd.f32 %v3449, %v3747
        %v3776 = vadd.f32 %v3450, %v3748
        %v3777 = vadd.f32 %v3451, %v3749
        %v3778 = vadd.f32 %v3452, %v3750
        %v3779 = vadd.f32 %v3453, %v3751
        %v3780 = vadd.f32 %v3454, %v3752
        %v3781 = vadd.f32 %v3455, %v3753
        %v3782 = vadd.f32 %v3456, %v3754
        %v3783 = vadd.f32 %v3457, %v3755
        %v3784 = vadd.f32 %v3458, %v3756
        %v3785 = vadd.f32 %v3459, %v3757
        %v3786 = vadd.f32 %v3460, %v3758
        %v3787 = vadd.f32 %v3461, %v3759
        %v3788 = vadd.f32 %v3462, %v3760
        %v3789 = vadd.f32 %v3463, %v3761
        %v3790 = vadd.f32 %v3464, %v3762
        %v3791 = vadd.f32 %v3465, %v3763
        %v3792 = vadd.f32 %v3466, %v3764
        %v3793 = vadd.f32 %v3467, %v3765
        %v3794 = vadd.f32 %v3468, %v3766
        %v3795 = vadd.f32 %v3469, %v3767
        %v3796 = vadd.f32 %v3470, %v3768
        %v3797 = vadd.f32 %v3471, %v3769
        %v3798 = vadd.f32 %v3472, %v3770
        %v3799 = vadd.f32 %v3473, %v3771
        %v3800 = vadd.f32 %v3474, %v3772
        %v3801 = vadd.f32 %v3475, %v3773
        %v3802 = vadd.f32 %v3476, %v3774
        %v3803 = vld [vmem:[%s2526 + $0x4] sm:$0xff]
        %v3804 = vld [vmem:[%s2526 + $0xc] sm:$0x3f]
        %v3805 = vld [vmem:[%s2526 + $0x1c] sm:$0xff]
        %v3806 = vld [vmem:[%s2526 + $0x24] sm:$0x3f]
        %v3807 = vld [vmem:[%s2526 + $0x34] sm:$0xff]
        %v3808 = vld [vmem:[%s2526 + $0x3c] sm:$0x3f]
        %v3809 = vld [vmem:[%s2526 + $0x4c] sm:$0xff]
        %v3810 = vld [vmem:[%s2526 + $0x54] sm:$0x3f]
        %v3811 = vld [vmem:[%s2526 + $0x64] sm:$0xff]
        %v3812 = vld [vmem:[%s2526 + $0x6c] sm:$0x3f]
        %v3813 = vld [vmem:[%s2526 + $0x7c] sm:$0xff]
        %v3814 = vld [vmem:[%s2526 + $0x84] sm:$0x3f]
        %v3815 = vld [vmem:[%s2526 + $0x94] sm:$0xff]
        %v3816 = vld [vmem:[%s2526 + $0x9c] sm:$0x3f]
        %v3817 = vld [vmem:[%s2526 + $0xac] sm:$0xff]
        %v3818 = vld [vmem:[%s2526 + $0xb4] sm:$0x3f]
        %v3819 = vld [vmem:[%s2526 + $0xc4] sm:$0xff]
        %v3820 = vld [vmem:[%s2526 + $0xcc] sm:$0x3f]
        %v3821 = vld [vmem:[%s2526 + $0xdc] sm:$0xff]
        %v3822 = vld [vmem:[%s2526 + $0xe4] sm:$0x3f]
        %v3823 = vld [vmem:[%s2526 + $0xf4] sm:$0xff]
        %v3824 = vld [vmem:[%s2526 + $0xfc] sm:$0x3f]
        %v3825 = vld [vmem:[%s2526 + $0x10c] sm:$0xff]
        %v3826 = vld [vmem:[%s2526 + $0x114] sm:$0x3f]
        %v3827 = vld [vmem:[%s2526 + $0x124] sm:$0xff]
        %v3828 = vld [vmem:[%s2526 + $0x12c] sm:$0x3f]
        %v3829 = vld [vmem:[%s2526 + $0x13c] sm:$0xff]
        %v3830 = vld [vmem:[%s2526 + $0x144] sm:$0x3f]
        %v3831 = vld [vmem:[%s2526 + $0x154] sm:$0xff]
        %v3832 = vld [vmem:[%s2526 + $0x15c] sm:$0x3f]
        %v3833 = vld [vmem:[%s2526 + $0x16c] sm:$0xff]
        %v3834 = vld [vmem:[%s2526 + $0x174] sm:$0x3f]
        %v3835 = vld [vmem:[%s2526 + $0x184] sm:$0xff]
        %v3836 = vld [vmem:[%s2526 + $0x18c] sm:$0x3f]
        %v3837 = vld [vmem:[%s2526 + $0x19c] sm:$0xff]
        %v3838 = vld [vmem:[%s2526 + $0x1a4] sm:$0x3f]
        %v3839 = vld [vmem:[%s508 + $0x4] sm:$0x1]
        %v3840 = vperm.slane %v3839, 0
        %v3841 = vmul.f32 %v3803, %v3840
        %v3842 = vmul.f32 %v3804, %v3840
        %v3843 = vmul.f32 %v3805, %v3840
        %v3844 = vmul.f32 %v3806, %v3840
        %v3845 = vmul.f32 %v3807, %v3840
        %v3846 = vmul.f32 %v3808, %v3840
        %v3847 = vmul.f32 %v3809, %v3840
        %v3848 = vmul.f32 %v3810, %v3840
        %v3849 = vmul.f32 %v3811, %v3840
        %v3850 = vmul.f32 %v3812, %v3840
        %v3851 = vmul.f32 %v3813, %v3840
        %v3852 = vmul.f32 %v3814, %v3840
        %v3853 = vmul.f32 %v3815, %v3840
        %v3854 = vmul.f32 %v3816, %v3840
        %v3855 = vmul.f32 %v3817, %v3840
        %v3856 = vmul.f32 %v3818, %v3840
        %v3857 = vmul.f32 %v3819, %v3840
        %v3858 = vmul.f32 %v3820, %v3840
        %v3859 = vmul.f32 %v3821, %v3840
        %v3860 = vmul.f32 %v3822, %v3840
        %v3861 = vmul.f32 %v3823, %v3840
        %v3862 = vmul.f32 %v3824, %v3840
        %v3863 = vmul.f32 %v3825, %v3840
        %v3864 = vmul.f32 %v3826, %v3840
        %v3865 = vmul.f32 %v3827, %v3840
        %v3866 = vmul.f32 %v3828, %v3840
        %v3867 = vmul.f32 %v3829, %v3840
        %v3868 = vmul.f32 %v3830, %v3840
        %v3869 = vld [vmem:[%s833 + $0x4] sm:$0x1]
        %v3870 = vperm.slane %v3869, 0
        %v3871 = vmul.f32 %v3805, %v3870
        %v3872 = vmul.f32 %v3806, %v3870
        %v3873 = vmul.f32 %v3807, %v3870
        %v3874 = vmul.f32 %v3808, %v3870
        %v3875 = vmul.f32 %v3809, %v3870
        %v3876 = vmul.f32 %v3810, %v3870
        %v3877 = vmul.f32 %v3811, %v3870
        %v3878 = vmul.f32 %v3812, %v3870
        %v3879 = vmul.f32 %v3813, %v3870
        %v3880 = vmul.f32 %v3814, %v3870
        %v3881 = vmul.f32 %v3815, %v3870
        %v3882 = vmul.f32 %v3816, %v3870
        %v3883 = vmul.f32 %v3817, %v3870
        %v3884 = vmul.f32 %v3818, %v3870
        %v3885 = vmul.f32 %v3819, %v3870
        %v3886 = vmul.f32 %v3820, %v3870
        %v3887 = vmul.f32 %v3821, %v3870
        %v3888 = vmul.f32 %v3822, %v3870
        %v3889 = vmul.f32 %v3823, %v3870
        %v3890 = vmul.f32 %v3824, %v3870
        %v3891 = vmul.f32 %v3825, %v3870
        %v3892 = vmul.f32 %v3826, %v3870
        %v3893 = vmul.f32 %v3827, %v3870
        %v3894 = vmul.f32 %v3828, %v3870
        %v3895 = vmul.f32 %v3829, %v3870
        %v3896 = vmul.f32 %v3830, %v3870
        %v3897 = vmul.f32 %v3831, %v3870
        %v3898 = vmul.f32 %v3832, %v3870
        %v3899 = vadd.f32 %v3841, %v3871
        %v3900 = vadd.f32 %v3842, %v3872
        %v3901 = vadd.f32 %v3843, %v3873
        %v3902 = vadd.f32 %v3844, %v3874
        %v3903 = vadd.f32 %v3845, %v3875
        %v3904 = vadd.f32 %v3846, %v3876
        %v3905 = vadd.f32 %v3847, %v3877
        %v3906 = vadd.f32 %v3848, %v3878
        %v3907 = vadd.f32 %v3849, %v3879
        %v3908 = vadd.f32 %v3850, %v3880
        %v3909 = vadd.f32 %v3851, %v3881
        %v3910 = vadd.f32 %v3852, %v3882
        %v3911 = vadd.f32 %v3853, %v3883
        %v3912 = vadd.f32 %v3854, %v3884
        %v3913 = vadd.f32 %v3855, %v3885
        %v3914 = vadd.f32 %v3856, %v3886
        %v3915 = vadd.f32 %v3857, %v3887
        %v3916 = vadd.f32 %v3858, %v3888
        %v3917 = vadd.f32 %v3859, %v3889
        %v3918 = vadd.f32 %v3860, %v3890
        %v3919 = vadd.f32 %v3861, %v3891
        %v3920 = vadd.f32 %v3862, %v3892
        %v3921 = vadd.f32 %v3863, %v3893
        %v3922 = vadd.f32 %v3864, %v3894
        %v3923 = vadd.f32 %v3865, %v3895
        %v3924 = vadd.f32 %v3866, %v3896
        %v3925 = vadd.f32 %v3867, %v3897
        %v3926 = vadd.f32 %v3868, %v3898
        %v3927 = vld [vmem:[%s892 + $0x4] sm:$0x1]
        %v3928 = vperm.slane %v3927, 0
        %v3929 = vmul.f32 %v3807, %v3928
        %v3930 = vmul.f32 %v3808, %v3928
        %v3931 = vmul.f32 %v3809, %v3928
        %v3932 = vmul.f32 %v3810, %v3928
        %v3933 = vmul.f32 %v3811, %v3928
        %v3934 = vmul.f32 %v3812, %v3928
        %v3935 = vmul.f32 %v3813, %v3928
        %v3936 = vmul.f32 %v3814, %v3928
        %v3937 = vmul.f32 %v3815, %v3928
        %v3938 = vmul.f32 %v3816, %v3928
        %v3939 = vmul.f32 %v3817, %v3928
        %v3940 = vmul.f32 %v3818, %v3928
        %v3941 = vmul.f32 %v3819, %v3928
        %v3942 = vmul.f32 %v3820, %v3928
        %v3943 = vmul.f32 %v3821, %v3928
        %v3944 = vmul.f32 %v3822, %v3928
        %v3945 = vmul.f32 %v3823, %v3928
        %v3946 = vmul.f32 %v3824, %v3928
        %v3947 = vmul.f32 %v3825, %v3928
        %v3948 = vmul.f32 %v3826, %v3928
        %v3949 = vmul.f32 %v3827, %v3928
        %v3950 = vmul.f32 %v3828, %v3928
        %v3951 = vmul.f32 %v3829, %v3928
        %v3952 = vmul.f32 %v3830, %v3928
        %v3953 = vmul.f32 %v3831, %v3928
        %v3954 = vmul.f32 %v3832, %v3928
        %v3955 = vmul.f32 %v3833, %v3928
        %v3956 = vmul.f32 %v3834, %v3928
        %v3957 = vadd.f32 %v3899, %v3929
        %v3958 = vadd.f32 %v3900, %v3930
        %v3959 = vadd.f32 %v3901, %v3931
        %v3960 = vadd.f32 %v3902, %v3932
        %v3961 = vadd.f32 %v3903, %v3933
        %v3962 = vadd.f32 %v3904, %v3934
        %v3963 = vadd.f32 %v3905, %v3935
        %v3964 = vadd.f32 %v3906, %v3936
        %v3965 = vadd.f32 %v3907, %v3937
        %v3966 = vadd.f32 %v3908, %v3938
        %v3967 = vadd.f32 %v3909, %v3939
        %v3968 = vadd.f32 %v3910, %v3940
        %v3969 = vadd.f32 %v3911, %v3941
        %v3970 = vadd.f32 %v3912, %v3942
        %v3971 = vadd.f32 %v3913, %v3943
        %v3972 = vadd.f32 %v3914, %v3944
        %v3973 = vadd.f32 %v3915, %v3945
        %v3974 = vadd.f32 %v3916, %v3946
        %v3975 = vadd.f32 %v3917, %v3947
        %v3976 = vadd.f32 %v3918, %v3948
        %v3977 = vadd.f32 %v3919, %v3949
        %v3978 = vadd.f32 %v3920, %v3950
        %v3979 = vadd.f32 %v3921, %v3951
        %v3980 = vadd.f32 %v3922, %v3952
        %v3981 = vadd.f32 %v3923, %v3953
        %v3982 = vadd.f32 %v3924, %v3954
        %v3983 = vadd.f32 %v3925, %v3955
        %v3984 = vadd.f32 %v3926, %v3956
        %v3985 = vld [vmem:[%s951 + $0x4] sm:$0x1]
        %v3986 = vperm.slane %v3985, 0
        %v3987 = vmul.f32 %v3809, %v3986
        %v3988 = vmul.f32 %v3810, %v3986
        %v3989 = vmul.f32 %v3811, %v3986
        %v3990 = vmul.f32 %v3812, %v3986
        %v3991 = vmul.f32 %v3813, %v3986
        %v3992 = vmul.f32 %v3814, %v3986
        %v3993 = vmul.f32 %v3815, %v3986
        %v3994 = vmul.f32 %v3816, %v3986
        %v3995 = vmul.f32 %v3817, %v3986
        %v3996 = vmul.f32 %v3818, %v3986
        %v3997 = vmul.f32 %v3819, %v3986
        %v3998 = vmul.f32 %v3820, %v3986
        %v3999 = vmul.f32 %v3821, %v3986
        %v4000 = vmul.f32 %v3822, %v3986
        %v4001 = vmul.f32 %v3823, %v3986
        %v4002 = vmul.f32 %v3824, %v3986
        %v4003 = vmul.f32 %v3825, %v3986
        %v4004 = vmul.f32 %v3826, %v3986
        %v4005 = vmul.f32 %v3827, %v3986
        %v4006 = vmul.f32 %v3828, %v3986
        %v4007 = vmul.f32 %v3829, %v3986
        %v4008 = vmul.f32 %v3830, %v3986
        %v4009 = vmul.f32 %v3831, %v3986
        %v4010 = vmul.f32 %v3832, %v3986
        %v4011 = vmul.f32 %v3833, %v3986
        %v4012 = vmul.f32 %v3834, %v3986
        %v4013 = vmul.f32 %v3835, %v3986
        %v4014 = vmul.f32 %v3836, %v3986
        %v4015 = vadd.f32 %v3957, %v3987
        %v4016 = vadd.f32 %v3958, %v3988
        %v4017 = vadd.f32 %v3959, %v3989
        %v4018 = vadd.f32 %v3960, %v3990
        %v4019 = vadd.f32 %v3961, %v3991
        %v4020 = vadd.f32 %v3962, %v3992
        %v4021 = vadd.f32 %v3963, %v3993
        %v4022 = vadd.f32 %v3964, %v3994
        %v4023 = vadd.f32 %v3965, %v3995
        %v4024 = vadd.f32 %v3966, %v3996
        %v4025 = vadd.f32 %v3967, %v3997
        %v4026 = vadd.f32 %v3968, %v3998
        %v4027 = vadd.f32 %v3969, %v3999
        %v4028 = vadd.f32 %v3970, %v4000
        %v4029 = vadd.f32 %v3971, %v4001
        %v4030 = vadd.f32 %v3972, %v4002
        %v4031 = vadd.f32 %v3973, %v4003
        %v4032 = vadd.f32 %v3974, %v4004
        %v4033 = vadd.f32 %v3975, %v4005
        %v4034 = vadd.f32 %v3976, %v4006
        %v4035 = vadd.f32 %v3977, %v4007
        %v4036 = vadd.f32 %v3978, %v4008
        %v4037 = vadd.f32 %v3979, %v4009
        %v4038 = vadd.f32 %v3980, %v4010
        %v4039 = vadd.f32 %v3981, %v4011
        %v4040 = vadd.f32 %v3982, %v4012
        %v4041 = vadd.f32 %v3983, %v4013
        %v4042 = vadd.f32 %v3984, %v4014
        %v4043 = vld [vmem:[%s1010 + $0x4] sm:$0x1]
        %v4044 = vperm.slane %v4043, 0
        %v4045 = vmul.f32 %v3811, %v4044
        %v4046 = vmul.f32 %v3812, %v4044
        %v4047 = vmul.f32 %v3813, %v4044
        %v4048 = vmul.f32 %v3814, %v4044
        %v4049 = vmul.f32 %v3815, %v4044
        %v4050 = vmul.f32 %v3816, %v4044
        %v4051 = vmul.f32 %v3817, %v4044
        %v4052 = vmul.f32 %v3818, %v4044
        %v4053 = vmul.f32 %v3819, %v4044
        %v4054 = vmul.f32 %v3820, %v4044
        %v4055 = vmul.f32 %v3821, %v4044
        %v4056 = vmul.f32 %v3822, %v4044
        %v4057 = vmul.f32 %v3823, %v4044
        %v4058 = vmul.f32 %v3824, %v4044
        %v4059 = vmul.f32 %v3825, %v4044
        %v4060 = vmul.f32 %v3826, %v4044
        %v4061 = vmul.f32 %v3827, %v4044
        %v4062 = vmul.f32 %v3828, %v4044
        %v4063 = vmul.f32 %v3829, %v4044
        %v4064 = vmul.f32 %v3830, %v4044
        %v4065 = vmul.f32 %v3831, %v4044
        %v4066 = vmul.f32 %v3832, %v4044
        %v4067 = vmul.f32 %v3833, %v4044
        %v4068 = vmul.f32 %v3834, %v4044
        %v4069 = vmul.f32 %v3835, %v4044
        %v4070 = vmul.f32 %v3836, %v4044
        %v4071 = vmul.f32 %v3837, %v4044
        %v4072 = vmul.f32 %v3838, %v4044
        %v4073 = vadd.f32 %v4015, %v4045
        %v4074 = vadd.f32 %v4016, %v4046
        %v4075 = vadd.f32 %v4017, %v4047
        %v4076 = vadd.f32 %v4018, %v4048
        %v4077 = vadd.f32 %v4019, %v4049
        %v4078 = vadd.f32 %v4020, %v4050
        %v4079 = vadd.f32 %v4021, %v4051
        %v4080 = vadd.f32 %v4022, %v4052
        %v4081 = vadd.f32 %v4023, %v4053
        %v4082 = vadd.f32 %v4024, %v4054
        %v4083 = vadd.f32 %v4025, %v4055
        %v4084 = vadd.f32 %v4026, %v4056
        %v4085 = vadd.f32 %v4027, %v4057
        %v4086 = vadd.f32 %v4028, %v4058
        %v4087 = vadd.f32 %v4029, %v4059
        %v4088 = vadd.f32 %v4030, %v4060
        %v4089 = vadd.f32 %v4031, %v4061
        %v4090 = vadd.f32 %v4032, %v4062
        %v4091 = vadd.f32 %v4033, %v4063
        %v4092 = vadd.f32 %v4034, %v4064
        %v4093 = vadd.f32 %v4035, %v4065
        %v4094 = vadd.f32 %v4036, %v4066
        %v4095 = vadd.f32 %v4037, %v4067
        %v4096 = vadd.f32 %v4038, %v4068
        %v4097 = vadd.f32 %v4039, %v4069
        %v4098 = vadd.f32 %v4040, %v4070
        %v4099 = vadd.f32 %v4041, %v4071
        %v4100 = vadd.f32 %v4042, %v4072
        %v4101 = vadd.f32 %v3775, %v4073
        %v4102 = vadd.f32 %v3776, %v4074
        %v4103 = vadd.f32 %v3777, %v4075
        %v4104 = vadd.f32 %v3778, %v4076
        %v4105 = vadd.f32 %v3779, %v4077
        %v4106 = vadd.f32 %v3780, %v4078
        %v4107 = vadd.f32 %v3781, %v4079
        %v4108 = vadd.f32 %v3782, %v4080
        %v4109 = vadd.f32 %v3783, %v4081
        %v4110 = vadd.f32 %v3784, %v4082
        %v4111 = vadd.f32 %v3785, %v4083
        %v4112 = vadd.f32 %v3786, %v4084
        %v4113 = vadd.f32 %v3787, %v4085
        %v4114 = vadd.f32 %v3788, %v4086
        %v4115 = vadd.f32 %v3789, %v4087
        %v4116 = vadd.f32 %v3790, %v4088
        %v4117 = vadd.f32 %v3791, %v4089
        %v4118 = vadd.f32 %v3792, %v4090
        %v4119 = vadd.f32 %v3793, %v4091
        %v4120 = vadd.f32 %v3794, %v4092
        %v4121 = vadd.f32 %v3795, %v4093
        %v4122 = vadd.f32 %v3796, %v4094
        %v4123 = vadd.f32 %v3797, %v4095
        %v4124 = vadd.f32 %v3798, %v4096
        %v4125 = vadd.f32 %v3799, %v4097
        %v4126 = vadd.f32 %v3800, %v4098
        %v4127 = vadd.f32 %v3801, %v4099
        %v4128 = vadd.f32 %v3802, %v4100
        %s4129 = scalar_lea.vmem %s539, 224 [#allocation5]
        %4130 = vst [vmem:[%s4129] sm:$0xff] %v4101
        %4131 = vst [vmem:[%s4129 + $0x8] sm:$0x3f] %v4102
        %4132 = vst [vmem:[%s4129 + $0x10] sm:$0xff] %v4103
        %4133 = vst [vmem:[%s4129 + $0x18] sm:$0x3f] %v4104
        %4134 = vst [vmem:[%s4129 + $0x20] sm:$0xff] %v4105
        %4135 = vst [vmem:[%s4129 + $0x28] sm:$0x3f] %v4106
        %4136 = vst [vmem:[%s4129 + $0x30] sm:$0xff] %v4107
        %4137 = vst [vmem:[%s4129 + $0x38] sm:$0x3f] %v4108
        %4138 = vst [vmem:[%s4129 + $0x40] sm:$0xff] %v4109
        %4139 = vst [vmem:[%s4129 + $0x48] sm:$0x3f] %v4110
        %4140 = vst [vmem:[%s4129 + $0x50] sm:$0xff] %v4111
        %4141 = vst [vmem:[%s4129 + $0x58] sm:$0x3f] %v4112
        %4142 = vst [vmem:[%s4129 + $0x60] sm:$0xff] %v4113
        %4143 = vst [vmem:[%s4129 + $0x68] sm:$0x3f] %v4114
        %4144 = vst [vmem:[%s4129 + $0x70] sm:$0xff] %v4115
        %4145 = vst [vmem:[%s4129 + $0x78] sm:$0x3f] %v4116
        %4146 = vst [vmem:[%s4129 + $0x80] sm:$0xff] %v4117
        %4147 = vst [vmem:[%s4129 + $0x88] sm:$0x3f] %v4118
        %4148 = vst [vmem:[%s4129 + $0x90] sm:$0xff] %v4119
        %4149 = vst [vmem:[%s4129 + $0x98] sm:$0x3f] %v4120
        %4150 = vst [vmem:[%s4129 + $0xa0] sm:$0xff] %v4121
        %4151 = vst [vmem:[%s4129 + $0xa8] sm:$0x3f] %v4122
        %4152 = vst [vmem:[%s4129 + $0xb0] sm:$0xff] %v4123
        %4153 = vst [vmem:[%s4129 + $0xb8] sm:$0x3f] %v4124
        %4154 = vst [vmem:[%s4129 + $0xc0] sm:$0xff] %v4125
        %4155 = vst [vmem:[%s4129 + $0xc8] sm:$0x3f] %v4126
        %4156 = vst [vmem:[%s4129 + $0xd0] sm:$0xff] %v4127
        %4157 = vst [vmem:[%s4129 + $0xd8] sm:$0x3f] %v4128
        %v4158 = vsel %vm2401, %v4102, 0.0
        %v4159 = vadd.f32 %v4101, %v4158
        %v4160 = vadd.f32 %v4159, %v4103
        %v4161 = vsel %vm2401, %v4104, 0.0
        %v4162 = vadd.f32 %v4160, %v4161
        %v4163 = vadd.f32 %v4162, %v4105
        %v4164 = vsel %vm2401, %v4106, 0.0
        %v4165 = vadd.f32 %v4163, %v4164
        %v4166 = vadd.f32 %v4165, %v4107
        %v4167 = vsel %vm2401, %v4108, 0.0
        %v4168 = vadd.f32 %v4166, %v4167
        %v4169 = vadd.f32 %v4168, %v4109
        %v4170 = vsel %vm2401, %v4110, 0.0
        %v4171 = vadd.f32 %v4169, %v4170
        %v4172 = vadd.f32 %v4171, %v4111
        %v4173 = vsel %vm2401, %v4112, 0.0
        %v4174 = vadd.f32 %v4172, %v4173
        %v4175 = vadd.f32 %v4174, %v4113
        %v4176 = vsel %vm2401, %v4114, 0.0
        %v4177 = vadd.f32 %v4175, %v4176
        %v4178 = vadd.f32 %v4177, %v4115
        %v4179 = vsel %vm2401, %v4116, 0.0
        %v4180 = vadd.f32 %v4178, %v4179
        %v4181 = vadd.f32 %v4180, %v4117
        %v4182 = vsel %vm2401, %v4118, 0.0
        %v4183 = vadd.f32 %v4181, %v4182
        %v4184 = vadd.f32 %v4183, %v4119
        %v4185 = vsel %vm2401, %v4120, 0.0
        %v4186 = vadd.f32 %v4184, %v4185
        %v4187 = vadd.f32 %v4186, %v4121
        %v4188 = vsel %vm2401, %v4122, 0.0
        %v4189 = vadd.f32 %v4187, %v4188
        %v4190 = vadd.f32 %v4189, %v4123
        %v4191 = vsel %vm2401, %v4124, 0.0
        %v4192 = vadd.f32 %v4190, %v4191
        %v4193 = vadd.f32 %v4192, %v4125
        %v4194 = vsel %vm2401, %v4126, 0.0
        %v4195 = vadd.f32 %v4193, %v4194
        %v4196 = vadd.f32 %v4195, %v4127
        %v4197 = vsel %vm2401, %v4128, 0.0
        %v4198 = vadd.f32 %v4196, %v4197
        %v4199 = vrot.slane %v4198, 4
        %v4200 = vadd.f32 %v4198, %v4199
        %v4201 = vrot.slane %v4200, 2
        %v4202 = vadd.f32 %v4200, %v4201
        %v4203 = vrot.slane %v4202, 1
        %v4204 = vadd.f32 %v4202, %v4203
        %v4205 = vadd.f32 %v2449, %v4204
        %v4206 = vmul.f32 %v4101, %v4101
        %v4207 = vmul.f32 %v4102, %v4102
        %v4208 = vmul.f32 %v4103, %v4103
        %v4209 = vmul.f32 %v4104, %v4104
        %v4210 = vmul.f32 %v4105, %v4105
        %v4211 = vmul.f32 %v4106, %v4106
        %v4212 = vmul.f32 %v4107, %v4107
        %v4213 = vmul.f32 %v4108, %v4108
        %v4214 = vmul.f32 %v4109, %v4109
        %v4215 = vmul.f32 %v4110, %v4110
        %v4216 = vmul.f32 %v4111, %v4111
        %v4217 = vmul.f32 %v4112, %v4112
        %v4218 = vmul.f32 %v4113, %v4113
        %v4219 = vmul.f32 %v4114, %v4114
        %v4220 = vmul.f32 %v4115, %v4115
        %v4221 = vmul.f32 %v4116, %v4116
        %v4222 = vmul.f32 %v4117, %v4117
        %v4223 = vmul.f32 %v4118, %v4118
        %v4224 = vmul.f32 %v4119, %v4119
        %v4225 = vmul.f32 %v4120, %v4120
        %v4226 = vmul.f32 %v4121, %v4121
        %v4227 = vmul.f32 %v4122, %v4122
        %v4228 = vmul.f32 %v4123, %v4123
        %v4229 = vmul.f32 %v4124, %v4124
        %v4230 = vmul.f32 %v4125, %v4125
        %v4231 = vmul.f32 %v4126, %v4126
        %v4232 = vmul.f32 %v4127, %v4127
        %v4233 = vmul.f32 %v4128, %v4128
        %v4234 = vsel %vm2401, %v4207, 0.0
        %v4235 = vadd.f32 %v4206, %v4234
        %v4236 = vadd.f32 %v4235, %v4208
        %v4237 = vsel %vm2401, %v4209, 0.0
        %v4238 = vadd.f32 %v4236, %v4237
        %v4239 = vadd.f32 %v4238, %v4210
        %v4240 = vsel %vm2401, %v4211, 0.0
        %v4241 = vadd.f32 %v4239, %v4240
        %v4242 = vadd.f32 %v4241, %v4212
        %v4243 = vsel %vm2401, %v4213, 0.0
        %v4244 = vadd.f32 %v4242, %v4243
        %v4245 = vadd.f32 %v4244, %v4214
        %v4246 = vsel %vm2401, %v4215, 0.0
        %v4247 = vadd.f32 %v4245, %v4246
        %v4248 = vadd.f32 %v4247, %v4216
        %v4249 = vsel %vm2401, %v4217, 0.0
        %v4250 = vadd.f32 %v4248, %v4249
        %v4251 = vadd.f32 %v4250, %v4218
        %v4252 = vsel %vm2401, %v4219, 0.0
        %v4253 = vadd.f32 %v4251, %v4252
        %v4254 = vadd.f32 %v4253, %v4220
        %v4255 = vsel %vm2401, %v4221, 0.0
        %v4256 = vadd.f32 %v4254, %v4255
        %v4257 = vadd.f32 %v4256, %v4222
        %v4258 = vsel %vm2401, %v4223, 0.0
        %v4259 = vadd.f32 %v4257, %v4258
        %v4260 = vadd.f32 %v4259, %v4224
        %v4261 = vsel %vm2401, %v4225, 0.0
        %v4262 = vadd.f32 %v4260, %v4261
        %v4263 = vadd.f32 %v4262, %v4226
        %v4264 = vsel %vm2401, %v4227, 0.0
        %v4265 = vadd.f32 %v4263, %v4264
        %v4266 = vadd.f32 %v4265, %v4228
        %v4267 = vsel %vm2401, %v4229, 0.0
        %v4268 = vadd.f32 %v4266, %v4267
        %v4269 = vadd.f32 %v4268, %v4230
        %v4270 = vsel %vm2401, %v4231, 0.0
        %v4271 = vadd.f32 %v4269, %v4270
        %v4272 = vadd.f32 %v4271, %v4232
        %v4273 = vsel %vm2401, %v4233, 0.0
        %v4274 = vadd.f32 %v4272, %v4273
        %v4275 = vrot.slane %v4274, 4
        %v4276 = vadd.f32 %v4274, %v4275
        %v4277 = vrot.slane %v4276, 2
        %v4278 = vadd.f32 %v4276, %v4277
        %v4279 = vrot.slane %v4278, 1
        %v4280 = vadd.f32 %v4278, %v4279
        %v4281 = vadd.f32 %v2525, %v4280
        %v4282 = vmul.f32 %v4205, 0.0025510204
        %v4283 = vmul.f32 %v4281, 0.0025510204
        %v4284 = vmul.f32 %v4282, %v4282
        %v4285 = vsub.f32 %v4283, %v4284
        %v4286 = vmax.f32 %v4285, 0.0
        %v4287 = vadd.f32 %v4286, 1e-05
        %v4288 = vrsqrt.pop %v4287
        %v4289 = vmul.f32 %v4288, %v4287
        %v4290 = vmul.f32 %v4289, %v4288
        %v4291 = vmul.f32 0.5, %v4290
        %v4292 = vsub.f32 1.5, %v4291
        %v4293 = vmul.f32 %v4288, %v4292
        %vm4294 = vweird.f32 %v4287
        %vm4295 = vweird.f32 %v4288
        %vm4296 = vmor %vm4294, %vm4295
        %v4297 = vsel %vm4296, %v4288, %v4293
        %v4298 = vld [vmem:[%s542] sm:$0x1]
        %v4299 = vmul.f32 %v4297, %v4298
        %v4300 = vld [vmem:[%s545] sm:$0x1]
        %v4301 = vmul.f32 %v4282, %v4299
        %v4302 = vsub.f32 %v4300, %v4301
        %v4303 = vld [vmem:[%s539] sm:$0xff]
        %v4304 = vld [vmem:[%s539 + $0x8] sm:$0x3f]
        %v4305 = vld [vmem:[%s539 + $0x10] sm:$0xff]
        %v4306 = vld [vmem:[%s539 + $0x18] sm:$0x3f]
        %v4307 = vld [vmem:[%s539 + $0x20] sm:$0xff]
        %v4308 = vld [vmem:[%s539 + $0x28] sm:$0x3f]
        %v4309 = vld [vmem:[%s539 + $0x30] sm:$0xff]
        %v4310 = vld [vmem:[%s539 + $0x38] sm:$0x3f]
        %v4311 = vld [vmem:[%s539 + $0x40] sm:$0xff]
        %v4312 = vld [vmem:[%s539 + $0x48] sm:$0x3f]
        %v4313 = vld [vmem:[%s539 + $0x50] sm:$0xff]
        %v4314 = vld [vmem:[%s539 + $0x58] sm:$0x3f]
        %v4315 = vld [vmem:[%s539 + $0x60] sm:$0xff]
        %v4316 = vld [vmem:[%s539 + $0x68] sm:$0x3f]
        %v4317 = vld [vmem:[%s539 + $0x70] sm:$0xff]
        %v4318 = vld [vmem:[%s539 + $0x78] sm:$0x3f]
        %v4319 = vld [vmem:[%s539 + $0x80] sm:$0xff]
        %v4320 = vld [vmem:[%s539 + $0x88] sm:$0x3f]
        %v4321 = vld [vmem:[%s539 + $0x90] sm:$0xff]
        %v4322 = vld [vmem:[%s539 + $0x98] sm:$0x3f]
        %v4323 = vld [vmem:[%s539 + $0xa0] sm:$0xff]
        %v4324 = vld [vmem:[%s539 + $0xa8] sm:$0x3f]
        %v4325 = vld [vmem:[%s539 + $0xb0] sm:$0xff]
        %v4326 = vld [vmem:[%s539 + $0xb8] sm:$0x3f]
        %v4327 = vld [vmem:[%s539 + $0xc0] sm:$0xff]
        %v4328 = vld [vmem:[%s539 + $0xc8] sm:$0x3f]
        %v4329 = vld [vmem:[%s539 + $0xd0] sm:$0xff]
        %v4330 = vld [vmem:[%s539 + $0xd8] sm:$0x3f]
        %v4331 = vld [vmem:[%s539 + $0xe0] sm:$0xff]
        %v4332 = vld [vmem:[%s539 + $0xe8] sm:$0x3f]
        %v4333 = vld [vmem:[%s539 + $0xf0] sm:$0xff]
        %v4334 = vld [vmem:[%s539 + $0xf8] sm:$0x3f]
        %v4335 = vld [vmem:[%s539 + $0x100] sm:$0xff]
        %v4336 = vld [vmem:[%s539 + $0x108] sm:$0x3f]
        %v4337 = vld [vmem:[%s539 + $0x110] sm:$0xff]
        %v4338 = vld [vmem:[%s539 + $0x118] sm:$0x3f]
        %v4339 = vld [vmem:[%s539 + $0x120] sm:$0xff]
        %v4340 = vld [vmem:[%s539 + $0x128] sm:$0x3f]
        %v4341 = vld [vmem:[%s539 + $0x130] sm:$0xff]
        %v4342 = vld [vmem:[%s539 + $0x138] sm:$0x3f]
        %v4343 = vld [vmem:[%s539 + $0x140] sm:$0xff]
        %v4344 = vld [vmem:[%s539 + $0x148] sm:$0x3f]
        %v4345 = vld [vmem:[%s539 + $0x150] sm:$0xff]
        %v4346 = vld [vmem:[%s539 + $0x158] sm:$0x3f]
        %v4347 = vld [vmem:[%s539 + $0x160] sm:$0xff]
        %v4348 = vld [vmem:[%s539 + $0x168] sm:$0x3f]
        %v4349 = vld [vmem:[%s539 + $0x170] sm:$0xff]
        %v4350 = vld [vmem:[%s539 + $0x178] sm:$0x3f]
        %v4351 = vld [vmem:[%s539 + $0x180] sm:$0xff]
        %v4352 = vld [vmem:[%s539 + $0x188] sm:$0x3f]
        %v4353 = vld [vmem:[%s539 + $0x190] sm:$0xff]
        %v4354 = vld [vmem:[%s539 + $0x198] sm:$0x3f]
        %v4355 = vld [vmem:[%s539 + $0x1a0] sm:$0xff]
        %v4356 = vld [vmem:[%s539 + $0x1a8] sm:$0x3f]
        %v4357 = vld [vmem:[%s539 + $0x1b0] sm:$0xff]
        %v4358 = vld [vmem:[%s539 + $0x1b8] sm:$0x3f]
        %v4359 = vperm.slane %v4299, 0
        %v4360 = vmul.f32 %v4303, %v4359
        %v4361 = vmul.f32 %v4304, %v4359
        %v4362 = vmul.f32 %v4305, %v4359
        %v4363 = vmul.f32 %v4306, %v4359
        %v4364 = vmul.f32 %v4307, %v4359
        %v4365 = vmul.f32 %v4308, %v4359
        %v4366 = vmul.f32 %v4309, %v4359
        %v4367 = vmul.f32 %v4310, %v4359
        %v4368 = vmul.f32 %v4311, %v4359
        %v4369 = vmul.f32 %v4312, %v4359
        %v4370 = vmul.f32 %v4313, %v4359
        %v4371 = vmul.f32 %v4314, %v4359
        %v4372 = vmul.f32 %v4315, %v4359
        %v4373 = vmul.f32 %v4316, %v4359
        %v4374 = vmul.f32 %v4317, %v4359
        %v4375 = vmul.f32 %v4318, %v4359
        %v4376 = vmul.f32 %v4319, %v4359
        %v4377 = vmul.f32 %v4320, %v4359
        %v4378 = vmul.f32 %v4321, %v4359
        %v4379 = vmul.f32 %v4322, %v4359
        %v4380 = vmul.f32 %v4323, %v4359
        %v4381 = vmul.f32 %v4324, %v4359
        %v4382 = vmul.f32 %v4325, %v4359
        %v4383 = vmul.f32 %v4326, %v4359
        %v4384 = vmul.f32 %v4327, %v4359
        %v4385 = vmul.f32 %v4328, %v4359
        %v4386 = vmul.f32 %v4329, %v4359
        %v4387 = vmul.f32 %v4330, %v4359
        %v4388 = vmul.f32 %v4331, %v4359
        %v4389 = vmul.f32 %v4332, %v4359
        %v4390 = vmul.f32 %v4333, %v4359
        %v4391 = vmul.f32 %v4334, %v4359
        %v4392 = vmul.f32 %v4335, %v4359
        %v4393 = vmul.f32 %v4336, %v4359
        %v4394 = vmul.f32 %v4337, %v4359
        %v4395 = vmul.f32 %v4338, %v4359
        %v4396 = vmul.f32 %v4339, %v4359
        %v4397 = vmul.f32 %v4340, %v4359
        %v4398 = vmul.f32 %v4341, %v4359
        %v4399 = vmul.f32 %v4342, %v4359
        %v4400 = vmul.f32 %v4343, %v4359
        %v4401 = vmul.f32 %v4344, %v4359
        %v4402 = vmul.f32 %v4345, %v4359
        %v4403 = vmul.f32 %v4346, %v4359
        %v4404 = vmul.f32 %v4347, %v4359
        %v4405 = vmul.f32 %v4348, %v4359
        %v4406 = vmul.f32 %v4349, %v4359
        %v4407 = vmul.f32 %v4350, %v4359
        %v4408 = vmul.f32 %v4351, %v4359
        %v4409 = vmul.f32 %v4352, %v4359
        %v4410 = vmul.f32 %v4353, %v4359
        %v4411 = vmul.f32 %v4354, %v4359
        %v4412 = vmul.f32 %v4355, %v4359
        %v4413 = vmul.f32 %v4356, %v4359
        %v4414 = vmul.f32 %v4357, %v4359
        %v4415 = vmul.f32 %v4358, %v4359
        %v4417 = vperm.slane %v4302, 0
        %v4419 = vadd.f32 %v4360, %v4417
        %v4420 = vadd.f32 %v4361, %v4417
        %v4421 = vadd.f32 %v4362, %v4417
        %v4422 = vadd.f32 %v4363, %v4417
        %v4423 = vadd.f32 %v4364, %v4417
        %v4424 = vadd.f32 %v4365, %v4417
        %v4425 = vadd.f32 %v4366, %v4417
        %v4426 = vadd.f32 %v4367, %v4417
        %v4427 = vadd.f32 %v4368, %v4417
        %v4428 = vadd.f32 %v4369, %v4417
        %v4429 = vadd.f32 %v4370, %v4417
        %v4430 = vadd.f32 %v4371, %v4417
        %v4431 = vadd.f32 %v4372, %v4417
        %v4432 = vadd.f32 %v4373, %v4417
        %v4433 = vadd.f32 %v4374, %v4417
        %v4434 = vadd.f32 %v4375, %v4417
        %v4435 = vadd.f32 %v4376, %v4417
        %v4436 = vadd.f32 %v4377, %v4417
        %v4437 = vadd.f32 %v4378, %v4417
        %v4438 = vadd.f32 %v4379, %v4417
        %v4439 = vadd.f32 %v4380, %v4417
        %v4440 = vadd.f32 %v4381, %v4417
        %v4441 = vadd.f32 %v4382, %v4417
        %v4442 = vadd.f32 %v4383, %v4417
        %v4443 = vadd.f32 %v4384, %v4417
        %v4444 = vadd.f32 %v4385, %v4417
        %v4445 = vadd.f32 %v4386, %v4417
        %v4446 = vadd.f32 %v4387, %v4417
        %v4447 = vadd.f32 %v4388, %v4417
        %v4448 = vadd.f32 %v4389, %v4417
        %v4449 = vadd.f32 %v4390, %v4417
        %v4450 = vadd.f32 %v4391, %v4417
        %v4451 = vadd.f32 %v4392, %v4417
        %v4452 = vadd.f32 %v4393, %v4417
        %v4453 = vadd.f32 %v4394, %v4417
        %v4454 = vadd.f32 %v4395, %v4417
        %v4455 = vadd.f32 %v4396, %v4417
        %v4456 = vadd.f32 %v4397, %v4417
        %v4457 = vadd.f32 %v4398, %v4417
        %v4458 = vadd.f32 %v4399, %v4417
        %v4459 = vadd.f32 %v4400, %v4417
        %v4460 = vadd.f32 %v4401, %v4417
        %v4461 = vadd.f32 %v4402, %v4417
        %v4462 = vadd.f32 %v4403, %v4417
        %v4463 = vadd.f32 %v4404, %v4417
        %v4464 = vadd.f32 %v4405, %v4417
        %v4465 = vadd.f32 %v4406, %v4417
        %v4466 = vadd.f32 %v4407, %v4417
        %v4467 = vadd.f32 %v4408, %v4417
        %v4468 = vadd.f32 %v4409, %v4417
        %v4469 = vadd.f32 %v4410, %v4417
        %v4470 = vadd.f32 %v4411, %v4417
        %v4471 = vadd.f32 %v4412, %v4417
        %v4472 = vadd.f32 %v4413, %v4417
        %v4473 = vadd.f32 %v4414, %v4417
        %v4474 = vadd.f32 %v4415, %v4417
        %4475 = vst [vmem:[%s539] sm:$0xff] %v4419
        %4476 = vst [vmem:[%s539 + $0x8] sm:$0x3f] %v4420
        %4477 = vst [vmem:[%s539 + $0x10] sm:$0xff] %v4421
        %4478 = vst [vmem:[%s539 + $0x18] sm:$0x3f] %v4422
        %4479 = vst [vmem:[%s539 + $0x20] sm:$0xff] %v4423
        %4480 = vst [vmem:[%s539 + $0x28] sm:$0x3f] %v4424
        %4481 = vst [vmem:[%s539 + $0x30] sm:$0xff] %v4425
        %4482 = vst [vmem:[%s539 + $0x38] sm:$0x3f] %v4426
        %4483 = vst [vmem:[%s539 + $0x40] sm:$0xff] %v4427
        %4484 = vst [vmem:[%s539 + $0x48] sm:$0x3f] %v4428
        %4485 = vst [vmem:[%s539 + $0x50] sm:$0xff] %v4429
        %4486 = vst [vmem:[%s539 + $0x58] sm:$0x3f] %v4430
        %4487 = vst [vmem:[%s539 + $0x60] sm:$0xff] %v4431
        %4488 = vst [vmem:[%s539 + $0x68] sm:$0x3f] %v4432
        %4489 = vst [vmem:[%s539 + $0x70] sm:$0xff] %v4433
        %4490 = vst [vmem:[%s539 + $0x78] sm:$0x3f] %v4434
        %4491 = vst [vmem:[%s539 + $0x80] sm:$0xff] %v4435
        %4492 = vst [vmem:[%s539 + $0x88] sm:$0x3f] %v4436
        %4493 = vst [vmem:[%s539 + $0x90] sm:$0xff] %v4437
        %4494 = vst [vmem:[%s539 + $0x98] sm:$0x3f] %v4438
        %4495 = vst [vmem:[%s539 + $0xa0] sm:$0xff] %v4439
        %4496 = vst [vmem:[%s539 + $0xa8] sm:$0x3f] %v4440
        %4497 = vst [vmem:[%s539 + $0xb0] sm:$0xff] %v4441
        %4498 = vst [vmem:[%s539 + $0xb8] sm:$0x3f] %v4442
        %4499 = vst [vmem:[%s539 + $0xc0] sm:$0xff] %v4443
        %4500 = vst [vmem:[%s539 + $0xc8] sm:$0x3f] %v4444
        %4501 = vst [vmem:[%s539 + $0xd0] sm:$0xff] %v4445
        %4502 = vst [vmem:[%s539 + $0xd8] sm:$0x3f] %v4446
        %4503 = vst [vmem:[%s539 + $0xe0] sm:$0xff] %v4447
        %4504 = vst [vmem:[%s539 + $0xe8] sm:$0x3f] %v4448
        %4505 = vst [vmem:[%s539 + $0xf0] sm:$0xff] %v4449
        %4506 = vst [vmem:[%s539 + $0xf8] sm:$0x3f] %v4450
        %4507 = vst [vmem:[%s539 + $0x100] sm:$0xff] %v4451
        %4508 = vst [vmem:[%s539 + $0x108] sm:$0x3f] %v4452
        %4509 = vst [vmem:[%s539 + $0x110] sm:$0xff] %v4453
        %4510 = vst [vmem:[%s539 + $0x118] sm:$0x3f] %v4454
        %4511 = vst [vmem:[%s539 + $0x120] sm:$0xff] %v4455
        %4512 = vst [vmem:[%s539 + $0x128] sm:$0x3f] %v4456
        %4513 = vst [vmem:[%s539 + $0x130] sm:$0xff] %v4457
        %4514 = vst [vmem:[%s539 + $0x138] sm:$0x3f] %v4458
        %4515 = vst [vmem:[%s539 + $0x140] sm:$0xff] %v4459
        %4516 = vst [vmem:[%s539 + $0x148] sm:$0x3f] %v4460
        %4517 = vst [vmem:[%s539 + $0x150] sm:$0xff] %v4461
        %4518 = vst [vmem:[%s539 + $0x158] sm:$0x3f] %v4462
        %4519 = vst [vmem:[%s539 + $0x160] sm:$0xff] %v4463
        %4520 = vst [vmem:[%s539 + $0x168] sm:$0x3f] %v4464
        %4521 = vst [vmem:[%s539 + $0x170] sm:$0xff] %v4465
        %4522 = vst [vmem:[%s539 + $0x178] sm:$0x3f] %v4466
        %4523 = vst [vmem:[%s539 + $0x180] sm:$0xff] %v4467
        %4524 = vst [vmem:[%s539 + $0x188] sm:$0x3f] %v4468
        %4525 = vst [vmem:[%s539 + $0x190] sm:$0xff] %v4469
        %4526 = vst [vmem:[%s539 + $0x198] sm:$0x3f] %v4470
        %4527 = vst [vmem:[%s539 + $0x1a0] sm:$0xff] %v4471
        %4528 = vst [vmem:[%s539 + $0x1a8] sm:$0x3f] %v4472
        %4529 = vst [vmem:[%s539 + $0x1b0] sm:$0xff] %v4473
        %4530 = vst [vmem:[%s539 + $0x1b8] sm:$0x3f] %v4474
        %s4531 = sand.u32 %s127, 1
        %s4532 = sand.u32 %s127, 1
        %s4533 = smul.addr %s4532, 448
        %s4534 = scalar_lea.vmem [#allocation5], %s4533
        // Predicated region
        $region113: #{tpu_custom_call.1} parent=103 // pred_check
          %p4535 = pneg %p137
        $region114: #{tpu_custom_call.1} parent=103 // pred_check_branch
          %4537 = sbr.rel (%p4535) target = $region116
        $region115: #{tpu_custom_call.1} parent=103 // pred_region
          %s4538 = smul.addr %s15, 8
          %s4539 = scalar_lea.vmem %s4, %s4538
          // Predicated region
          $region117: #{tpu_custom_call.1} parent=115 // pred_check
            _
          $region118: #{tpu_custom_call.1} parent=115 // pred_check_branch
            %4541 = sbr.rel (0) target = $region120
          $region119: #{tpu_custom_call.1} parent=115 // pred_region
            // Predicated region
            $region121: #{tpu_custom_call.1} parent=119 // pred_check
              _
            $region122: #{tpu_custom_call.1} parent=119 // pred_check_branch
              %4543 = sbr.rel (0) target = $region124
            $region123: #{tpu_custom_call.1} parent=119 // pred_region
              // Predicated region
              $region136: #{tpu_custom_call.1} parent=123 // pred_check
                _
              $region137: #{tpu_custom_call.1} parent=123 // pred_check_branch
                %4669 = sbr.rel (0) target = $region139
              $region138: #{tpu_custom_call.1} parent=123 // pred_region
                loop: start=0, step=1, limit=1
                $region140: #{tpu_custom_call.1} parent=138 // loop_pre_header
                  _
                $region141: #{tpu_custom_call.1} parent=138 // loop_header
                  %s4671 = sphi 0, %s4675
                  %p4672 = scmp.ge.s32.totalorder %s4671, 1
                  %s4676 = sphi %s4534, %s4534
                  %s4677 = sphi %s4539, %s4539
                $region142: #{tpu_custom_call.1} parent=138 // loop_header_branch
                  %4674 = sbr.rel (%p4672) target = $region146
                $region143: #{tpu_custom_call.1} parent=138 // loop_body
                  %v4678 = vld [vmem:[%s4676] sm:$0xff]
                  %4679 = vst [vmem:[%s4677] sm:$0xff] %v4678
                  %v4680 = vld [vmem:[%s4676 + $0x8] sm:$0xff]
                  %4681 = vst [vmem:[%s4677 + $0x18] sm:$0xff] %v4680
                  %v4682 = vld [vmem:[%s4676 + $0x10] sm:$0xff]
                  %4683 = vst [vmem:[%s4677 + $0x30] sm:$0xff] %v4682
                  %v4684 = vld [vmem:[%s4676 + $0x18] sm:$0xff]
                  %4685 = vst [vmem:[%s4677 + $0x48] sm:$0xff] %v4684
                  %v4686 = vld [vmem:[%s4676 + $0x20] sm:$0xff]
                  %4687 = vst [vmem:[%s4677 + $0x60] sm:$0xff] %v4686
                  %v4688 = vld [vmem:[%s4676 + $0x28] sm:$0xff]
                  %4689 = vst [vmem:[%s4677 + $0x78] sm:$0xff] %v4688
                  %v4690 = vld [vmem:[%s4676 + $0x30] sm:$0xff]
                  %4691 = vst [vmem:[%s4677 + $0x90] sm:$0xff] %v4690
                  %v4692 = vld [vmem:[%s4676 + $0x38] sm:$0xff]
                  %4693 = vst [vmem:[%s4677 + $0xa8] sm:$0xff] %v4692
                  %v4694 = vld [vmem:[%s4676 + $0x40] sm:$0xff]
                  %4695 = vst [vmem:[%s4677 + $0xc0] sm:$0xff] %v4694
                  %v4696 = vld [vmem:[%s4676 + $0x48] sm:$0xff]
                  %4697 = vst [vmem:[%s4677 + $0xd8] sm:$0xff] %v4696
                  %v4698 = vld [vmem:[%s4676 + $0x50] sm:$0xff]
                  %4699 = vst [vmem:[%s4677 + $0xf0] sm:$0xff] %v4698
                  %v4700 = vld [vmem:[%s4676 + $0x58] sm:$0xff]
                  %4701 = vst [vmem:[%s4677 + $0x108] sm:$0xff] %v4700
                  %v4702 = vld [vmem:[%s4676 + $0x60] sm:$0xff]
                  %4703 = vst [vmem:[%s4677 + $0x120] sm:$0xff] %v4702
                  %v4704 = vld [vmem:[%s4676 + $0x68] sm:$0xff]
                  %4705 = vst [vmem:[%s4677 + $0x138] sm:$0xff] %v4704
                  %v4706 = vld [vmem:[%s4676 + $0x70] sm:$0xff]
                  %4707 = vst [vmem:[%s4677 + $0x150] sm:$0xff] %v4706
                  %v4708 = vld [vmem:[%s4676 + $0x78] sm:$0xff]
                  %4709 = vst [vmem:[%s4677 + $0x168] sm:$0xff] %v4708
                  %v4710 = vld [vmem:[%s4676 + $0x80] sm:$0xff]
                  %4711 = vst [vmem:[%s4677 + $0x180] sm:$0xff] %v4710
                  %v4712 = vld [vmem:[%s4676 + $0x88] sm:$0xff]
                  %4713 = vst [vmem:[%s4677 + $0x198] sm:$0xff] %v4712
                  %v4714 = vld [vmem:[%s4676 + $0x90] sm:$0xff]
                  %4715 = vst [vmem:[%s4677 + $0x1b0] sm:$0xff] %v4714
                  %v4716 = vld [vmem:[%s4676 + $0x98] sm:$0xff]
                  %4717 = vst [vmem:[%s4677 + $0x1c8] sm:$0xff] %v4716
                  %v4718 = vld [vmem:[%s4676 + $0xa0] sm:$0xff]
                  %4719 = vst [vmem:[%s4677 + $0x1e0] sm:$0xff] %v4718
                  %v4720 = vld [vmem:[%s4676 + $0xa8] sm:$0xff]
                  %4721 = vst [vmem:[%s4677 + $0x1f8] sm:$0xff] %v4720
                  %v4722 = vld [vmem:[%s4676 + $0xb0] sm:$0xff]
                  %4723 = vst [vmem:[%s4677 + $0x210] sm:$0xff] %v4722
                  %v4724 = vld [vmem:[%s4676 + $0xb8] sm:$0xff]
                  %4725 = vst [vmem:[%s4677 + $0x228] sm:$0xff] %v4724
                  %v4726 = vld [vmem:[%s4676 + $0xc0] sm:$0xff]
                  %4727 = vst [vmem:[%s4677 + $0x240] sm:$0xff] %v4726
                  %v4728 = vld [vmem:[%s4676 + $0xc8] sm:$0xff]
                  %4729 = vst [vmem:[%s4677 + $0x258] sm:$0xff] %v4728
                  %v4730 = vld [vmem:[%s4676 + $0xd0] sm:$0xff]
                  %4731 = vst [vmem:[%s4677 + $0x270] sm:$0xff] %v4730
                  %v4732 = vld [vmem:[%s4676 + $0xd8] sm:$0xff]
                  %4733 = vst [vmem:[%s4677 + $0x288] sm:$0xff] %v4732
                  %v4734 = vld [vmem:[%s4676 + $0xe0] sm:$0xff]
                  %4735 = vst [vmem:[%s4677 + $0x2a0] sm:$0xff] %v4734
                  %v4736 = vld [vmem:[%s4676 + $0xe8] sm:$0xff]
                  %4737 = vst [vmem:[%s4677 + $0x2b8] sm:$0xff] %v4736
                  %v4738 = vld [vmem:[%s4676 + $0xf0] sm:$0xff]
                  %4739 = vst [vmem:[%s4677 + $0x2d0] sm:$0xff] %v4738
                  %v4740 = vld [vmem:[%s4676 + $0xf8] sm:$0xff]
                  %4741 = vst [vmem:[%s4677 + $0x2e8] sm:$0xff] %v4740
                  %v4742 = vld [vmem:[%s4676 + $0x100] sm:$0xff]
                  %4743 = vst [vmem:[%s4677 + $0x300] sm:$0xff] %v4742
                  %v4744 = vld [vmem:[%s4676 + $0x108] sm:$0xff]
                  %4745 = vst [vmem:[%s4677 + $0x318] sm:$0xff] %v4744
                  %v4746 = vld [vmem:[%s4676 + $0x110] sm:$0xff]
                  %4747 = vst [vmem:[%s4677 + $0x330] sm:$0xff] %v4746
                  %v4748 = vld [vmem:[%s4676 + $0x118] sm:$0xff]
                  %4749 = vst [vmem:[%s4677 + $0x348] sm:$0xff] %v4748
                  %v4750 = vld [vmem:[%s4676 + $0x120] sm:$0xff]
                  %4751 = vst [vmem:[%s4677 + $0x360] sm:$0xff] %v4750
                  %v4752 = vld [vmem:[%s4676 + $0x128] sm:$0xff]
                  %4753 = vst [vmem:[%s4677 + $0x378] sm:$0xff] %v4752
                  %v4754 = vld [vmem:[%s4676 + $0x130] sm:$0xff]
                  %4755 = vst [vmem:[%s4677 + $0x390] sm:$0xff] %v4754
                  %v4756 = vld [vmem:[%s4676 + $0x138] sm:$0xff]
                  %4757 = vst [vmem:[%s4677 + $0x3a8] sm:$0xff] %v4756
                  %v4758 = vld [vmem:[%s4676 + $0x140] sm:$0xff]
                  %4759 = vst [vmem:[%s4677 + $0x3c0] sm:$0xff] %v4758
                  %v4760 = vld [vmem:[%s4676 + $0x148] sm:$0xff]
                  %4761 = vst [vmem:[%s4677 + $0x3d8] sm:$0xff] %v4760
                  %v4762 = vld [vmem:[%s4676 + $0x150] sm:$0xff]
                  %4763 = vst [vmem:[%s4677 + $0x3f0] sm:$0xff] %v4762
                  %v4764 = vld [vmem:[%s4676 + $0x158] sm:$0xff]
                  %4765 = vst [vmem:[%s4677 + $0x408] sm:$0xff] %v4764
                  %v4766 = vld [vmem:[%s4676 + $0x160] sm:$0xff]
                  %4767 = vst [vmem:[%s4677 + $0x420] sm:$0xff] %v4766
                  %v4768 = vld [vmem:[%s4676 + $0x168] sm:$0xff]
                  %4769 = vst [vmem:[%s4677 + $0x438] sm:$0xff] %v4768
                  %v4770 = vld [vmem:[%s4676 + $0x170] sm:$0xff]
                  %4771 = vst [vmem:[%s4677 + $0x450] sm:$0xff] %v4770
                  %v4772 = vld [vmem:[%s4676 + $0x178] sm:$0xff]
                  %4773 = vst [vmem:[%s4677 + $0x468] sm:$0xff] %v4772
                  %v4774 = vld [vmem:[%s4676 + $0x180] sm:$0xff]
                  %4775 = vst [vmem:[%s4677 + $0x480] sm:$0xff] %v4774
                  %v4776 = vld [vmem:[%s4676 + $0x188] sm:$0xff]
                  %4777 = vst [vmem:[%s4677 + $0x498] sm:$0xff] %v4776
                  %v4778 = vld [vmem:[%s4676 + $0x190] sm:$0xff]
                  %4779 = vst [vmem:[%s4677 + $0x4b0] sm:$0xff] %v4778
                  %v4780 = vld [vmem:[%s4676 + $0x198] sm:$0xff]
                  %4781 = vst [vmem:[%s4677 + $0x4c8] sm:$0xff] %v4780
                  %v4782 = vld [vmem:[%s4676 + $0x1a0] sm:$0xff]
                  %4783 = vst [vmem:[%s4677 + $0x4e0] sm:$0xff] %v4782
                  %v4784 = vld [vmem:[%s4676 + $0x1a8] sm:$0xff]
                  %4785 = vst [vmem:[%s4677 + $0x4f8] sm:$0xff] %v4784
                  %v4786 = vld [vmem:[%s4676 + $0x1b0] sm:$0xff]
                  %4787 = vst [vmem:[%s4677 + $0x510] sm:$0xff] %v4786
                  %v4788 = vld [vmem:[%s4676 + $0x1b8] sm:$0xff]
                  %4789 = vst [vmem:[%s4677 + $0x528] sm:$0xff] %v4788
                $region144: #{tpu_custom_call.1} parent=138 // loop_footer
                  %s4675 = sadd.s32 1, %s4671
                $region145: #{tpu_custom_call.1} parent=138 // loop_footer_branch
                  %4670 = sbr.rel target = $region141
                $region146: #{tpu_custom_call.1} parent=138 // loop_exit
                  _
              $region139: #{tpu_custom_call.1} parent=123 // pred_fallthru
                _
              // Predicated region
              $region147: #{tpu_custom_call.1} parent=123 // pred_check
                _
              $region148: #{tpu_custom_call.1} parent=123 // pred_check_branch
                %4791 = sbr.rel target = $region150
              $region149: #{tpu_custom_call.1} parent=123 // pred_region
                _
              $region150: #{tpu_custom_call.1} parent=123 // pred_fallthru
                _
            $region124: #{tpu_custom_call.1} parent=119 // pred_fallthru
              _
            // Predicated region
            $region125: #{tpu_custom_call.1} parent=119 // pred_check
              _
            $region126: #{tpu_custom_call.1} parent=119 // pred_check_branch
              %4545 = sbr.rel target = $region128
            $region127: #{tpu_custom_call.1} parent=119 // pred_region
              %s4547 = ssub.s32 256, 1
              loop: start=0, step=1, limit=1
              $region129: #{tpu_custom_call.1} parent=127 // loop_pre_header
                _
              $region130: #{tpu_custom_call.1} parent=127 // loop_header
                %s4549 = sphi 0, %s4553
                %p4550 = scmp.ge.s32.totalorder %s4549, 1
                %s4554 = sphi %s4534, %s4534
                %s4555 = sphi %s4539, %s4539
              $region131: #{tpu_custom_call.1} parent=127 // loop_header_branch
                %4552 = sbr.rel (%p4550) target = $region135
              $region132: #{tpu_custom_call.1} parent=127 // loop_body
                %v4556 = vld [vmem:[%s4554] sm:%s4547]
                %4557 = vst [vmem:[%s4555] sm:%s4547] %v4556
                %v4558 = vld [vmem:[%s4554 + $0x8] sm:%s4547]
                %4559 = vst [vmem:[%s4555 + $0x18] sm:%s4547] %v4558
                %v4560 = vld [vmem:[%s4554 + $0x10] sm:%s4547]
                %4561 = vst [vmem:[%s4555 + $0x30] sm:%s4547] %v4560
                %v4562 = vld [vmem:[%s4554 + $0x18] sm:%s4547]
                %4563 = vst [vmem:[%s4555 + $0x48] sm:%s4547] %v4562
                %v4564 = vld [vmem:[%s4554 + $0x20] sm:%s4547]
                %4565 = vst [vmem:[%s4555 + $0x60] sm:%s4547] %v4564
                %v4566 = vld [vmem:[%s4554 + $0x28] sm:%s4547]
                %4567 = vst [vmem:[%s4555 + $0x78] sm:%s4547] %v4566
                %v4568 = vld [vmem:[%s4554 + $0x30] sm:%s4547]
                %4569 = vst [vmem:[%s4555 + $0x90] sm:%s4547] %v4568
                %v4570 = vld [vmem:[%s4554 + $0x38] sm:%s4547]
                %4571 = vst [vmem:[%s4555 + $0xa8] sm:%s4547] %v4570
                %v4572 = vld [vmem:[%s4554 + $0x40] sm:%s4547]
                %4573 = vst [vmem:[%s4555 + $0xc0] sm:%s4547] %v4572
                %v4574 = vld [vmem:[%s4554 + $0x48] sm:%s4547]
                %4575 = vst [vmem:[%s4555 + $0xd8] sm:%s4547] %v4574
                %v4576 = vld [vmem:[%s4554 + $0x50] sm:%s4547]
                %4577 = vst [vmem:[%s4555 + $0xf0] sm:%s4547] %v4576
                %v4578 = vld [vmem:[%s4554 + $0x58] sm:%s4547]
                %4579 = vst [vmem:[%s4555 + $0x108] sm:%s4547] %v4578
                %v4580 = vld [vmem:[%s4554 + $0x60] sm:%s4547]
                %4581 = vst [vmem:[%s4555 + $0x120] sm:%s4547] %v4580
                %v4582 = vld [vmem:[%s4554 + $0x68] sm:%s4547]
                %4583 = vst [vmem:[%s4555 + $0x138] sm:%s4547] %v4582
                %v4584 = vld [vmem:[%s4554 + $0x70] sm:%s4547]
                %4585 = vst [vmem:[%s4555 + $0x150] sm:%s4547] %v4584
                %v4586 = vld [vmem:[%s4554 + $0x78] sm:%s4547]
                %4587 = vst [vmem:[%s4555 + $0x168] sm:%s4547] %v4586
                %v4588 = vld [vmem:[%s4554 + $0x80] sm:%s4547]
                %4589 = vst [vmem:[%s4555 + $0x180] sm:%s4547] %v4588
                %v4590 = vld [vmem:[%s4554 + $0x88] sm:%s4547]
                %4591 = vst [vmem:[%s4555 + $0x198] sm:%s4547] %v4590
                %v4592 = vld [vmem:[%s4554 + $0x90] sm:%s4547]
                %4593 = vst [vmem:[%s4555 + $0x1b0] sm:%s4547] %v4592
                %v4594 = vld [vmem:[%s4554 + $0x98] sm:%s4547]
                %4595 = vst [vmem:[%s4555 + $0x1c8] sm:%s4547] %v4594
                %v4596 = vld [vmem:[%s4554 + $0xa0] sm:%s4547]
                %4597 = vst [vmem:[%s4555 + $0x1e0] sm:%s4547] %v4596
                %v4598 = vld [vmem:[%s4554 + $0xa8] sm:%s4547]
                %4599 = vst [vmem:[%s4555 + $0x1f8] sm:%s4547] %v4598
                %v4600 = vld [vmem:[%s4554 + $0xb0] sm:%s4547]
                %4601 = vst [vmem:[%s4555 + $0x210] sm:%s4547] %v4600
                %v4602 = vld [vmem:[%s4554 + $0xb8] sm:%s4547]
                %4603 = vst [vmem:[%s4555 + $0x228] sm:%s4547] %v4602
                %v4604 = vld [vmem:[%s4554 + $0xc0] sm:%s4547]
                %4605 = vst [vmem:[%s4555 + $0x240] sm:%s4547] %v4604
                %v4606 = vld [vmem:[%s4554 + $0xc8] sm:%s4547]
                %4607 = vst [vmem:[%s4555 + $0x258] sm:%s4547] %v4606
                %v4608 = vld [vmem:[%s4554 + $0xd0] sm:%s4547]
                %4609 = vst [vmem:[%s4555 + $0x270] sm:%s4547] %v4608
                %v4610 = vld [vmem:[%s4554 + $0xd8] sm:%s4547]
                %4611 = vst [vmem:[%s4555 + $0x288] sm:%s4547] %v4610
                %v4612 = vld [vmem:[%s4554 + $0xe0] sm:%s4547]
                %4613 = vst [vmem:[%s4555 + $0x2a0] sm:%s4547] %v4612
                %v4614 = vld [vmem:[%s4554 + $0xe8] sm:%s4547]
                %4615 = vst [vmem:[%s4555 + $0x2b8] sm:%s4547] %v4614
                %v4616 = vld [vmem:[%s4554 + $0xf0] sm:%s4547]
                %4617 = vst [vmem:[%s4555 + $0x2d0] sm:%s4547] %v4616
                %v4618 = vld [vmem:[%s4554 + $0xf8] sm:%s4547]
                %4619 = vst [vmem:[%s4555 + $0x2e8] sm:%s4547] %v4618
                %v4620 = vld [vmem:[%s4554 + $0x100] sm:%s4547]
                %4621 = vst [vmem:[%s4555 + $0x300] sm:%s4547] %v4620
                %v4622 = vld [vmem:[%s4554 + $0x108] sm:%s4547]
                %4623 = vst [vmem:[%s4555 + $0x318] sm:%s4547] %v4622
                %v4624 = vld [vmem:[%s4554 + $0x110] sm:%s4547]
                %4625 = vst [vmem:[%s4555 + $0x330] sm:%s4547] %v4624
                %v4626 = vld [vmem:[%s4554 + $0x118] sm:%s4547]
                %4627 = vst [vmem:[%s4555 + $0x348] sm:%s4547] %v4626
                %v4628 = vld [vmem:[%s4554 + $0x120] sm:%s4547]
                %4629 = vst [vmem:[%s4555 + $0x360] sm:%s4547] %v4628
                %v4630 = vld [vmem:[%s4554 + $0x128] sm:%s4547]
                %4631 = vst [vmem:[%s4555 + $0x378] sm:%s4547] %v4630
                %v4632 = vld [vmem:[%s4554 + $0x130] sm:%s4547]
                %4633 = vst [vmem:[%s4555 + $0x390] sm:%s4547] %v4632
                %v4634 = vld [vmem:[%s4554 + $0x138] sm:%s4547]
                %4635 = vst [vmem:[%s4555 + $0x3a8] sm:%s4547] %v4634
                %v4636 = vld [vmem:[%s4554 + $0x140] sm:%s4547]
                %4637 = vst [vmem:[%s4555 + $0x3c0] sm:%s4547] %v4636
                %v4638 = vld [vmem:[%s4554 + $0x148] sm:%s4547]
                %4639 = vst [vmem:[%s4555 + $0x3d8] sm:%s4547] %v4638
                %v4640 = vld [vmem:[%s4554 + $0x150] sm:%s4547]
                %4641 = vst [vmem:[%s4555 + $0x3f0] sm:%s4547] %v4640
                %v4642 = vld [vmem:[%s4554 + $0x158] sm:%s4547]
                %4643 = vst [vmem:[%s4555 + $0x408] sm:%s4547] %v4642
                %v4644 = vld [vmem:[%s4554 + $0x160] sm:%s4547]
                %4645 = vst [vmem:[%s4555 + $0x420] sm:%s4547] %v4644
                %v4646 = vld [vmem:[%s4554 + $0x168] sm:%s4547]
                %4647 = vst [vmem:[%s4555 + $0x438] sm:%s4547] %v4646
                %v4648 = vld [vmem:[%s4554 + $0x170] sm:%s4547]
                %4649 = vst [vmem:[%s4555 + $0x450] sm:%s4547] %v4648
                %v4650 = vld [vmem:[%s4554 + $0x178] sm:%s4547]
                %4651 = vst [vmem:[%s4555 + $0x468] sm:%s4547] %v4650
                %v4652 = vld [vmem:[%s4554 + $0x180] sm:%s4547]
                %4653 = vst [vmem:[%s4555 + $0x480] sm:%s4547] %v4652
                %v4654 = vld [vmem:[%s4554 + $0x188] sm:%s4547]
                %4655 = vst [vmem:[%s4555 + $0x498] sm:%s4547] %v4654
                %v4656 = vld [vmem:[%s4554 + $0x190] sm:%s4547]
                %4657 = vst [vmem:[%s4555 + $0x4b0] sm:%s4547] %v4656
                %v4658 = vld [vmem:[%s4554 + $0x198] sm:%s4547]
                %4659 = vst [vmem:[%s4555 + $0x4c8] sm:%s4547] %v4658
                %v4660 = vld [vmem:[%s4554 + $0x1a0] sm:%s4547]
                %4661 = vst [vmem:[%s4555 + $0x4e0] sm:%s4547] %v4660
                %v4662 = vld [vmem:[%s4554 + $0x1a8] sm:%s4547]
                %4663 = vst [vmem:[%s4555 + $0x4f8] sm:%s4547] %v4662
                %v4664 = vld [vmem:[%s4554 + $0x1b0] sm:%s4547]
                %4665 = vst [vmem:[%s4555 + $0x510] sm:%s4547] %v4664
                %v4666 = vld [vmem:[%s4554 + $0x1b8] sm:%s4547]
                %4667 = vst [vmem:[%s4555 + $0x528] sm:%s4547] %v4666
              $region133: #{tpu_custom_call.1} parent=127 // loop_footer
                %s4553 = sadd.s32 1, %s4549
              $region134: #{tpu_custom_call.1} parent=127 // loop_footer_branch
                %4548 = sbr.rel target = $region130
              $region135: #{tpu_custom_call.1} parent=127 // loop_exit
                _
            $region128: #{tpu_custom_call.1} parent=119 // pred_fallthru
              _
          $region120: #{tpu_custom_call.1} parent=115 // pred_fallthru
            _
          %4792 = vnop
        $region116: #{tpu_custom_call.1} parent=103 // pred_fallthru
          _
      $region104: #{tpu_custom_call.1} parent=5 // pred_fallthru
        _
      %p4793 = scmp.le.s32.totalorder 2, %s10
      // Predicated region
      $region151: #{tpu_custom_call.1} parent=5 // pred_check
        %p4794 = pneg %p4793
      $region152: #{tpu_custom_call.1} parent=5 // pred_check_branch
        %4796 = sbr.rel (%p4794) target = $region154
      $region153: #{tpu_custom_call.1} parent=5 // pred_region
        %s4797 = ssub.s32 %s10, 2
        // Predicated region
        $region155: #{tpu_custom_call.1} parent=153 // pred_check
          %p4798 = pneg %p143
        $region156: #{tpu_custom_call.1} parent=153 // pred_check_branch
          %4800 = sbr.rel (%p4798) target = $region158
        $region157: #{tpu_custom_call.1} parent=153 // pred_region
          %s4801 = sand.u32 %s128, 1
          %s4802 = sand.u32 %s128, 1
          %s4803 = smul.addr %s4802, 448
          %s4804 = scalar_lea.vmem [#allocation5], %s4803
        $region158: #{tpu_custom_call.1} parent=153 // pred_fallthru
          _
      $region154: #{tpu_custom_call.1} parent=5 // pred_fallthru
        _
    $region6: #{tpu_custom_call.1} parent=1 // loop_footer
      %s14 = sadd.s32 1, %s10
    $region7: #{tpu_custom_call.1} parent=1 // loop_footer_branch
      %9 = sbr.rel target = $region3
    $region8: #{tpu_custom_call.1} parent=1 // loop_exit
      _

</llo_original>
